<compile_context>
chip_gen: v5e
topology: v5e:2x2
jax: 0.10.0
libtpu: 0.0.40
codegen_flags: <defaults>
</compile_context>

<pallas_src>
import functools

import jax
import jax.numpy as jnp
from jax.experimental import pallas as pl
from jax.experimental.pallas import tpu as pltpu


def _round_up(x, m):
    return (x + m - 1) // m * m


def _pick_batch_tile(b, candidates=(32, 16, 8)):
    # Either a multiple of 8 that divides b, or the full batch (both are legal blocks).
    for c in candidates:
        if b % c == 0:
            return c
    return b


# ----------------------------------------------------------------------------
# Fused kernel: conv backbone (in-kernel im2col, 9 shifted matmuls) -> ReLU ->
# global average pool -> proj linear -> (x - mean) * inv_std -> final linear.
# ----------------------------------------------------------------------------
def _cbm_fused_kernel(x_ref, w_ref, wc_ref, mean_ref, istd_ref, wg_ref, bg_ref,
                      o_ref, *, H, W):
    # x_ref:    (BT, H+2, W+2, C)   bf16  zero-padded NHWC activation tile
    # w_ref:    (9, C, D_pad)       bf16  conv weight, one (C, D_pad) slab per (kh, kw)
    # wc_ref:   (D_pad, Nc_pad)     bf16  proj_layer.weight.T (zero-padded)
    # mean_ref: (1, Nc_pad)         f32   proj_mean
    # istd_ref: (1, Nc_pad)         f32   1 / proj_std
    # wg_ref:   (Nc_pad, Ncls_pad)  bf16  final.weight.T (zero-padded)
    # bg_ref:   (1, Ncls_pad)       f32   final.bias (zero-padded)
    # o_ref:    (BT, Ncls_pad)      f32   logits
    BT = x_ref.shape[0]
    C = x_ref.shape[3]
    D_pad = w_ref.shape[2]
    HW = H * W

    # Load the whole padded tile once; upcast to f32 so the shifted slices and the
    # 4D->2D reshape stay on the plain f32 (8,128) layout path (v5e-friendly too).
    x = x_ref[...].astype(jnp.float32)

    # 3x3 conv (padding=1) via 9 shifted-slice matmuls, f32 accumulation on the MXU.
    acc = jnp.zeros((BT * HW, D_pad), jnp.float32)
    for kh in range(3):
        for kw in range(3):
            patch = x[:, kh:kh + H, kw:kw + W, :].reshape(BT * HW, C)
            acc = acc + jnp.dot(
                patch.astype(jnp.bfloat16),      # bf16 into the MXU
                w_ref[kh * 3 + kw],              # (C, D_pad) bf16
                preferred_element_type=jnp.float32,
            )

    # ReLU + global average pool: sublane reduce over HW -> (BT, D_pad), no per-row stores.
    y = jnp.maximum(acc, 0.0).reshape(BT, HW, D_pad)
    feat = jnp.sum(y, axis=1) * jnp.float32(1.0 / HW)          # flatten(x, 1) -> [BT, D_pad]

    # proj_layer (no bias) -> normalize -> final (with bias).
    c = jnp.dot(feat.astype(jnp.bfloat16), wc_ref[...],
                preferred_element_type=jnp.float32)
    c = (c - mean_ref[...]) * istd_ref[...]                    # proj_c = (x - mean) / std
    o_ref[...] = (
        jnp.dot(c.astype(jnp.bfloat16), wg_ref[...],
                preferred_element_type=jnp.float32)
        + bg_ref[...]
    )


def cbm_model_forward(x_nchw, params):
    """x_nchw: [B, C, H, W] f32 -> logits [B, Ncls] f32 (single fused pallas_call)."""
    conv_w = params["conv_w"]          # [C_out, C_in, 3, 3]
    W_c = params["W_c"]                # [Nc, D]
    proj_mean = params["proj_mean"]    # [Nc]
    proj_std = params["proj_std"]      # [Nc]
    W_g = params["W_g"]                # [Ncls, Nc]
    b_g = params["b_g"]                # [Ncls]

    B, C, H, W = x_nchw.shape
    C_out = conv_w.shape[0]
    Nc, D = W_c.shape
    Ncls = W_g.shape[0]
    assert C_out == D, "backbone feature dim must match proj_layer in_features"

    D_pad = _round_up(C_out, 128)
    Nc_pad = _round_up(Nc, 128)
    Ncls_pad = _round_up(Ncls, 128)
    BT = _pick_batch_tile(B)

    # NCHW -> NHWC, zero-pad spatial by 1 (3x3 conv, padding=1); bf16 across the boundary.
    x = jnp.transpose(x_nchw, (0, 2, 3, 1))
    xp = jnp.pad(x, ((0, 0), (1, 1), (1, 1), (0, 0))).astype(jnp.bfloat16)

    # Conv weight [C_out, C_in, 3, 3] -> [9, C_in, D_pad]; padded output channels are
    # zero, so padded feature columns stay exactly zero through ReLU and pooling and
    # the padded rows of wc contribute nothing.
    w = jnp.transpose(conv_w, (2, 3, 1, 0)).reshape(9, C, C_out)
    w = jnp.pad(w, ((0, 0), (0, 0), (0, D_pad - C_out))).astype(jnp.bfloat16)

    wc = jnp.pad(W_c.T, ((0, D_pad - D), (0, Nc_pad - Nc))).astype(jnp.bfloat16)
    mean = jnp.pad(proj_mean.reshape(1, Nc),
                   ((0, 0), (0, Nc_pad - Nc))).astype(jnp.float32)
    istd = jnp.pad((1.0 / proj_std).reshape(1, Nc),
                   ((0, 0), (0, Nc_pad - Nc))).astype(jnp.float32)
    wg = jnp.pad(W_g.T, ((0, Nc_pad - Nc), (0, Ncls_pad - Ncls))).astype(jnp.bfloat16)
    bg = jnp.pad(b_g.reshape(1, Ncls),
                 ((0, 0), (0, Ncls_pad - Ncls))).astype(jnp.float32)

    kernel = functools.partial(_cbm_fused_kernel, H=H, W=W)
    out = pl.pallas_call(
        kernel,
        out_shape=jax.ShapeDtypeStruct((B, Ncls_pad), jnp.float32),
        grid_spec=pltpu.PrefetchScalarGridSpec(
            num_scalar_prefetch=0,
            grid=(B // BT,),
            in_specs=[
                pl.BlockSpec((BT, H + 2, W + 2, C), lambda i: (i, 0, 0, 0)),
                pl.BlockSpec((9, C, D_pad), lambda i: (0, 0, 0)),
                pl.BlockSpec((D_pad, Nc_pad), lambda i: (0, 0)),
                pl.BlockSpec((1, Nc_pad), lambda i: (0, 0)),
                pl.BlockSpec((1, Nc_pad), lambda i: (0, 0)),
                pl.BlockSpec((Nc_pad, Ncls_pad), lambda i: (0, 0)),
                pl.BlockSpec((1, Ncls_pad), lambda i: (0, 0)),
            ],
            out_specs=pl.BlockSpec((BT, Ncls_pad), lambda i: (i, 0)),
        ),
        compiler_params=pltpu.CompilerParams(
            dimension_semantics=("parallel",),
            vmem_limit_bytes=32 * 1024 * 1024,
        ),
    )(xp, w, wc, mean, istd, wg, bg)
    return out[:, :Ncls]


# ----------------------------------------------------------------------------
# Parameter setup + test
# ----------------------------------------------------------------------------
def init_params(key, C_in, D, Nc, Ncls):
    k1, k2, k3, k4 = jax.random.split(key, 4)
    # NOTE: CBM_model.__init__ zero-inits proj_layer.weight, proj_mean=0, proj_std=1.
    # We use small random values so the kernel path is actually exercised
    # (shapes match the module exactly).
    return {
        "conv_w": 0.1 * jax.random.normal(k1, (D, C_in, 3, 3), jnp.float32),
        "W_c": 0.1 * jax.random.normal(k2, (Nc, D), jnp.float32),       # proj_layer.weight
        "proj_mean": jnp.zeros((Nc,), jnp.float32),
        "proj_std": jnp.ones((Nc,), jnp.float32),
        "W_g": 0.1 * jax.random.normal(k3, (Ncls, Nc), jnp.float32),    # final.weight
        "b_g": 0.1 * jax.random.normal(k4, (Ncls,), jnp.float32),       # final.bias
    }


if __name__ == "__main__":
    B, C, H, W = 2, 4, 16, 16    # input: NCHW like PyTorch
    D, Nc, Ncls = 32, 64, 10     # backbone feat dim, #concepts, #classes

    key = jax.random.PRNGKey(0)
    kx, kp = jax.random.split(key)
    x = jax.random.normal(kx, (B, C, H, W), jnp.float32)
    params = init_params(kp, C, D, Nc, Ncls)

    out = cbm_model_forward(x, params)
    jax.block_until_ready(out)
    assert out.shape == (B, Ncls)

    # Pure-JAX reference of the same math, matching the kernel's bf16-in / f32-accum.
    xph = jnp.pad(jnp.transpose(x, (0, 2, 3, 1)), ((0, 0), (1, 1), (1, 1), (0, 0)))
    xph = xph.astype(jnp.bfloat16).astype(jnp.float32)
    patches = jnp.stack(
        [xph[:, kh:kh + H, kw:kw + W, :] for kh in range(3) for kw in range(3)], axis=3
    ).reshape(B, H * W, 9 * C)
    w_mat = jnp.transpose(params["conv_w"], (2, 3, 1, 0)).reshape(9 * C, D)
    y_ref = jnp.dot(patches.astype(jnp.bfloat16), w_mat.astype(jnp.bfloat16),
                    preferred_element_type=jnp.float32)
    feat_ref = jnp.mean(jnp.maximum(y_ref, 0.0), axis=1)
    c_ref = jnp.dot(feat_ref.astype(jnp.bfloat16), params["W_c"].T.astype(jnp.bfloat16),
                    preferred_element_type=jnp.float32)
    c_ref = (c_ref - params["proj_mean"]) * (1.0 / params["proj_std"])
    out_ref = jnp.dot(c_ref.astype(jnp.bfloat16), params["W_g"].T.astype(jnp.bfloat16),
                      preferred_element_type=jnp.float32) + params["b_g"]

    assert jnp.allclose(out, out_ref, atol=2e-3, rtol=2e-3), "mismatch vs reference"

    print("KERNEL_OK")
</pallas_src>

<mosaic_0001>
module attributes {stable_mosaic.version = 11 : i64} {
  func.func @_cbm_fused_kernel(%arg0: i32, %arg1: memref<2x18x18x4xbf16, #tpu.memory_space<vmem>>, %arg2: memref<9x4x128xbf16, #tpu.memory_space<vmem>>, %arg3: memref<128x128xbf16, #tpu.memory_space<vmem>>, %arg4: memref<1x128xf32, #tpu.memory_space<vmem>>, %arg5: memref<1x128xf32, #tpu.memory_space<vmem>>, %arg6: memref<128x128xbf16, #tpu.memory_space<vmem>>, %arg7: memref<1x128xf32, #tpu.memory_space<vmem>>, %arg8: memref<2x128xf32, #tpu.memory_space<vmem>>) attributes {dimension_semantics = [#tpu.dimension_semantics<parallel>], iteration_bounds = array<i64: 1>, scalar_prefetch = 0 : i64, scratch_operands = 0 : i64, tpu.core_type = #tpu.core_type<tc>, window_params = [{transform_indices = @transform_0, window_bounds = array<i64: 2, 18, 18, 4>}, {pipeline_mode = #tpu.pipeline_mode<synchronous>, transform_indices = @transform_1, window_bounds = array<i64: 9, 4, 128>}, {pipeline_mode = #tpu.pipeline_mode<synchronous>, transform_indices = @transform_2, window_bounds = array<i64: 128, 128>}, {pipeline_mode = #tpu.pipeline_mode<synchronous>, transform_indices = @transform_3, window_bounds = array<i64: 1, 128>}, {pipeline_mode = #tpu.pipeline_mode<synchronous>, transform_indices = @transform_4, window_bounds = array<i64: 1, 128>}, {pipeline_mode = #tpu.pipeline_mode<synchronous>, transform_indices = @transform_5, window_bounds = array<i64: 128, 128>}, {pipeline_mode = #tpu.pipeline_mode<synchronous>, transform_indices = @transform_6, window_bounds = array<i64: 1, 128>}, {transform_indices = @transform_7, window_bounds = array<i64: 2, 128>}]} {
    %c0 = arith.constant 0 : index
    %c0_0 = arith.constant 0 : index
    %c0_1 = arith.constant 0 : index
    %c0_2 = arith.constant 0 : index
    %0 = vector.load %arg1[%c0, %c0_0, %c0_1, %c0_2] : memref<2x18x18x4xbf16, #tpu.memory_space<vmem>>, vector<2x18x18x4xbf16>
    %1 = arith.extf %0 : vector<2x18x18x4xbf16> to vector<2x18x18x4xf32>
    %cst = arith.constant 0.000000e+00 : f32
    %2 = vector.broadcast %cst : f32 to vector<512x128xf32>
    %3 = vector.extract_strided_slice %1 {offsets = [0, 0, 0, 0], sizes = [2, 16, 16, 4], strides = [1, 1, 1, 1]} : vector<2x18x18x4xf32> to vector<2x16x16x4xf32>
    %4 = vector.shape_cast %3 : vector<2x16x16x4xf32> to vector<512x4xf32>
    %5 = arith.truncf %4 : vector<512x4xf32> to vector<512x4xbf16>
    %c0_3 = arith.constant 0 : index
    %c0_4 = arith.constant 0 : index
    %c0_5 = arith.constant 0 : index
    %6 = vector.load %arg2[%c0_3, %c0_4, %c0_5] : memref<9x4x128xbf16, #tpu.memory_space<vmem>>, vector<1x4x128xbf16>
    %7 = vector.shape_cast %6 : vector<1x4x128xbf16> to vector<4x128xbf16>
    %cst_6 = arith.constant dense<0.000000e+00> : vector<512x128xf32>
    %8 = tpu.matmul %5, %7, %cst_6 {dimension_numbers = #tpu.dot_dimension_numbers<[1], [0], [0], [1], [0, 0, 1, 1], [], []>} : vector<512x4xbf16>, vector<4x128xbf16>, vector<512x128xf32> -> vector<512x128xf32>
    %9 = arith.addf %2, %8 : vector<512x128xf32>
    %10 = vector.extract_strided_slice %1 {offsets = [0, 0, 1, 0], sizes = [2, 16, 16, 4], strides = [1, 1, 1, 1]} : vector<2x18x18x4xf32> to vector<2x16x16x4xf32>
    %11 = vector.shape_cast %10 : vector<2x16x16x4xf32> to vector<512x4xf32>
    %12 = arith.truncf %11 : vector<512x4xf32> to vector<512x4xbf16>
    %c1 = arith.constant 1 : index
    %c0_7 = arith.constant 0 : index
    %c0_8 = arith.constant 0 : index
    %13 = vector.load %arg2[%c1, %c0_7, %c0_8] : memref<9x4x128xbf16, #tpu.memory_space<vmem>>, vector<1x4x128xbf16>
    %14 = vector.shape_cast %13 : vector<1x4x128xbf16> to vector<4x128xbf16>
    %cst_9 = arith.constant dense<0.000000e+00> : vector<512x128xf32>
    %15 = tpu.matmul %12, %14, %cst_9 {dimension_numbers = #tpu.dot_dimension_numbers<[1], [0], [0], [1], [0, 0, 1, 1], [], []>} : vector<512x4xbf16>, vector<4x128xbf16>, vector<512x128xf32> -> vector<512x128xf32>
    %16 = arith.addf %9, %15 : vector<512x128xf32>
    %17 = vector.extract_strided_slice %1 {offsets = [0, 0, 2, 0], sizes = [2, 16, 16, 4], strides = [1, 1, 1, 1]} : vector<2x18x18x4xf32> to vector<2x16x16x4xf32>
    %18 = vector.shape_cast %17 : vector<2x16x16x4xf32> to vector<512x4xf32>
    %19 = arith.truncf %18 : vector<512x4xf32> to vector<512x4xbf16>
    %c2 = arith.constant 2 : index
    %c0_10 = arith.constant 0 : index
    %c0_11 = arith.constant 0 : index
    %20 = vector.load %arg2[%c2, %c0_10, %c0_11] : memref<9x4x128xbf16, #tpu.memory_space<vmem>>, vector<1x4x128xbf16>
    %21 = vector.shape_cast %20 : vector<1x4x128xbf16> to vector<4x128xbf16>
    %cst_12 = arith.constant dense<0.000000e+00> : vector<512x128xf32>
    %22 = tpu.matmul %19, %21, %cst_12 {dimension_numbers = #tpu.dot_dimension_numbers<[1], [0], [0], [1], [0, 0, 1, 1], [], []>} : vector<512x4xbf16>, vector<4x128xbf16>, vector<512x128xf32> -> vector<512x128xf32>
    %23 = arith.addf %16, %22 : vector<512x128xf32>
    %24 = vector.extract_strided_slice %1 {offsets = [0, 1, 0, 0], sizes = [2, 16, 16, 4], strides = [1, 1, 1, 1]} : vector<2x18x18x4xf32> to vector<2x16x16x4xf32>
    %25 = vector.shape_cast %24 : vector<2x16x16x4xf32> to vector<512x4xf32>
    %26 = arith.truncf %25 : vector<512x4xf32> to vector<512x4xbf16>
    %c3 = arith.constant 3 : index
    %c0_13 = arith.constant 0 : index
    %c0_14 = arith.constant 0 : index
    %27 = vector.load %arg2[%c3, %c0_13, %c0_14] : memref<9x4x128xbf16, #tpu.memory_space<vmem>>, vector<1x4x128xbf16>
    %28 = vector.shape_cast %27 : vector<1x4x128xbf16> to vector<4x128xbf16>
    %cst_15 = arith.constant dense<0.000000e+00> : vector<512x128xf32>
    %29 = tpu.matmul %26, %28, %cst_15 {dimension_numbers = #tpu.dot_dimension_numbers<[1], [0], [0], [1], [0, 0, 1, 1], [], []>} : vector<512x4xbf16>, vector<4x128xbf16>, vector<512x128xf32> -> vector<512x128xf32>
    %30 = arith.addf %23, %29 : vector<512x128xf32>
    %31 = vector.extract_strided_slice %1 {offsets = [0, 1, 1, 0], sizes = [2, 16, 16, 4], strides = [1, 1, 1, 1]} : vector<2x18x18x4xf32> to vector<2x16x16x4xf32>
    %32 = vector.shape_cast %31 : vector<2x16x16x4xf32> to vector<512x4xf32>
    %33 = arith.truncf %32 : vector<512x4xf32> to vector<512x4xbf16>
    %c4 = arith.constant 4 : index
    %c0_16 = arith.constant 0 : index
    %c0_17 = arith.constant 0 : index
    %34 = vector.load %arg2[%c4, %c0_16, %c0_17] : memref<9x4x128xbf16, #tpu.memory_space<vmem>>, vector<1x4x128xbf16>
    %35 = vector.shape_cast %34 : vector<1x4x128xbf16> to vector<4x128xbf16>
    %cst_18 = arith.constant dense<0.000000e+00> : vector<512x128xf32>
    %36 = tpu.matmul %33, %35, %cst_18 {dimension_numbers = #tpu.dot_dimension_numbers<[1], [0], [0], [1], [0, 0, 1, 1], [], []>} : vector<512x4xbf16>, vector<4x128xbf16>, vector<512x128xf32> -> vector<512x128xf32>
    %37 = arith.addf %30, %36 : vector<512x128xf32>
    %38 = vector.extract_strided_slice %1 {offsets = [0, 1, 2, 0], sizes = [2, 16, 16, 4], strides = [1, 1, 1, 1]} : vector<2x18x18x4xf32> to vector<2x16x16x4xf32>
    %39 = vector.shape_cast %38 : vector<2x16x16x4xf32> to vector<512x4xf32>
    %40 = arith.truncf %39 : vector<512x4xf32> to vector<512x4xbf16>
    %c5 = arith.constant 5 : index
    %c0_19 = arith.constant 0 : index
    %c0_20 = arith.constant 0 : index
    %41 = vector.load %arg2[%c5, %c0_19, %c0_20] : memref<9x4x128xbf16, #tpu.memory_space<vmem>>, vector<1x4x128xbf16>
    %42 = vector.shape_cast %41 : vector<1x4x128xbf16> to vector<4x128xbf16>
    %cst_21 = arith.constant dense<0.000000e+00> : vector<512x128xf32>
    %43 = tpu.matmul %40, %42, %cst_21 {dimension_numbers = #tpu.dot_dimension_numbers<[1], [0], [0], [1], [0, 0, 1, 1], [], []>} : vector<512x4xbf16>, vector<4x128xbf16>, vector<512x128xf32> -> vector<512x128xf32>
    %44 = arith.addf %37, %43 : vector<512x128xf32>
    %45 = vector.extract_strided_slice %1 {offsets = [0, 2, 0, 0], sizes = [2, 16, 16, 4], strides = [1, 1, 1, 1]} : vector<2x18x18x4xf32> to vector<2x16x16x4xf32>
    %46 = vector.shape_cast %45 : vector<2x16x16x4xf32> to vector<512x4xf32>
    %47 = arith.truncf %46 : vector<512x4xf32> to vector<512x4xbf16>
    %c6 = arith.constant 6 : index
    %c0_22 = arith.constant 0 : index
    %c0_23 = arith.constant 0 : index
    %48 = vector.load %arg2[%c6, %c0_22, %c0_23] : memref<9x4x128xbf16, #tpu.memory_space<vmem>>, vector<1x4x128xbf16>
    %49 = vector.shape_cast %48 : vector<1x4x128xbf16> to vector<4x128xbf16>
    %cst_24 = arith.constant dense<0.000000e+00> : vector<512x128xf32>
    %50 = tpu.matmul %47, %49, %cst_24 {dimension_numbers = #tpu.dot_dimension_numbers<[1], [0], [0], [1], [0, 0, 1, 1], [], []>} : vector<512x4xbf16>, vector<4x128xbf16>, vector<512x128xf32> -> vector<512x128xf32>
    %51 = arith.addf %44, %50 : vector<512x128xf32>
    %52 = vector.extract_strided_slice %1 {offsets = [0, 2, 1, 0], sizes = [2, 16, 16, 4], strides = [1, 1, 1, 1]} : vector<2x18x18x4xf32> to vector<2x16x16x4xf32>
    %53 = vector.shape_cast %52 : vector<2x16x16x4xf32> to vector<512x4xf32>
    %54 = arith.truncf %53 : vector<512x4xf32> to vector<512x4xbf16>
    %c7 = arith.constant 7 : index
    %c0_25 = arith.constant 0 : index
    %c0_26 = arith.constant 0 : index
    %55 = vector.load %arg2[%c7, %c0_25, %c0_26] : memref<9x4x128xbf16, #tpu.memory_space<vmem>>, vector<1x4x128xbf16>
    %56 = vector.shape_cast %55 : vector<1x4x128xbf16> to vector<4x128xbf16>
    %cst_27 = arith.constant dense<0.000000e+00> : vector<512x128xf32>
    %57 = tpu.matmul %54, %56, %cst_27 {dimension_numbers = #tpu.dot_dimension_numbers<[1], [0], [0], [1], [0, 0, 1, 1], [], []>} : vector<512x4xbf16>, vector<4x128xbf16>, vector<512x128xf32> -> vector<512x128xf32>
    %58 = arith.addf %51, %57 : vector<512x128xf32>
    %59 = vector.extract_strided_slice %1 {offsets = [0, 2, 2, 0], sizes = [2, 16, 16, 4], strides = [1, 1, 1, 1]} : vector<2x18x18x4xf32> to vector<2x16x16x4xf32>
    %60 = vector.shape_cast %59 : vector<2x16x16x4xf32> to vector<512x4xf32>
    %61 = arith.truncf %60 : vector<512x4xf32> to vector<512x4xbf16>
    %c8 = arith.constant 8 : index
    %c0_28 = arith.constant 0 : index
    %c0_29 = arith.constant 0 : index
    %62 = vector.load %arg2[%c8, %c0_28, %c0_29] : memref<9x4x128xbf16, #tpu.memory_space<vmem>>, vector<1x4x128xbf16>
    %63 = vector.shape_cast %62 : vector<1x4x128xbf16> to vector<4x128xbf16>
    %cst_30 = arith.constant dense<0.000000e+00> : vector<512x128xf32>
    %64 = tpu.matmul %61, %63, %cst_30 {dimension_numbers = #tpu.dot_dimension_numbers<[1], [0], [0], [1], [0, 0, 1, 1], [], []>} : vector<512x4xbf16>, vector<4x128xbf16>, vector<512x128xf32> -> vector<512x128xf32>
    %65 = arith.addf %58, %64 : vector<512x128xf32>
    %cst_31 = arith.constant 0.000000e+00 : f32
    %66 = vector.broadcast %cst_31 : f32 to vector<512x128xf32>
    %67 = arith.maximumf %65, %66 : vector<512x128xf32>
    %68 = vector.shape_cast %67 : vector<512x128xf32> to vector<2x256x128xf32>
    %cst_32 = arith.constant dense<0.000000e+00> : vector<2x128xf32>
    %69 = vector.multi_reduction <add>, %68, %cst_32 [1] : vector<2x256x128xf32> to vector<2x128xf32>
    %cst_33 = arith.constant 3.906250e-03 : f32
    %70 = vector.broadcast %cst_33 : f32 to vector<2x128xf32>
    %71 = arith.mulf %69, %70 : vector<2x128xf32>
    %72 = arith.truncf %71 : vector<2x128xf32> to vector<2x128xbf16>
    %c0_34 = arith.constant 0 : index
    %c0_35 = arith.constant 0 : index
    %73 = vector.load %arg3[%c0_34, %c0_35] : memref<128x128xbf16, #tpu.memory_space<vmem>>, vector<128x128xbf16>
    %cst_36 = arith.constant dense<0.000000e+00> : vector<2x128xf32>
    %74 = tpu.matmul %72, %73, %cst_36 {dimension_numbers = #tpu.dot_dimension_numbers<[1], [0], [0], [1], [0, 0, 1, 1], [], []>} : vector<2x128xbf16>, vector<128x128xbf16>, vector<2x128xf32> -> vector<2x128xf32>
    %c0_37 = arith.constant 0 : index
    %c0_38 = arith.constant 0 : index
    %75 = vector.load %arg4[%c0_37, %c0_38] : memref<1x128xf32, #tpu.memory_space<vmem>>, vector<1x128xf32>
    %76 = vector.broadcast %75 : vector<1x128xf32> to vector<2x128xf32>
    %77 = arith.subf %74, %76 : vector<2x128xf32>
    %c0_39 = arith.constant 0 : index
    %c0_40 = arith.constant 0 : index
    %78 = vector.load %arg5[%c0_39, %c0_40] : memref<1x128xf32, #tpu.memory_space<vmem>>, vector<1x128xf32>
    %79 = vector.broadcast %78 : vector<1x128xf32> to vector<2x128xf32>
    %80 = arith.mulf %77, %79 : vector<2x128xf32>
    %81 = arith.truncf %80 : vector<2x128xf32> to vector<2x128xbf16>
    %c0_41 = arith.constant 0 : index
    %c0_42 = arith.constant 0 : index
    %82 = vector.load %arg6[%c0_41, %c0_42] : memref<128x128xbf16, #tpu.memory_space<vmem>>, vector<128x128xbf16>
    %cst_43 = arith.constant dense<0.000000e+00> : vector<2x128xf32>
    %83 = tpu.matmul %81, %82, %cst_43 {dimension_numbers = #tpu.dot_dimension_numbers<[1], [0], [0], [1], [0, 0, 1, 1], [], []>} : vector<2x128xbf16>, vector<128x128xbf16>, vector<2x128xf32> -> vector<2x128xf32>
    %c0_44 = arith.constant 0 : index
    %c0_45 = arith.constant 0 : index
    %84 = vector.load %arg7[%c0_44, %c0_45] : memref<1x128xf32, #tpu.memory_space<vmem>>, vector<1x128xf32>
    %85 = vector.broadcast %84 : vector<1x128xf32> to vector<2x128xf32>
    %86 = arith.addf %83, %85 : vector<2x128xf32>
    %c0_46 = arith.constant 0 : index
    %c0_47 = arith.constant 0 : index
    %87 = vector.load %arg8[%c0_46, %c0_47] : memref<2x128xf32, #tpu.memory_space<vmem>>, vector<2x128xf32>
    tpu.vector_store %arg8[%c0_46, %c0_47], %86 {strides = array<i32>} : memref<2x128xf32, #tpu.memory_space<vmem>>, vector<2x128xf32>,
    return
  }
  func.func @transform_0(%arg0: i32) -> (i32, i32, i32, i32) {
    %c0_i32 = arith.constant 0 : i32
    %c0_i32_0 = arith.constant 0 : i32
    %c0_i32_1 = arith.constant 0 : i32
    %c0_i32_2 = arith.constant 0 : i32
    return %arg0, %c0_i32, %c0_i32_0, %c0_i32_1 : i32, i32, i32, i32
  }
  func.func @transform_1(%arg0: i32) -> (i32, i32, i32) {
    %c0_i32 = arith.constant 0 : i32
    %c0_i32_0 = arith.constant 0 : i32
    %c0_i32_1 = arith.constant 0 : i32
    %c0_i32_2 = arith.constant 0 : i32
    return %c0_i32, %c0_i32_0, %c0_i32_1 : i32, i32, i32
  }
  func.func @transform_2(%arg0: i32) -> (i32, i32) {
    %c0_i32 = arith.constant 0 : i32
    %c0_i32_0 = arith.constant 0 : i32
    %c0_i32_1 = arith.constant 0 : i32
    return %c0_i32, %c0_i32_0 : i32, i32
  }
  func.func @transform_3(%arg0: i32) -> (i32, i32) {
    %c0_i32 = arith.constant 0 : i32
    %c0_i32_0 = arith.constant 0 : i32
    %c0_i32_1 = arith.constant 0 : i32
    return %c0_i32, %c0_i32_0 : i32, i32
  }
  func.func @transform_4(%arg0: i32) -> (i32, i32) {
    %c0_i32 = arith.constant 0 : i32
    %c0_i32_0 = arith.constant 0 : i32
    %c0_i32_1 = arith.constant 0 : i32
    return %c0_i32, %c0_i32_0 : i32, i32
  }
  func.func @transform_5(%arg0: i32) -> (i32, i32) {
    %c0_i32 = arith.constant 0 : i32
    %c0_i32_0 = arith.constant 0 : i32
    %c0_i32_1 = arith.constant 0 : i32
    return %c0_i32, %c0_i32_0 : i32, i32
  }
  func.func @transform_6(%arg0: i32) -> (i32, i32) {
    %c0_i32 = arith.constant 0 : i32
    %c0_i32_0 = arith.constant 0 : i32
    %c0_i32_1 = arith.constant 0 : i32
    return %c0_i32, %c0_i32_0 : i32, i32
  }
  func.func @transform_7(%arg0: i32) -> (i32, i32) {
    %c0_i32 = arith.constant 0 : i32
    %c0_i32_0 = arith.constant 0 : i32
    return %arg0, %c0_i32 : i32, i32
  }
}

</mosaic_0001>

<llo_original>
// kernel: tpu_custom_call.1
$region0: #{tpu_custom_call.1}
  #allocation0 [shape = 'u32[]', space=smem, size = 0x4, offset = 0x4, fixed_abs, tag = 'smem constant byte address 0x4 - core index']
  #allocation1 [shape = 'u32[72,128]{1,0:T(1,128)}', space=vmem, size = 0x9000, scoped, tag = 'internal scratch']
  %s0 = inlined_call_operand.vmem [shape: bf16[2,18,18,4], index: 0, kind: input, shape index: {}]
  %s1 = inlined_call_operand.vmem [shape: bf16[9,4,128], index: 1, kind: input, shape index: {}]
  %s2 = inlined_call_operand.vmem [shape: bf16[128,128], index: 2, kind: input, shape index: {}]
  %s3 = inlined_call_operand.vmem [shape: f32[1,128], index: 3, kind: input, shape index: {}]
  %s4 = inlined_call_operand.vmem [shape: f32[1,128], index: 4, kind: input, shape index: {}]
  %s5 = inlined_call_operand.vmem [shape: bf16[128,128], index: 5, kind: input, shape index: {}]
  %s6 = inlined_call_operand.vmem [shape: f32[1,128], index: 6, kind: input, shape index: {}]
  %s7 = inlined_call_operand.hbm [shape: f32[2,128], index: 7, kind: output, shape index: {}]
  %s8 = sld [smem:[#allocation0]]
  $region38: #{tpu_custom_call.1} parent=0
    _
  %s10 = ssub.s32 1, %s8
  %s11 = scalar_select 0, %s10, %s8
  $region1: #{tpu_custom_call.1} parent=0
    #allocation2 [shape = 'u8[1024]{0}', space=vmem, size = 0x400, scoped, tag = 'output window, operand 0, single buffered']
    #allocation3 [shape = 's32[1]{0}', space=sflag, size = 0x4, scoped, tag = 'scoped memory for tpu_custom_call.1']
    %12 = vsyncpa [#allocation3], 0
    // Predicated region
    $region2: #{tpu_custom_call.1} parent=1 // pred_check
      _
    $region3: #{tpu_custom_call.1} parent=1 // pred_check_branch
      %14 = sbr.rel (0) target = $region5
    $region4: #{tpu_custom_call.1} parent=1 // pred_region
      _
    $region5: #{tpu_custom_call.1} parent=1 // pred_fallthru
      _
    // Predicated region
    $region6: #{tpu_custom_call.1} parent=1 // pred_check
      _
    $region7: #{tpu_custom_call.1} parent=1 // pred_check_branch
      %16 = sbr.rel (0) target = $region9
    $region8: #{tpu_custom_call.1} parent=1 // pred_region
      _
    $region9: #{tpu_custom_call.1} parent=1 // pred_fallthru
      _
    // Predicated region
    $region10: #{tpu_custom_call.1} parent=1 // pred_check
      _
    $region11: #{tpu_custom_call.1} parent=1 // pred_check_branch
      %18 = sbr.rel (0) target = $region13
    $region12: #{tpu_custom_call.1} parent=1 // pred_region
      _
    $region13: #{tpu_custom_call.1} parent=1 // pred_fallthru
      _
    // Predicated region
    $region14: #{tpu_custom_call.1} parent=1 // pred_check
      _
    $region15: #{tpu_custom_call.1} parent=1 // pred_check_branch
      %20 = sbr.rel (0) target = $region17
    $region16: #{tpu_custom_call.1} parent=1 // pred_region
      _
    $region17: #{tpu_custom_call.1} parent=1 // pred_fallthru
      _
    // Predicated region
    $region18: #{tpu_custom_call.1} parent=1 // pred_check
      _
    $region19: #{tpu_custom_call.1} parent=1 // pred_check_branch
      %22 = sbr.rel (0) target = $region21
    $region20: #{tpu_custom_call.1} parent=1 // pred_region
      _
    $region21: #{tpu_custom_call.1} parent=1 // pred_fallthru
      _
    // Predicated region
    $region22: #{tpu_custom_call.1} parent=1 // pred_check
      _
    $region23: #{tpu_custom_call.1} parent=1 // pred_check_branch
      %24 = sbr.rel (0) target = $region25
    $region24: #{tpu_custom_call.1} parent=1 // pred_region
      _
    $region25: #{tpu_custom_call.1} parent=1 // pred_fallthru
      _
    // Predicated region
    $region26: #{tpu_custom_call.1} parent=1 // pred_check
      _
    $region27: #{tpu_custom_call.1} parent=1 // pred_check_branch
      %26 = sbr.rel (0) target = $region29
    $region28: #{tpu_custom_call.1} parent=1 // pred_region
      _
    $region29: #{tpu_custom_call.1} parent=1 // pred_fallthru
      _
    %v28 = vld [vmem:[%s0] sm:$0xf]
    %v29 = vld [vmem:[%s0 + $0x4] sm:$0xf]
    %v30 = vld [vmem:[%s0 + $0x8] sm:$0x1]
    %v31 = vld [vmem:[%s0 + $0xc] sm:$0xf]
    %v32 = vld [vmem:[%s0 + $0x10] sm:$0xf]
    %v33 = vld [vmem:[%s0 + $0x14] sm:$0x1]
    %v34 = vld [vmem:[%s0 + $0x18] sm:$0xf]
    %v35 = vld [vmem:[%s0 + $0x1c] sm:$0xf]
    %v36 = vld [vmem:[%s0 + $0x20] sm:$0x1]
    %v37 = vld [vmem:[%s0 + $0x24] sm:$0xf]
    %v38 = vld [vmem:[%s0 + $0x28] sm:$0xf]
    %v39 = vld [vmem:[%s0 + $0x2c] sm:$0x1]
    %v40 = vld [vmem:[%s0 + $0x30] sm:$0xf]
    %v41 = vld [vmem:[%s0 + $0x34] sm:$0xf]
    %v42 = vld [vmem:[%s0 + $0x38] sm:$0x1]
    %v43 = vld [vmem:[%s0 + $0x3c] sm:$0xf]
    %v44 = vld [vmem:[%s0 + $0x40] sm:$0xf]
    %v45 = vld [vmem:[%s0 + $0x44] sm:$0x1]
    %v46 = vld [vmem:[%s0 + $0x48] sm:$0xf]
    %v47 = vld [vmem:[%s0 + $0x4c] sm:$0xf]
    %v48 = vld [vmem:[%s0 + $0x50] sm:$0x1]
    %v49 = vld [vmem:[%s0 + $0x54] sm:$0xf]
    %v50 = vld [vmem:[%s0 + $0x58] sm:$0xf]
    %v51 = vld [vmem:[%s0 + $0x5c] sm:$0x1]
    %v52 = vld [vmem:[%s0 + $0x60] sm:$0xf]
    %v53 = vld [vmem:[%s0 + $0x64] sm:$0xf]
    %v54 = vld [vmem:[%s0 + $0x68] sm:$0x1]
    %v55 = vld [vmem:[%s0 + $0x6c] sm:$0xf]
    %v56 = vld [vmem:[%s0 + $0x70] sm:$0xf]
    %v57 = vld [vmem:[%s0 + $0x74] sm:$0x1]
    %v58 = vld [vmem:[%s0 + $0x78] sm:$0xf]
    %v59 = vld [vmem:[%s0 + $0x7c] sm:$0xf]
    %v60 = vld [vmem:[%s0 + $0x80] sm:$0x1]
    %v61 = vld [vmem:[%s0 + $0x84] sm:$0xf]
    %v62 = vld [vmem:[%s0 + $0x88] sm:$0xf]
    %v63 = vld [vmem:[%s0 + $0x8c] sm:$0x1]
    %v64 = vld [vmem:[%s0 + $0x90] sm:$0xf]
    %v65 = vld [vmem:[%s0 + $0x94] sm:$0xf]
    %v66 = vld [vmem:[%s0 + $0x98] sm:$0x1]
    %v67 = vld [vmem:[%s0 + $0x9c] sm:$0xf]
    %v68 = vld [vmem:[%s0 + $0xa0] sm:$0xf]
    %v69 = vld [vmem:[%s0 + $0xa4] sm:$0x1]
    %v70 = vld [vmem:[%s0 + $0xa8] sm:$0xf]
    %v71 = vld [vmem:[%s0 + $0xac] sm:$0xf]
    %v72 = vld [vmem:[%s0 + $0xb0] sm:$0x1]
    %v73 = vld [vmem:[%s0 + $0xb4] sm:$0xf]
    %v74 = vld [vmem:[%s0 + $0xb8] sm:$0xf]
    %v75 = vld [vmem:[%s0 + $0xbc] sm:$0x1]
    %v76 = vld [vmem:[%s0 + $0xc0] sm:$0xf]
    %v77 = vld [vmem:[%s0 + $0xc4] sm:$0xf]
    %v78 = vld [vmem:[%s0 + $0xc8] sm:$0x1]
    %v79 = vld [vmem:[%s0 + $0xcc] sm:$0xf]
    %v80 = vld [vmem:[%s0 + $0xd0] sm:$0xf]
    %v81 = vld [vmem:[%s0 + $0xd4] sm:$0x1]
    %v82 = vld [vmem:[%s0 + $0xd8] sm:$0xf]
    %v83 = vld [vmem:[%s0 + $0xdc] sm:$0xf]
    %v84 = vld [vmem:[%s0 + $0xe0] sm:$0x1]
    %v85 = vld [vmem:[%s0 + $0xe4] sm:$0xf]
    %v86 = vld [vmem:[%s0 + $0xe8] sm:$0xf]
    %v87 = vld [vmem:[%s0 + $0xec] sm:$0x1]
    %v88 = vld [vmem:[%s0 + $0xf0] sm:$0xf]
    %v89 = vld [vmem:[%s0 + $0xf4] sm:$0xf]
    %v90 = vld [vmem:[%s0 + $0xf8] sm:$0x1]
    %v91 = vld [vmem:[%s0 + $0xfc] sm:$0xf]
    %v92 = vld [vmem:[%s0 + $0x100] sm:$0xf]
    %v93 = vld [vmem:[%s0 + $0x104] sm:$0x1]
    %v94 = vld [vmem:[%s0 + $0x108] sm:$0xf]
    %v95 = vld [vmem:[%s0 + $0x10c] sm:$0xf]
    %v96 = vld [vmem:[%s0 + $0x110] sm:$0x1]
    %v97 = vld [vmem:[%s0 + $0x114] sm:$0xf]
    %v98 = vld [vmem:[%s0 + $0x118] sm:$0xf]
    %v99 = vld [vmem:[%s0 + $0x11c] sm:$0x1]
    %v100 = vld [vmem:[%s0 + $0x120] sm:$0xf]
    %v101 = vld [vmem:[%s0 + $0x124] sm:$0xf]
    %v102 = vld [vmem:[%s0 + $0x128] sm:$0x1]
    %v103 = vld [vmem:[%s0 + $0x12c] sm:$0xf]
    %v104 = vld [vmem:[%s0 + $0x130] sm:$0xf]
    %v105 = vld [vmem:[%s0 + $0x134] sm:$0x1]
    %v106 = vld [vmem:[%s0 + $0x138] sm:$0xf]
    %v107 = vld [vmem:[%s0 + $0x13c] sm:$0xf]
    %v108 = vld [vmem:[%s0 + $0x140] sm:$0x1]
    %v109 = vld [vmem:[%s0 + $0x144] sm:$0xf]
    %v110 = vld [vmem:[%s0 + $0x148] sm:$0xf]
    %v111 = vld [vmem:[%s0 + $0x14c] sm:$0x1]
    %v112 = vld [vmem:[%s0 + $0x150] sm:$0xf]
    %v113 = vld [vmem:[%s0 + $0x154] sm:$0xf]
    %v114 = vld [vmem:[%s0 + $0x158] sm:$0x1]
    %v115 = vld [vmem:[%s0 + $0x15c] sm:$0xf]
    %v116 = vld [vmem:[%s0 + $0x160] sm:$0xf]
    %v117 = vld [vmem:[%s0 + $0x164] sm:$0x1]
    %v118 = vld [vmem:[%s0 + $0x168] sm:$0xf]
    %v119 = vld [vmem:[%s0 + $0x16c] sm:$0xf]
    %v120 = vld [vmem:[%s0 + $0x170] sm:$0x1]
    %v121 = vld [vmem:[%s0 + $0x174] sm:$0xf]
    %v122 = vld [vmem:[%s0 + $0x178] sm:$0xf]
    %v123 = vld [vmem:[%s0 + $0x17c] sm:$0x1]
    %v124 = vld [vmem:[%s0 + $0x180] sm:$0xf]
    %v125 = vld [vmem:[%s0 + $0x184] sm:$0xf]
    %v126 = vld [vmem:[%s0 + $0x188] sm:$0x1]
    %v127 = vld [vmem:[%s0 + $0x18c] sm:$0xf]
    %v128 = vld [vmem:[%s0 + $0x190] sm:$0xf]
    %v129 = vld [vmem:[%s0 + $0x194] sm:$0x1]
    %v130 = vld [vmem:[%s0 + $0x198] sm:$0xf]
    %v131 = vld [vmem:[%s0 + $0x19c] sm:$0xf]
    %v132 = vld [vmem:[%s0 + $0x1a0] sm:$0x1]
    %v133 = vld [vmem:[%s0 + $0x1a4] sm:$0xf]
    %v134 = vld [vmem:[%s0 + $0x1a8] sm:$0xf]
    %v135 = vld [vmem:[%s0 + $0x1ac] sm:$0x1]
    %v136 = vunpack.c.l.bf16 %v28
    %v137 = vunpack.c.l.bf16 %v29
    %v138 = vunpack.c.l.bf16 %v30
    %v139 = vunpack.c.l.bf16 %v31
    %v140 = vunpack.c.l.bf16 %v32
    %v141 = vunpack.c.l.bf16 %v33
    %v142 = vunpack.c.l.bf16 %v34
    %v143 = vunpack.c.l.bf16 %v35
    %v144 = vunpack.c.l.bf16 %v36
    %v145 = vunpack.c.l.bf16 %v37
    %v146 = vunpack.c.l.bf16 %v38
    %v147 = vunpack.c.l.bf16 %v39
    %v148 = vunpack.c.l.bf16 %v40
    %v149 = vunpack.c.l.bf16 %v41
    %v150 = vunpack.c.l.bf16 %v42
    %v151 = vunpack.c.l.bf16 %v43
    %v152 = vunpack.c.l.bf16 %v44
    %v153 = vunpack.c.l.bf16 %v45
    %v154 = vunpack.c.l.bf16 %v46
    %v155 = vunpack.c.l.bf16 %v47
    %v156 = vunpack.c.l.bf16 %v48
    %v157 = vunpack.c.l.bf16 %v49
    %v158 = vunpack.c.l.bf16 %v50
    %v159 = vunpack.c.l.bf16 %v51
    %v160 = vunpack.c.l.bf16 %v52
    %v161 = vunpack.c.l.bf16 %v53
    %v162 = vunpack.c.l.bf16 %v54
    %v163 = vunpack.c.l.bf16 %v55
    %v164 = vunpack.c.l.bf16 %v56
    %v165 = vunpack.c.l.bf16 %v57
    %v166 = vunpack.c.l.bf16 %v58
    %v167 = vunpack.c.l.bf16 %v59
    %v168 = vunpack.c.l.bf16 %v60
    %v169 = vunpack.c.l.bf16 %v61
    %v170 = vunpack.c.l.bf16 %v62
    %v171 = vunpack.c.l.bf16 %v63
    %v172 = vunpack.c.l.bf16 %v64
    %v173 = vunpack.c.l.bf16 %v65
    %v174 = vunpack.c.l.bf16 %v66
    %v175 = vunpack.c.l.bf16 %v67
    %v176 = vunpack.c.l.bf16 %v68
    %v177 = vunpack.c.l.bf16 %v69
    %v178 = vunpack.c.l.bf16 %v70
    %v179 = vunpack.c.l.bf16 %v71
    %v180 = vunpack.c.l.bf16 %v72
    %v181 = vunpack.c.l.bf16 %v73
    %v182 = vunpack.c.l.bf16 %v74
    %v183 = vunpack.c.l.bf16 %v75
    %v184 = vunpack.c.l.bf16 %v76
    %v185 = vunpack.c.l.bf16 %v77
    %v186 = vunpack.c.l.bf16 %v78
    %v187 = vunpack.c.l.bf16 %v79
    %v188 = vunpack.c.l.bf16 %v80
    %v189 = vunpack.c.l.bf16 %v81
    %v190 = vunpack.c.l.bf16 %v82
    %v191 = vunpack.c.l.bf16 %v83
    %v192 = vunpack.c.l.bf16 %v84
    %v193 = vunpack.c.l.bf16 %v85
    %v194 = vunpack.c.l.bf16 %v86
    %v195 = vunpack.c.l.bf16 %v87
    %v196 = vunpack.c.l.bf16 %v88
    %v197 = vunpack.c.l.bf16 %v89
    %v198 = vunpack.c.l.bf16 %v90
    %v199 = vunpack.c.l.bf16 %v91
    %v200 = vunpack.c.l.bf16 %v92
    %v201 = vunpack.c.l.bf16 %v93
    %v202 = vunpack.c.l.bf16 %v94
    %v203 = vunpack.c.l.bf16 %v95
    %v204 = vunpack.c.l.bf16 %v96
    %v205 = vunpack.c.l.bf16 %v97
    %v206 = vunpack.c.l.bf16 %v98
    %v207 = vunpack.c.l.bf16 %v99
    %v208 = vunpack.c.l.bf16 %v100
    %v209 = vunpack.c.l.bf16 %v101
    %v210 = vunpack.c.l.bf16 %v102
    %v211 = vunpack.c.l.bf16 %v103
    %v212 = vunpack.c.l.bf16 %v104
    %v213 = vunpack.c.l.bf16 %v105
    %v214 = vunpack.c.l.bf16 %v106
    %v215 = vunpack.c.l.bf16 %v107
    %v216 = vunpack.c.l.bf16 %v108
    %v217 = vunpack.c.l.bf16 %v109
    %v218 = vunpack.c.l.bf16 %v110
    %v219 = vunpack.c.l.bf16 %v111
    %v220 = vunpack.c.l.bf16 %v112
    %v221 = vunpack.c.l.bf16 %v113
    %v222 = vunpack.c.l.bf16 %v114
    %v223 = vunpack.c.l.bf16 %v115
    %v224 = vunpack.c.l.bf16 %v116
    %v225 = vunpack.c.l.bf16 %v117
    %v226 = vunpack.c.l.bf16 %v118
    %v227 = vunpack.c.l.bf16 %v119
    %v228 = vunpack.c.l.bf16 %v120
    %v229 = vunpack.c.l.bf16 %v121
    %v230 = vunpack.c.l.bf16 %v122
    %v231 = vunpack.c.l.bf16 %v123
    %v232 = vunpack.c.l.bf16 %v124
    %v233 = vunpack.c.l.bf16 %v125
    %v234 = vunpack.c.l.bf16 %v126
    %v235 = vunpack.c.l.bf16 %v127
    %v236 = vunpack.c.l.bf16 %v128
    %v237 = vunpack.c.l.bf16 %v129
    %v238 = vunpack.c.l.bf16 %v130
    %v239 = vunpack.c.l.bf16 %v131
    %v240 = vunpack.c.l.bf16 %v132
    %v241 = vunpack.c.l.bf16 %v133
    %v242 = vunpack.c.l.bf16 %v134
    %v243 = vunpack.c.l.bf16 %v135
    %v244 = vpack.c.bf16 %v137, %v136
    %v245 = vpack.c.bf16 %v140, %v139
    %v246 = vpack.c.bf16 %v143, %v142
    %v247 = vpack.c.bf16 %v146, %v145
    %v248 = vpack.c.bf16 %v149, %v148
    %v249 = vpack.c.bf16 %v152, %v151
    %v250 = vpack.c.bf16 %v155, %v154
    %v251 = vpack.c.bf16 %v158, %v157
    %v252 = vpack.c.bf16 %v161, %v160
    %v253 = vpack.c.bf16 %v164, %v163
    %v254 = vpack.c.bf16 %v167, %v166
    %v255 = vpack.c.bf16 %v170, %v169
    %v256 = vpack.c.bf16 %v173, %v172
    %v257 = vpack.c.bf16 %v176, %v175
    %v258 = vpack.c.bf16 %v179, %v178
    %v259 = vpack.c.bf16 %v182, %v181
    %v260 = vpack.c.bf16 %v191, %v190
    %v261 = vpack.c.bf16 %v194, %v193
    %v262 = vpack.c.bf16 %v197, %v196
    %v263 = vpack.c.bf16 %v200, %v199
    %v264 = vpack.c.bf16 %v203, %v202
    %v265 = vpack.c.bf16 %v206, %v205
    %v266 = vpack.c.bf16 %v209, %v208
    %v267 = vpack.c.bf16 %v212, %v211
    %v268 = vpack.c.bf16 %v215, %v214
    %v269 = vpack.c.bf16 %v218, %v217
    %v270 = vpack.c.bf16 %v221, %v220
    %v271 = vpack.c.bf16 %v224, %v223
    %v272 = vpack.c.bf16 %v227, %v226
    %v273 = vpack.c.bf16 %v230, %v229
    %v274 = vpack.c.bf16 %v233, %v232
    %v275 = vpack.c.bf16 %v236, %v235
    %v276 = vld [vmem:[%s1] sm:$0x3]
    %vm373 = vcmask 1046528
    %v374 = vrot.slane %v136, 1
    %v375 = vrot.slane %v137, 1
    %v376 = vsel %vm373, %v374, %v375
    %v377 = vrot.slane %v138, 1
    %v378 = vsel %vm373, %v375, %v377
    %v379 = vrot.slane %v139, 1
    %v380 = vrot.slane %v140, 1
    %v381 = vsel %vm373, %v379, %v380
    %v382 = vrot.slane %v141, 1
    %v383 = vsel %vm373, %v380, %v382
    %v384 = vrot.slane %v142, 1
    %v385 = vrot.slane %v143, 1
    %v386 = vsel %vm373, %v384, %v385
    %v387 = vrot.slane %v144, 1
    %v388 = vsel %vm373, %v385, %v387
    %v389 = vrot.slane %v145, 1
    %v390 = vrot.slane %v146, 1
    %v391 = vsel %vm373, %v389, %v390
    %v392 = vrot.slane %v147, 1
    %v393 = vsel %vm373, %v390, %v392
    %v394 = vrot.slane %v148, 1
    %v395 = vrot.slane %v149, 1
    %v396 = vsel %vm373, %v394, %v395
    %v397 = vrot.slane %v150, 1
    %v398 = vsel %vm373, %v395, %v397
    %v399 = vrot.slane %v151, 1
    %v400 = vrot.slane %v152, 1
    %v401 = vsel %vm373, %v399, %v400
    %v402 = vrot.slane %v153, 1
    %v403 = vsel %vm373, %v400, %v402
    %v404 = vrot.slane %v154, 1
    %v405 = vrot.slane %v155, 1
    %v406 = vsel %vm373, %v404, %v405
    %v407 = vrot.slane %v156, 1
    %v408 = vsel %vm373, %v405, %v407
    %v409 = vrot.slane %v157, 1
    %v410 = vrot.slane %v158, 1
    %v411 = vsel %vm373, %v409, %v410
    %v412 = vrot.slane %v159, 1
    %v413 = vsel %vm373, %v410, %v412
    %v414 = vrot.slane %v160, 1
    %v415 = vrot.slane %v161, 1
    %v416 = vsel %vm373, %v414, %v415
    %v417 = vrot.slane %v162, 1
    %v418 = vsel %vm373, %v415, %v417
    %v419 = vrot.slane %v163, 1
    %v420 = vrot.slane %v164, 1
    %v421 = vsel %vm373, %v419, %v420
    %v422 = vrot.slane %v165, 1
    %v423 = vsel %vm373, %v420, %v422
    %v424 = vrot.slane %v166, 1
    %v425 = vrot.slane %v167, 1
    %v426 = vsel %vm373, %v424, %v425
    %v427 = vrot.slane %v168, 1
    %v428 = vsel %vm373, %v425, %v427
    %v429 = vrot.slane %v169, 1
    %v430 = vrot.slane %v170, 1
    %v431 = vsel %vm373, %v429, %v430
    %v432 = vrot.slane %v171, 1
    %v433 = vsel %vm373, %v430, %v432
    %v434 = vrot.slane %v172, 1
    %v435 = vrot.slane %v173, 1
    %v436 = vsel %vm373, %v434, %v435
    %v437 = vrot.slane %v174, 1
    %v438 = vsel %vm373, %v435, %v437
    %v439 = vrot.slane %v175, 1
    %v440 = vrot.slane %v176, 1
    %v441 = vsel %vm373, %v439, %v440
    %v442 = vrot.slane %v177, 1
    %v443 = vsel %vm373, %v440, %v442
    %v444 = vrot.slane %v178, 1
    %v445 = vrot.slane %v179, 1
    %v446 = vsel %vm373, %v444, %v445
    %v447 = vrot.slane %v180, 1
    %v448 = vsel %vm373, %v445, %v447
    %v449 = vrot.slane %v181, 1
    %v450 = vrot.slane %v182, 1
    %v451 = vsel %vm373, %v449, %v450
    %v452 = vrot.slane %v183, 1
    %v453 = vsel %vm373, %v450, %v452
    %v454 = vrot.slane %v190, 1
    %v455 = vrot.slane %v191, 1
    %v456 = vsel %vm373, %v454, %v455
    %v457 = vrot.slane %v192, 1
    %v458 = vsel %vm373, %v455, %v457
    %v459 = vrot.slane %v193, 1
    %v460 = vrot.slane %v194, 1
    %v461 = vsel %vm373, %v459, %v460
    %v462 = vrot.slane %v195, 1
    %v463 = vsel %vm373, %v460, %v462
    %v464 = vrot.slane %v196, 1
    %v465 = vrot.slane %v197, 1
    %v466 = vsel %vm373, %v464, %v465
    %v467 = vrot.slane %v198, 1
    %v468 = vsel %vm373, %v465, %v467
    %v469 = vrot.slane %v199, 1
    %v470 = vrot.slane %v200, 1
    %v471 = vsel %vm373, %v469, %v470
    %v472 = vrot.slane %v201, 1
    %v473 = vsel %vm373, %v470, %v472
    %v474 = vrot.slane %v202, 1
    %v475 = vrot.slane %v203, 1
    %v476 = vsel %vm373, %v474, %v475
    %v477 = vrot.slane %v204, 1
    %v478 = vsel %vm373, %v475, %v477
    %v479 = vrot.slane %v205, 1
    %v480 = vrot.slane %v206, 1
    %v481 = vsel %vm373, %v479, %v480
    %v482 = vrot.slane %v207, 1
    %v483 = vsel %vm373, %v480, %v482
    %v484 = vrot.slane %v208, 1
    %v485 = vrot.slane %v209, 1
    %v486 = vsel %vm373, %v484, %v485
    %v487 = vrot.slane %v210, 1
    %v488 = vsel %vm373, %v485, %v487
    %v489 = vrot.slane %v211, 1
    %v490 = vrot.slane %v212, 1
    %v491 = vsel %vm373, %v489, %v490
    %v492 = vrot.slane %v213, 1
    %v493 = vsel %vm373, %v490, %v492
    %v494 = vrot.slane %v214, 1
    %v495 = vrot.slane %v215, 1
    %v496 = vsel %vm373, %v494, %v495
    %v497 = vrot.slane %v216, 1
    %v498 = vsel %vm373, %v495, %v497
    %v499 = vrot.slane %v217, 1
    %v500 = vrot.slane %v218, 1
    %v501 = vsel %vm373, %v499, %v500
    %v502 = vrot.slane %v219, 1
    %v503 = vsel %vm373, %v500, %v502
    %v504 = vrot.slane %v220, 1
    %v505 = vrot.slane %v221, 1
    %v506 = vsel %vm373, %v504, %v505
    %v507 = vrot.slane %v222, 1
    %v508 = vsel %vm373, %v505, %v507
    %v509 = vrot.slane %v223, 1
    %v510 = vrot.slane %v224, 1
    %v511 = vsel %vm373, %v509, %v510
    %v512 = vrot.slane %v225, 1
    %v513 = vsel %vm373, %v510, %v512
    %v514 = vrot.slane %v226, 1
    %v515 = vrot.slane %v227, 1
    %v516 = vsel %vm373, %v514, %v515
    %v517 = vrot.slane %v228, 1
    %v518 = vsel %vm373, %v515, %v517
    %v519 = vrot.slane %v229, 1
    %v520 = vrot.slane %v230, 1
    %v521 = vsel %vm373, %v519, %v520
    %v522 = vrot.slane %v231, 1
    %v523 = vsel %vm373, %v520, %v522
    %v524 = vrot.slane %v232, 1
    %v525 = vrot.slane %v233, 1
    %v526 = vsel %vm373, %v524, %v525
    %v527 = vrot.slane %v234, 1
    %v528 = vsel %vm373, %v525, %v527
    %v529 = vrot.slane %v235, 1
    %v530 = vrot.slane %v236, 1
    %v531 = vsel %vm373, %v529, %v530
    %v532 = vrot.slane %v237, 1
    %v533 = vsel %vm373, %v530, %v532
    %v598 = vpack.c.bf16 %v378, %v376
    %v599 = vpack.c.bf16 %v383, %v381
    %v600 = vpack.c.bf16 %v388, %v386
    %v601 = vpack.c.bf16 %v393, %v391
    %v602 = vpack.c.bf16 %v398, %v396
    %v603 = vpack.c.bf16 %v403, %v401
    %v604 = vpack.c.bf16 %v408, %v406
    %v605 = vpack.c.bf16 %v413, %v411
    %v606 = vpack.c.bf16 %v418, %v416
    %v607 = vpack.c.bf16 %v423, %v421
    %v608 = vpack.c.bf16 %v428, %v426
    %v609 = vpack.c.bf16 %v433, %v431
    %v610 = vpack.c.bf16 %v438, %v436
    %v611 = vpack.c.bf16 %v443, %v441
    %v612 = vpack.c.bf16 %v448, %v446
    %v613 = vpack.c.bf16 %v453, %v451
    %v614 = vpack.c.bf16 %v458, %v456
    %v615 = vpack.c.bf16 %v463, %v461
    %v616 = vpack.c.bf16 %v468, %v466
    %v617 = vpack.c.bf16 %v473, %v471
    %v618 = vpack.c.bf16 %v478, %v476
    %v619 = vpack.c.bf16 %v483, %v481
    %v620 = vpack.c.bf16 %v488, %v486
    %v621 = vpack.c.bf16 %v493, %v491
    %v622 = vpack.c.bf16 %v498, %v496
    %v623 = vpack.c.bf16 %v503, %v501
    %v624 = vpack.c.bf16 %v508, %v506
    %v625 = vpack.c.bf16 %v513, %v511
    %v626 = vpack.c.bf16 %v518, %v516
    %v627 = vpack.c.bf16 %v523, %v521
    %v628 = vpack.c.bf16 %v528, %v526
    %v629 = vpack.c.bf16 %v533, %v531
    %s630 = scalar_lea.vmem %s1, 2
    %v631 = vld [vmem:[%s630] sm:$0x3]
    %vm632 = vcmask 31744
    %v634 = vsel %vm632, %v598, 0
    %v637 = vsel %vm632, %v599, 0
    %v640 = vsel %vm632, %v600, 0
    %v643 = vsel %vm632, %v601, 0
    %v646 = vsel %vm632, %v602, 0
    %v649 = vsel %vm632, %v603, 0
    %v652 = vsel %vm632, %v604, 0
    %v655 = vsel %vm632, %v605, 0
    %v658 = vsel %vm632, %v606, 0
    %v661 = vsel %vm632, %v607, 0
    %v664 = vsel %vm632, %v608, 0
    %v667 = vsel %vm632, %v609, 0
    %v670 = vsel %vm632, %v610, 0
    %v673 = vsel %vm632, %v611, 0
    %v676 = vsel %vm632, %v612, 0
    %v679 = vsel %vm632, %v613, 0
    %v682 = vsel %vm632, %v614, 0
    %v685 = vsel %vm632, %v615, 0
    %v688 = vsel %vm632, %v616, 0
    %v691 = vsel %vm632, %v617, 0
    %v694 = vsel %vm632, %v618, 0
    %v697 = vsel %vm632, %v619, 0
    %v700 = vsel %vm632, %v620, 0
    %v703 = vsel %vm632, %v621, 0
    %v706 = vsel %vm632, %v622, 0
    %v709 = vsel %vm632, %v623, 0
    %v712 = vsel %vm632, %v624, 0
    %v715 = vsel %vm632, %v625, 0
    %v718 = vsel %vm632, %v626, 0
    %v721 = vsel %vm632, %v627, 0
    %v724 = vsel %vm632, %v628, 0
    %v727 = vsel %vm632, %v629, 0
    %vm729 = vcmask 1041408
    %v731 = vsel %vm729, %v631, 0
    %733 = vmatpush.bf16.msra.mxu0 0
    %734 = vmatpush.bf16.msra.mxu0 0
    %735 = vmatpush.bf16.msra.mxu0 0
    %736 = vmatpush.bf16.msra.mxu0 0
    %737 = vmatpush.bf16.msra.mxu0 0
    %738 = vmatpush.bf16.msra.mxu0 0
    %739 = vmatpush.bf16.msra.mxu0 0
    %740 = vmatpush.bf16.msra.mxu0 %v731
    %741 = vmatmul.bf16.gmra.mxu0 %v634
    %v742 = vpop.f32.mrf.mxu0
    %v743 = vadd.f32 0.0, %v742
    %v744 = vpop.f32.mrf.mxu0
    %v745 = vadd.f32 0.0, %v744
    %746 = vmatmul.bf16.gmra.mxu0 %v637
    %v747 = vpop.f32.mrf.mxu0
    %v748 = vadd.f32 0.0, %v747
    %v749 = vpop.f32.mrf.mxu0
    %v750 = vadd.f32 0.0, %v749
    %751 = vmatmul.bf16.gmra.mxu0 %v640
    %v752 = vpop.f32.mrf.mxu0
    %v753 = vadd.f32 0.0, %v752
    %v754 = vpop.f32.mrf.mxu0
    %v755 = vadd.f32 0.0, %v754
    %756 = vmatmul.bf16.gmra.mxu0 %v643
    %v757 = vpop.f32.mrf.mxu0
    %v758 = vadd.f32 0.0, %v757
    %v759 = vpop.f32.mrf.mxu0
    %v760 = vadd.f32 0.0, %v759
    %761 = vmatmul.bf16.gmra.mxu0 %v646
    %v762 = vpop.f32.mrf.mxu0
    %v763 = vadd.f32 0.0, %v762
    %v764 = vpop.f32.mrf.mxu0
    %v765 = vadd.f32 0.0, %v764
    %766 = vmatmul.bf16.gmra.mxu0 %v649
    %v767 = vpop.f32.mrf.mxu0
    %v768 = vadd.f32 0.0, %v767
    %v769 = vpop.f32.mrf.mxu0
    %v770 = vadd.f32 0.0, %v769
    %771 = vmatmul.bf16.gmra.mxu0 %v652
    %v772 = vpop.f32.mrf.mxu0
    %v773 = vadd.f32 0.0, %v772
    %v774 = vpop.f32.mrf.mxu0
    %v775 = vadd.f32 0.0, %v774
    %776 = vmatmul.bf16.gmra.mxu0 %v655
    %v777 = vpop.f32.mrf.mxu0
    %v778 = vadd.f32 0.0, %v777
    %v779 = vpop.f32.mrf.mxu0
    %v780 = vadd.f32 0.0, %v779
    %781 = vmatmul.bf16.gmra.mxu0 %v658
    %v782 = vpop.f32.mrf.mxu0
    %v783 = vadd.f32 0.0, %v782
    %v784 = vpop.f32.mrf.mxu0
    %v785 = vadd.f32 0.0, %v784
    %786 = vmatmul.bf16.gmra.mxu0 %v661
    %v787 = vpop.f32.mrf.mxu0
    %v788 = vadd.f32 0.0, %v787
    %v789 = vpop.f32.mrf.mxu0
    %v790 = vadd.f32 0.0, %v789
    %791 = vmatmul.bf16.gmra.mxu0 %v664
    %v792 = vpop.f32.mrf.mxu0
    %v793 = vadd.f32 0.0, %v792
    %v794 = vpop.f32.mrf.mxu0
    %v795 = vadd.f32 0.0, %v794
    %796 = vmatmul.bf16.gmra.mxu0 %v667
    %v797 = vpop.f32.mrf.mxu0
    %v798 = vadd.f32 0.0, %v797
    %v799 = vpop.f32.mrf.mxu0
    %v800 = vadd.f32 0.0, %v799
    %801 = vmatmul.bf16.gmra.mxu0 %v670
    %v802 = vpop.f32.mrf.mxu0
    %v803 = vadd.f32 0.0, %v802
    %v804 = vpop.f32.mrf.mxu0
    %v805 = vadd.f32 0.0, %v804
    %806 = vmatmul.bf16.gmra.mxu0 %v673
    %v807 = vpop.f32.mrf.mxu0
    %v808 = vadd.f32 0.0, %v807
    %v809 = vpop.f32.mrf.mxu0
    %v810 = vadd.f32 0.0, %v809
    %811 = vmatmul.bf16.gmra.mxu0 %v676
    %v812 = vpop.f32.mrf.mxu0
    %v813 = vadd.f32 0.0, %v812
    %v814 = vpop.f32.mrf.mxu0
    %v815 = vadd.f32 0.0, %v814
    %816 = vmatmul.bf16.gmra.mxu0 %v679
    %v817 = vpop.f32.mrf.mxu0
    %v818 = vadd.f32 0.0, %v817
    %v819 = vpop.f32.mrf.mxu0
    %v820 = vadd.f32 0.0, %v819
    %821 = vmatmul.bf16.gmra.mxu0 %v682
    %v822 = vpop.f32.mrf.mxu0
    %v823 = vadd.f32 0.0, %v822
    %v824 = vpop.f32.mrf.mxu0
    %v825 = vadd.f32 0.0, %v824
    %826 = vmatmul.bf16.gmra.mxu0 %v685
    %v827 = vpop.f32.mrf.mxu0
    %v828 = vadd.f32 0.0, %v827
    %v829 = vpop.f32.mrf.mxu0
    %v830 = vadd.f32 0.0, %v829
    %831 = vmatmul.bf16.gmra.mxu0 %v688
    %v832 = vpop.f32.mrf.mxu0
    %v833 = vadd.f32 0.0, %v832
    %v834 = vpop.f32.mrf.mxu0
    %v835 = vadd.f32 0.0, %v834
    %836 = vmatmul.bf16.gmra.mxu0 %v691
    %v837 = vpop.f32.mrf.mxu0
    %v838 = vadd.f32 0.0, %v837
    %v839 = vpop.f32.mrf.mxu0
    %v840 = vadd.f32 0.0, %v839
    %841 = vmatmul.bf16.gmra.mxu0 %v694
    %v842 = vpop.f32.mrf.mxu0
    %v843 = vadd.f32 0.0, %v842
    %v844 = vpop.f32.mrf.mxu0
    %v845 = vadd.f32 0.0, %v844
    %846 = vmatmul.bf16.gmra.mxu0 %v697
    %v847 = vpop.f32.mrf.mxu0
    %v848 = vadd.f32 0.0, %v847
    %v849 = vpop.f32.mrf.mxu0
    %v850 = vadd.f32 0.0, %v849
    %851 = vmatmul.bf16.gmra.mxu0 %v700
    %v852 = vpop.f32.mrf.mxu0
    %v853 = vadd.f32 0.0, %v852
    %v854 = vpop.f32.mrf.mxu0
    %v855 = vadd.f32 0.0, %v854
    %856 = vmatmul.bf16.gmra.mxu0 %v703
    %v857 = vpop.f32.mrf.mxu0
    %v858 = vadd.f32 0.0, %v857
    %v859 = vpop.f32.mrf.mxu0
    %v860 = vadd.f32 0.0, %v859
    %861 = vmatmul.bf16.gmra.mxu0 %v706
    %v862 = vpop.f32.mrf.mxu0
    %v863 = vadd.f32 0.0, %v862
    %v864 = vpop.f32.mrf.mxu0
    %v865 = vadd.f32 0.0, %v864
    %866 = vmatmul.bf16.gmra.mxu0 %v709
    %v867 = vpop.f32.mrf.mxu0
    %v868 = vadd.f32 0.0, %v867
    %v869 = vpop.f32.mrf.mxu0
    %v870 = vadd.f32 0.0, %v869
    %871 = vmatmul.bf16.gmra.mxu0 %v712
    %v872 = vpop.f32.mrf.mxu0
    %v873 = vadd.f32 0.0, %v872
    %v874 = vpop.f32.mrf.mxu0
    %v875 = vadd.f32 0.0, %v874
    %876 = vmatmul.bf16.gmra.mxu0 %v715
    %v877 = vpop.f32.mrf.mxu0
    %v878 = vadd.f32 0.0, %v877
    %v879 = vpop.f32.mrf.mxu0
    %v880 = vadd.f32 0.0, %v879
    %881 = vmatmul.bf16.gmra.mxu0 %v718
    %v882 = vpop.f32.mrf.mxu0
    %v883 = vadd.f32 0.0, %v882
    %v884 = vpop.f32.mrf.mxu0
    %v885 = vadd.f32 0.0, %v884
    %886 = vmatmul.bf16.gmra.mxu0 %v721
    %v887 = vpop.f32.mrf.mxu0
    %v888 = vadd.f32 0.0, %v887
    %v889 = vpop.f32.mrf.mxu0
    %v890 = vadd.f32 0.0, %v889
    %891 = vmatmul.bf16.gmra.mxu0 %v724
    %v892 = vpop.f32.mrf.mxu0
    %v893 = vadd.f32 0.0, %v892
    %v894 = vpop.f32.mrf.mxu0
    %v895 = vadd.f32 0.0, %v894
    %896 = vmatmul.bf16.gmra.mxu0 %v727
    %v897 = vpop.f32.mrf.mxu0
    %v898 = vadd.f32 0.0, %v897
    %v899 = vpop.f32.mrf.mxu0
    %v900 = vadd.f32 0.0, %v899
    %901 = vdwg.mxu0
    %v903 = vsel %vm632, %v244, 0
    %v906 = vsel %vm632, %v245, 0
    %v909 = vsel %vm632, %v246, 0
    %v912 = vsel %vm632, %v247, 0
    %v915 = vsel %vm632, %v248, 0
    %v918 = vsel %vm632, %v249, 0
    %v921 = vsel %vm632, %v250, 0
    %v924 = vsel %vm632, %v251, 0
    %v927 = vsel %vm632, %v252, 0
    %v930 = vsel %vm632, %v253, 0
    %v933 = vsel %vm632, %v254, 0
    %v936 = vsel %vm632, %v255, 0
    %v939 = vsel %vm632, %v256, 0
    %v942 = vsel %vm632, %v257, 0
    %v945 = vsel %vm632, %v258, 0
    %v948 = vsel %vm632, %v259, 0
    %v951 = vsel %vm632, %v260, 0
    %v954 = vsel %vm632, %v261, 0
    %v957 = vsel %vm632, %v262, 0
    %v960 = vsel %vm632, %v263, 0
    %v963 = vsel %vm632, %v264, 0
    %v966 = vsel %vm632, %v265, 0
    %v969 = vsel %vm632, %v266, 0
    %v972 = vsel %vm632, %v267, 0
    %v975 = vsel %vm632, %v268, 0
    %v978 = vsel %vm632, %v269, 0
    %v981 = vsel %vm632, %v270, 0
    %v984 = vsel %vm632, %v271, 0
    %v987 = vsel %vm632, %v272, 0
    %v990 = vsel %vm632, %v273, 0
    %v993 = vsel %vm632, %v274, 0
    %v996 = vsel %vm632, %v275, 0
    %v999 = vsel %vm729, %v276, 0
    %1001 = vmatpush.bf16.msra.mxu0 0
    %1002 = vmatpush.bf16.msra.mxu0 0
    %1003 = vmatpush.bf16.msra.mxu0 0
    %1004 = vmatpush.bf16.msra.mxu0 0
    %1005 = vmatpush.bf16.msra.mxu0 0
    %1006 = vmatpush.bf16.msra.mxu0 0
    %1007 = vmatpush.bf16.msra.mxu0 0
    %1008 = vmatpush.bf16.msra.mxu0 %v999
    %1009 = vmatmul.bf16.gmra.mxu0 %v903
    %v1010 = vpop.f32.mrf.mxu0
    %v1011 = vadd.f32 %v743, %v1010
    %v1012 = vpop.f32.mrf.mxu0
    %v1013 = vadd.f32 %v745, %v1012
    %1014 = vmatmul.bf16.gmra.mxu0 %v906
    %v1015 = vpop.f32.mrf.mxu0
    %v1016 = vadd.f32 %v748, %v1015
    %v1017 = vpop.f32.mrf.mxu0
    %v1018 = vadd.f32 %v750, %v1017
    %1019 = vmatmul.bf16.gmra.mxu0 %v909
    %v1020 = vpop.f32.mrf.mxu0
    %v1021 = vadd.f32 %v753, %v1020
    %v1022 = vpop.f32.mrf.mxu0
    %v1023 = vadd.f32 %v755, %v1022
    %1024 = vmatmul.bf16.gmra.mxu0 %v912
    %v1025 = vpop.f32.mrf.mxu0
    %v1026 = vadd.f32 %v758, %v1025
    %v1027 = vpop.f32.mrf.mxu0
    %v1028 = vadd.f32 %v760, %v1027
    %1029 = vmatmul.bf16.gmra.mxu0 %v915
    %v1030 = vpop.f32.mrf.mxu0
    %v1031 = vadd.f32 %v763, %v1030
    %v1032 = vpop.f32.mrf.mxu0
    %v1033 = vadd.f32 %v765, %v1032
    %1034 = vmatmul.bf16.gmra.mxu0 %v918
    %v1035 = vpop.f32.mrf.mxu0
    %v1036 = vadd.f32 %v768, %v1035
    %v1037 = vpop.f32.mrf.mxu0
    %v1038 = vadd.f32 %v770, %v1037
    %1039 = vmatmul.bf16.gmra.mxu0 %v921
    %v1040 = vpop.f32.mrf.mxu0
    %v1041 = vadd.f32 %v773, %v1040
    %v1042 = vpop.f32.mrf.mxu0
    %v1043 = vadd.f32 %v775, %v1042
    %1044 = vmatmul.bf16.gmra.mxu0 %v924
    %v1045 = vpop.f32.mrf.mxu0
    %v1046 = vadd.f32 %v778, %v1045
    %v1047 = vpop.f32.mrf.mxu0
    %v1048 = vadd.f32 %v780, %v1047
    %1049 = vmatmul.bf16.gmra.mxu0 %v927
    %v1050 = vpop.f32.mrf.mxu0
    %v1051 = vadd.f32 %v783, %v1050
    %v1052 = vpop.f32.mrf.mxu0
    %v1053 = vadd.f32 %v785, %v1052
    %1054 = vmatmul.bf16.gmra.mxu0 %v930
    %v1055 = vpop.f32.mrf.mxu0
    %v1056 = vadd.f32 %v788, %v1055
    %v1057 = vpop.f32.mrf.mxu0
    %v1058 = vadd.f32 %v790, %v1057
    %1059 = vmatmul.bf16.gmra.mxu0 %v933
    %v1060 = vpop.f32.mrf.mxu0
    %v1061 = vadd.f32 %v793, %v1060
    %v1062 = vpop.f32.mrf.mxu0
    %v1063 = vadd.f32 %v795, %v1062
    %1064 = vmatmul.bf16.gmra.mxu0 %v936
    %v1065 = vpop.f32.mrf.mxu0
    %v1066 = vadd.f32 %v798, %v1065
    %v1067 = vpop.f32.mrf.mxu0
    %v1068 = vadd.f32 %v800, %v1067
    %1069 = vmatmul.bf16.gmra.mxu0 %v939
    %v1070 = vpop.f32.mrf.mxu0
    %v1071 = vadd.f32 %v803, %v1070
    %v1072 = vpop.f32.mrf.mxu0
    %v1073 = vadd.f32 %v805, %v1072
    %1074 = vmatmul.bf16.gmra.mxu0 %v942
    %v1075 = vpop.f32.mrf.mxu0
    %v1076 = vadd.f32 %v808, %v1075
    %v1077 = vpop.f32.mrf.mxu0
    %v1078 = vadd.f32 %v810, %v1077
    %1079 = vmatmul.bf16.gmra.mxu0 %v945
    %v1080 = vpop.f32.mrf.mxu0
    %v1081 = vadd.f32 %v813, %v1080
    %v1082 = vpop.f32.mrf.mxu0
    %v1083 = vadd.f32 %v815, %v1082
    %1084 = vmatmul.bf16.gmra.mxu0 %v948
    %v1085 = vpop.f32.mrf.mxu0
    %v1086 = vadd.f32 %v818, %v1085
    %v1087 = vpop.f32.mrf.mxu0
    %v1088 = vadd.f32 %v820, %v1087
    %1089 = vmatmul.bf16.gmra.mxu0 %v951
    %v1090 = vpop.f32.mrf.mxu0
    %v1091 = vadd.f32 %v823, %v1090
    %v1092 = vpop.f32.mrf.mxu0
    %v1093 = vadd.f32 %v825, %v1092
    %1094 = vmatmul.bf16.gmra.mxu0 %v954
    %v1095 = vpop.f32.mrf.mxu0
    %v1096 = vadd.f32 %v828, %v1095
    %v1097 = vpop.f32.mrf.mxu0
    %v1098 = vadd.f32 %v830, %v1097
    %1099 = vmatmul.bf16.gmra.mxu0 %v957
    %v1100 = vpop.f32.mrf.mxu0
    %v1101 = vadd.f32 %v833, %v1100
    %v1102 = vpop.f32.mrf.mxu0
    %v1103 = vadd.f32 %v835, %v1102
    %1104 = vmatmul.bf16.gmra.mxu0 %v960
    %v1105 = vpop.f32.mrf.mxu0
    %v1106 = vadd.f32 %v838, %v1105
    %v1107 = vpop.f32.mrf.mxu0
    %v1108 = vadd.f32 %v840, %v1107
    %1109 = vmatmul.bf16.gmra.mxu0 %v963
    %v1110 = vpop.f32.mrf.mxu0
    %v1111 = vadd.f32 %v843, %v1110
    %v1112 = vpop.f32.mrf.mxu0
    %v1113 = vadd.f32 %v845, %v1112
    %1114 = vmatmul.bf16.gmra.mxu0 %v966
    %v1115 = vpop.f32.mrf.mxu0
    %v1116 = vadd.f32 %v848, %v1115
    %v1117 = vpop.f32.mrf.mxu0
    %v1118 = vadd.f32 %v850, %v1117
    %1119 = vmatmul.bf16.gmra.mxu0 %v969
    %v1120 = vpop.f32.mrf.mxu0
    %v1121 = vadd.f32 %v853, %v1120
    %v1122 = vpop.f32.mrf.mxu0
    %v1123 = vadd.f32 %v855, %v1122
    %1124 = vmatmul.bf16.gmra.mxu0 %v972
    %v1125 = vpop.f32.mrf.mxu0
    %v1126 = vadd.f32 %v858, %v1125
    %v1127 = vpop.f32.mrf.mxu0
    %v1128 = vadd.f32 %v860, %v1127
    %1129 = vmatmul.bf16.gmra.mxu0 %v975
    %v1130 = vpop.f32.mrf.mxu0
    %v1131 = vadd.f32 %v863, %v1130
    %v1132 = vpop.f32.mrf.mxu0
    %v1133 = vadd.f32 %v865, %v1132
    %1134 = vmatmul.bf16.gmra.mxu0 %v978
    %v1135 = vpop.f32.mrf.mxu0
    %v1136 = vadd.f32 %v868, %v1135
    %v1137 = vpop.f32.mrf.mxu0
    %v1138 = vadd.f32 %v870, %v1137
    %1139 = vmatmul.bf16.gmra.mxu0 %v981
    %v1140 = vpop.f32.mrf.mxu0
    %v1141 = vadd.f32 %v873, %v1140
    %v1142 = vpop.f32.mrf.mxu0
    %v1143 = vadd.f32 %v875, %v1142
    %1144 = vmatmul.bf16.gmra.mxu0 %v984
    %v1145 = vpop.f32.mrf.mxu0
    %v1146 = vadd.f32 %v878, %v1145
    %v1147 = vpop.f32.mrf.mxu0
    %v1148 = vadd.f32 %v880, %v1147
    %1149 = vmatmul.bf16.gmra.mxu0 %v987
    %v1150 = vpop.f32.mrf.mxu0
    %v1151 = vadd.f32 %v883, %v1150
    %v1152 = vpop.f32.mrf.mxu0
    %v1153 = vadd.f32 %v885, %v1152
    %1154 = vmatmul.bf16.gmra.mxu0 %v990
    %v1155 = vpop.f32.mrf.mxu0
    %v1156 = vadd.f32 %v888, %v1155
    %v1157 = vpop.f32.mrf.mxu0
    %v1158 = vadd.f32 %v890, %v1157
    %1159 = vmatmul.bf16.gmra.mxu0 %v993
    %v1160 = vpop.f32.mrf.mxu0
    %v1161 = vadd.f32 %v893, %v1160
    %v1162 = vpop.f32.mrf.mxu0
    %v1163 = vadd.f32 %v895, %v1162
    %1164 = vmatmul.bf16.gmra.mxu0 %v996
    %v1165 = vpop.f32.mrf.mxu0
    %v1166 = vadd.f32 %v898, %v1165
    %v1167 = vpop.f32.mrf.mxu0
    %v1168 = vadd.f32 %v900, %v1167
    %1169 = vdwg.mxu0
    %vm1170 = vcmask 1045504
    %v1171 = vrot.slane %v136, 2
    %v1172 = vrot.slane %v137, 2
    %v1173 = vsel %vm1170, %v1171, %v1172
    %v1174 = vrot.slane %v138, 2
    %v1175 = vsel %vm1170, %v1172, %v1174
    %v1176 = vrot.slane %v139, 2
    %v1177 = vrot.slane %v140, 2
    %v1178 = vsel %vm1170, %v1176, %v1177
    %v1179 = vrot.slane %v141, 2
    %v1180 = vsel %vm1170, %v1177, %v1179
    %v1181 = vrot.slane %v142, 2
    %v1182 = vrot.slane %v143, 2
    %v1183 = vsel %vm1170, %v1181, %v1182
    %v1184 = vrot.slane %v144, 2
    %v1185 = vsel %vm1170, %v1182, %v1184
    %v1186 = vrot.slane %v145, 2
    %v1187 = vrot.slane %v146, 2
    %v1188 = vsel %vm1170, %v1186, %v1187
    %v1189 = vrot.slane %v147, 2
    %v1190 = vsel %vm1170, %v1187, %v1189
    %v1191 = vrot.slane %v148, 2
    %v1192 = vrot.slane %v149, 2
    %v1193 = vsel %vm1170, %v1191, %v1192
    %v1194 = vrot.slane %v150, 2
    %v1195 = vsel %vm1170, %v1192, %v1194
    %v1196 = vrot.slane %v151, 2
    %v1197 = vrot.slane %v152, 2
    %v1198 = vsel %vm1170, %v1196, %v1197
    %v1199 = vrot.slane %v153, 2
    %v1200 = vsel %vm1170, %v1197, %v1199
    %v1201 = vrot.slane %v154, 2
    %v1202 = vrot.slane %v155, 2
    %v1203 = vsel %vm1170, %v1201, %v1202
    %v1204 = vrot.slane %v156, 2
    %v1205 = vsel %vm1170, %v1202, %v1204
    %v1206 = vrot.slane %v157, 2
    %v1207 = vrot.slane %v158, 2
    %v1208 = vsel %vm1170, %v1206, %v1207
    %v1209 = vrot.slane %v159, 2
    %v1210 = vsel %vm1170, %v1207, %v1209
    %v1211 = vrot.slane %v160, 2
    %v1212 = vrot.slane %v161, 2
    %v1213 = vsel %vm1170, %v1211, %v1212
    %v1214 = vrot.slane %v162, 2
    %v1215 = vsel %vm1170, %v1212, %v1214
    %v1216 = vrot.slane %v163, 2
    %v1217 = vrot.slane %v164, 2
    %v1218 = vsel %vm1170, %v1216, %v1217
    %v1219 = vrot.slane %v165, 2
    %v1220 = vsel %vm1170, %v1217, %v1219
    %v1221 = vrot.slane %v166, 2
    %v1222 = vrot.slane %v167, 2
    %v1223 = vsel %vm1170, %v1221, %v1222
    %v1224 = vrot.slane %v168, 2
    %v1225 = vsel %vm1170, %v1222, %v1224
    %v1226 = vrot.slane %v169, 2
    %v1227 = vrot.slane %v170, 2
    %v1228 = vsel %vm1170, %v1226, %v1227
    %v1229 = vrot.slane %v171, 2
    %v1230 = vsel %vm1170, %v1227, %v1229
    %v1231 = vrot.slane %v172, 2
    %v1232 = vrot.slane %v173, 2
    %v1233 = vsel %vm1170, %v1231, %v1232
    %v1234 = vrot.slane %v174, 2
    %v1235 = vsel %vm1170, %v1232, %v1234
    %v1236 = vrot.slane %v175, 2
    %v1237 = vrot.slane %v176, 2
    %v1238 = vsel %vm1170, %v1236, %v1237
    %v1239 = vrot.slane %v177, 2
    %v1240 = vsel %vm1170, %v1237, %v1239
    %v1241 = vrot.slane %v178, 2
    %v1242 = vrot.slane %v179, 2
    %v1243 = vsel %vm1170, %v1241, %v1242
    %v1244 = vrot.slane %v180, 2
    %v1245 = vsel %vm1170, %v1242, %v1244
    %v1246 = vrot.slane %v181, 2
    %v1247 = vrot.slane %v182, 2
    %v1248 = vsel %vm1170, %v1246, %v1247
    %v1249 = vrot.slane %v183, 2
    %v1250 = vsel %vm1170, %v1247, %v1249
    %v1251 = vrot.slane %v190, 2
    %v1252 = vrot.slane %v191, 2
    %v1253 = vsel %vm1170, %v1251, %v1252
    %v1254 = vrot.slane %v192, 2
    %v1255 = vsel %vm1170, %v1252, %v1254
    %v1256 = vrot.slane %v193, 2
    %v1257 = vrot.slane %v194, 2
    %v1258 = vsel %vm1170, %v1256, %v1257
    %v1259 = vrot.slane %v195, 2
    %v1260 = vsel %vm1170, %v1257, %v1259
    %v1261 = vrot.slane %v196, 2
    %v1262 = vrot.slane %v197, 2
    %v1263 = vsel %vm1170, %v1261, %v1262
    %v1264 = vrot.slane %v198, 2
    %v1265 = vsel %vm1170, %v1262, %v1264
    %v1266 = vrot.slane %v199, 2
    %v1267 = vrot.slane %v200, 2
    %v1268 = vsel %vm1170, %v1266, %v1267
    %v1269 = vrot.slane %v201, 2
    %v1270 = vsel %vm1170, %v1267, %v1269
    %v1271 = vrot.slane %v202, 2
    %v1272 = vrot.slane %v203, 2
    %v1273 = vsel %vm1170, %v1271, %v1272
    %v1274 = vrot.slane %v204, 2
    %v1275 = vsel %vm1170, %v1272, %v1274
    %v1276 = vrot.slane %v205, 2
    %v1277 = vrot.slane %v206, 2
    %v1278 = vsel %vm1170, %v1276, %v1277
    %v1279 = vrot.slane %v207, 2
    %v1280 = vsel %vm1170, %v1277, %v1279
    %v1281 = vrot.slane %v208, 2
    %v1282 = vrot.slane %v209, 2
    %v1283 = vsel %vm1170, %v1281, %v1282
    %v1284 = vrot.slane %v210, 2
    %v1285 = vsel %vm1170, %v1282, %v1284
    %v1286 = vrot.slane %v211, 2
    %v1287 = vrot.slane %v212, 2
    %v1288 = vsel %vm1170, %v1286, %v1287
    %v1289 = vrot.slane %v213, 2
    %v1290 = vsel %vm1170, %v1287, %v1289
    %v1291 = vrot.slane %v214, 2
    %v1292 = vrot.slane %v215, 2
    %v1293 = vsel %vm1170, %v1291, %v1292
    %v1294 = vrot.slane %v216, 2
    %v1295 = vsel %vm1170, %v1292, %v1294
    %v1296 = vrot.slane %v217, 2
    %v1297 = vrot.slane %v218, 2
    %v1298 = vsel %vm1170, %v1296, %v1297
    %v1299 = vrot.slane %v219, 2
    %v1300 = vsel %vm1170, %v1297, %v1299
    %v1301 = vrot.slane %v220, 2
    %v1302 = vrot.slane %v221, 2
    %v1303 = vsel %vm1170, %v1301, %v1302
    %v1304 = vrot.slane %v222, 2
    %v1305 = vsel %vm1170, %v1302, %v1304
    %v1306 = vrot.slane %v223, 2
    %v1307 = vrot.slane %v224, 2
    %v1308 = vsel %vm1170, %v1306, %v1307
    %v1309 = vrot.slane %v225, 2
    %v1310 = vsel %vm1170, %v1307, %v1309
    %v1311 = vrot.slane %v226, 2
    %v1312 = vrot.slane %v227, 2
    %v1313 = vsel %vm1170, %v1311, %v1312
    %v1314 = vrot.slane %v228, 2
    %v1315 = vsel %vm1170, %v1312, %v1314
    %v1316 = vrot.slane %v229, 2
    %v1317 = vrot.slane %v230, 2
    %v1318 = vsel %vm1170, %v1316, %v1317
    %v1319 = vrot.slane %v231, 2
    %v1320 = vsel %vm1170, %v1317, %v1319
    %v1321 = vrot.slane %v232, 2
    %v1322 = vrot.slane %v233, 2
    %v1323 = vsel %vm1170, %v1321, %v1322
    %v1324 = vrot.slane %v234, 2
    %v1325 = vsel %vm1170, %v1322, %v1324
    %v1326 = vrot.slane %v235, 2
    %v1327 = vrot.slane %v236, 2
    %v1328 = vsel %vm1170, %v1326, %v1327
    %v1329 = vrot.slane %v237, 2
    %v1330 = vsel %vm1170, %v1327, %v1329
    %v1395 = vpack.c.bf16 %v1175, %v1173
    %v1396 = vpack.c.bf16 %v1180, %v1178
    %v1397 = vpack.c.bf16 %v1185, %v1183
    %v1398 = vpack.c.bf16 %v1190, %v1188
    %v1399 = vpack.c.bf16 %v1195, %v1193
    %v1400 = vpack.c.bf16 %v1200, %v1198
    %v1401 = vpack.c.bf16 %v1205, %v1203
    %v1402 = vpack.c.bf16 %v1210, %v1208
    %v1403 = vpack.c.bf16 %v1215, %v1213
    %v1404 = vpack.c.bf16 %v1220, %v1218
    %v1405 = vpack.c.bf16 %v1225, %v1223
    %v1406 = vpack.c.bf16 %v1230, %v1228
    %v1407 = vpack.c.bf16 %v1235, %v1233
    %v1408 = vpack.c.bf16 %v1240, %v1238
    %v1409 = vpack.c.bf16 %v1245, %v1243
    %v1410 = vpack.c.bf16 %v1250, %v1248
    %v1411 = vpack.c.bf16 %v1255, %v1253
    %v1412 = vpack.c.bf16 %v1260, %v1258
    %v1413 = vpack.c.bf16 %v1265, %v1263
    %v1414 = vpack.c.bf16 %v1270, %v1268
    %v1415 = vpack.c.bf16 %v1275, %v1273
    %v1416 = vpack.c.bf16 %v1280, %v1278
    %v1417 = vpack.c.bf16 %v1285, %v1283
    %v1418 = vpack.c.bf16 %v1290, %v1288
    %v1419 = vpack.c.bf16 %v1295, %v1293
    %v1420 = vpack.c.bf16 %v1300, %v1298
    %v1421 = vpack.c.bf16 %v1305, %v1303
    %v1422 = vpack.c.bf16 %v1310, %v1308
    %v1423 = vpack.c.bf16 %v1315, %v1313
    %v1424 = vpack.c.bf16 %v1320, %v1318
    %v1425 = vpack.c.bf16 %v1325, %v1323
    %v1426 = vpack.c.bf16 %v1330, %v1328
    %s1427 = scalar_lea.vmem %s1, 4
    %v1428 = vld [vmem:[%s1427] sm:$0x3]
    %v1430 = vsel %vm632, %v1395, 0
    %v1433 = vsel %vm632, %v1396, 0
    %v1436 = vsel %vm632, %v1397, 0
    %v1439 = vsel %vm632, %v1398, 0
    %v1442 = vsel %vm632, %v1399, 0
    %v1445 = vsel %vm632, %v1400, 0
    %v1448 = vsel %vm632, %v1401, 0
    %v1451 = vsel %vm632, %v1402, 0
    %v1454 = vsel %vm632, %v1403, 0
    %v1457 = vsel %vm632, %v1404, 0
    %v1460 = vsel %vm632, %v1405, 0
    %v1463 = vsel %vm632, %v1406, 0
    %v1466 = vsel %vm632, %v1407, 0
    %v1469 = vsel %vm632, %v1408, 0
    %v1472 = vsel %vm632, %v1409, 0
    %v1475 = vsel %vm632, %v1410, 0
    %v1478 = vsel %vm632, %v1411, 0
    %v1481 = vsel %vm632, %v1412, 0
    %v1484 = vsel %vm632, %v1413, 0
    %v1487 = vsel %vm632, %v1414, 0
    %v1490 = vsel %vm632, %v1415, 0
    %v1493 = vsel %vm632, %v1416, 0
    %v1496 = vsel %vm632, %v1417, 0
    %v1499 = vsel %vm632, %v1418, 0
    %v1502 = vsel %vm632, %v1419, 0
    %v1505 = vsel %vm632, %v1420, 0
    %v1508 = vsel %vm632, %v1421, 0
    %v1511 = vsel %vm632, %v1422, 0
    %v1514 = vsel %vm632, %v1423, 0
    %v1517 = vsel %vm632, %v1424, 0
    %v1520 = vsel %vm632, %v1425, 0
    %v1523 = vsel %vm632, %v1426, 0
    %v1526 = vsel %vm729, %v1428, 0
    %1528 = vmatpush.bf16.msra.mxu0 0
    %1529 = vmatpush.bf16.msra.mxu0 0
    %1530 = vmatpush.bf16.msra.mxu0 0
    %1531 = vmatpush.bf16.msra.mxu0 0
    %1532 = vmatpush.bf16.msra.mxu0 0
    %1533 = vmatpush.bf16.msra.mxu0 0
    %1534 = vmatpush.bf16.msra.mxu0 0
    %1535 = vmatpush.bf16.msra.mxu0 %v1526
    %1536 = vmatmul.bf16.gmra.mxu0 %v1430
    %v1537 = vpop.f32.mrf.mxu0
    %v1538 = vadd.f32 0.0, %v1537
    %v1539 = vpop.f32.mrf.mxu0
    %v1540 = vadd.f32 0.0, %v1539
    %1541 = vmatmul.bf16.gmra.mxu0 %v1433
    %v1542 = vpop.f32.mrf.mxu0
    %v1543 = vadd.f32 0.0, %v1542
    %v1544 = vpop.f32.mrf.mxu0
    %v1545 = vadd.f32 0.0, %v1544
    %1546 = vmatmul.bf16.gmra.mxu0 %v1436
    %v1547 = vpop.f32.mrf.mxu0
    %v1548 = vadd.f32 0.0, %v1547
    %v1549 = vpop.f32.mrf.mxu0
    %v1550 = vadd.f32 0.0, %v1549
    %1551 = vmatmul.bf16.gmra.mxu0 %v1439
    %v1552 = vpop.f32.mrf.mxu0
    %v1553 = vadd.f32 0.0, %v1552
    %v1554 = vpop.f32.mrf.mxu0
    %v1555 = vadd.f32 0.0, %v1554
    %1556 = vmatmul.bf16.gmra.mxu0 %v1442
    %v1557 = vpop.f32.mrf.mxu0
    %v1558 = vadd.f32 0.0, %v1557
    %v1559 = vpop.f32.mrf.mxu0
    %v1560 = vadd.f32 0.0, %v1559
    %1561 = vmatmul.bf16.gmra.mxu0 %v1445
    %v1562 = vpop.f32.mrf.mxu0
    %v1563 = vadd.f32 0.0, %v1562
    %v1564 = vpop.f32.mrf.mxu0
    %v1565 = vadd.f32 0.0, %v1564
    %1566 = vmatmul.bf16.gmra.mxu0 %v1448
    %v1567 = vpop.f32.mrf.mxu0
    %v1568 = vadd.f32 0.0, %v1567
    %v1569 = vpop.f32.mrf.mxu0
    %v1570 = vadd.f32 0.0, %v1569
    %1571 = vmatmul.bf16.gmra.mxu0 %v1451
    %v1572 = vpop.f32.mrf.mxu0
    %v1573 = vadd.f32 0.0, %v1572
    %v1574 = vpop.f32.mrf.mxu0
    %v1575 = vadd.f32 0.0, %v1574
    %1576 = vmatmul.bf16.gmra.mxu0 %v1454
    %v1577 = vpop.f32.mrf.mxu0
    %v1578 = vadd.f32 0.0, %v1577
    %v1579 = vpop.f32.mrf.mxu0
    %v1580 = vadd.f32 0.0, %v1579
    %1581 = vmatmul.bf16.gmra.mxu0 %v1457
    %v1582 = vpop.f32.mrf.mxu0
    %v1583 = vadd.f32 0.0, %v1582
    %v1584 = vpop.f32.mrf.mxu0
    %v1585 = vadd.f32 0.0, %v1584
    %1586 = vmatmul.bf16.gmra.mxu0 %v1460
    %v1587 = vpop.f32.mrf.mxu0
    %v1588 = vadd.f32 0.0, %v1587
    %v1589 = vpop.f32.mrf.mxu0
    %v1590 = vadd.f32 0.0, %v1589
    %1591 = vmatmul.bf16.gmra.mxu0 %v1463
    %v1592 = vpop.f32.mrf.mxu0
    %v1593 = vadd.f32 0.0, %v1592
    %v1594 = vpop.f32.mrf.mxu0
    %v1595 = vadd.f32 0.0, %v1594
    %1596 = vmatmul.bf16.gmra.mxu0 %v1466
    %v1597 = vpop.f32.mrf.mxu0
    %v1598 = vadd.f32 0.0, %v1597
    %v1599 = vpop.f32.mrf.mxu0
    %v1600 = vadd.f32 0.0, %v1599
    %1601 = vmatmul.bf16.gmra.mxu0 %v1469
    %v1602 = vpop.f32.mrf.mxu0
    %v1603 = vadd.f32 0.0, %v1602
    %v1604 = vpop.f32.mrf.mxu0
    %v1605 = vadd.f32 0.0, %v1604
    %1606 = vmatmul.bf16.gmra.mxu0 %v1472
    %v1607 = vpop.f32.mrf.mxu0
    %v1608 = vadd.f32 0.0, %v1607
    %v1609 = vpop.f32.mrf.mxu0
    %v1610 = vadd.f32 0.0, %v1609
    %1611 = vmatmul.bf16.gmra.mxu0 %v1475
    %v1612 = vpop.f32.mrf.mxu0
    %v1613 = vadd.f32 0.0, %v1612
    %v1614 = vpop.f32.mrf.mxu0
    %v1615 = vadd.f32 0.0, %v1614
    %1616 = vmatmul.bf16.gmra.mxu0 %v1478
    %v1617 = vpop.f32.mrf.mxu0
    %v1618 = vadd.f32 0.0, %v1617
    %v1619 = vpop.f32.mrf.mxu0
    %v1620 = vadd.f32 0.0, %v1619
    %1621 = vmatmul.bf16.gmra.mxu0 %v1481
    %v1622 = vpop.f32.mrf.mxu0
    %v1623 = vadd.f32 0.0, %v1622
    %v1624 = vpop.f32.mrf.mxu0
    %v1625 = vadd.f32 0.0, %v1624
    %1626 = vmatmul.bf16.gmra.mxu0 %v1484
    %v1627 = vpop.f32.mrf.mxu0
    %v1628 = vadd.f32 0.0, %v1627
    %v1629 = vpop.f32.mrf.mxu0
    %v1630 = vadd.f32 0.0, %v1629
    %1631 = vmatmul.bf16.gmra.mxu0 %v1487
    %v1632 = vpop.f32.mrf.mxu0
    %v1633 = vadd.f32 0.0, %v1632
    %v1634 = vpop.f32.mrf.mxu0
    %v1635 = vadd.f32 0.0, %v1634
    %1636 = vmatmul.bf16.gmra.mxu0 %v1490
    %v1637 = vpop.f32.mrf.mxu0
    %v1638 = vadd.f32 0.0, %v1637
    %v1639 = vpop.f32.mrf.mxu0
    %v1640 = vadd.f32 0.0, %v1639
    %1641 = vmatmul.bf16.gmra.mxu0 %v1493
    %v1642 = vpop.f32.mrf.mxu0
    %v1643 = vadd.f32 0.0, %v1642
    %v1644 = vpop.f32.mrf.mxu0
    %v1645 = vadd.f32 0.0, %v1644
    %1646 = vmatmul.bf16.gmra.mxu0 %v1496
    %v1647 = vpop.f32.mrf.mxu0
    %v1648 = vadd.f32 0.0, %v1647
    %v1649 = vpop.f32.mrf.mxu0
    %v1650 = vadd.f32 0.0, %v1649
    %1651 = vmatmul.bf16.gmra.mxu0 %v1499
    %v1652 = vpop.f32.mrf.mxu0
    %v1653 = vadd.f32 0.0, %v1652
    %v1654 = vpop.f32.mrf.mxu0
    %v1655 = vadd.f32 0.0, %v1654
    %1656 = vmatmul.bf16.gmra.mxu0 %v1502
    %v1657 = vpop.f32.mrf.mxu0
    %v1658 = vadd.f32 0.0, %v1657
    %v1659 = vpop.f32.mrf.mxu0
    %v1660 = vadd.f32 0.0, %v1659
    %1661 = vmatmul.bf16.gmra.mxu0 %v1505
    %v1662 = vpop.f32.mrf.mxu0
    %v1663 = vadd.f32 0.0, %v1662
    %v1664 = vpop.f32.mrf.mxu0
    %v1665 = vadd.f32 0.0, %v1664
    %1666 = vmatmul.bf16.gmra.mxu0 %v1508
    %v1667 = vpop.f32.mrf.mxu0
    %v1668 = vadd.f32 0.0, %v1667
    %v1669 = vpop.f32.mrf.mxu0
    %v1670 = vadd.f32 0.0, %v1669
    %1671 = vmatmul.bf16.gmra.mxu0 %v1511
    %v1672 = vpop.f32.mrf.mxu0
    %v1673 = vadd.f32 0.0, %v1672
    %v1674 = vpop.f32.mrf.mxu0
    %v1675 = vadd.f32 0.0, %v1674
    %1676 = vmatmul.bf16.gmra.mxu0 %v1514
    %v1677 = vpop.f32.mrf.mxu0
    %v1678 = vadd.f32 0.0, %v1677
    %v1679 = vpop.f32.mrf.mxu0
    %v1680 = vadd.f32 0.0, %v1679
    %1681 = vmatmul.bf16.gmra.mxu0 %v1517
    %v1682 = vpop.f32.mrf.mxu0
    %v1683 = vadd.f32 0.0, %v1682
    %v1684 = vpop.f32.mrf.mxu0
    %v1685 = vadd.f32 0.0, %v1684
    %1686 = vmatmul.bf16.gmra.mxu0 %v1520
    %v1687 = vpop.f32.mrf.mxu0
    %v1688 = vadd.f32 0.0, %v1687
    %v1689 = vpop.f32.mrf.mxu0
    %v1690 = vadd.f32 0.0, %v1689
    %1691 = vmatmul.bf16.gmra.mxu0 %v1523
    %v1692 = vpop.f32.mrf.mxu0
    %v1693 = vadd.f32 0.0, %v1692
    %v1694 = vpop.f32.mrf.mxu0
    %v1695 = vadd.f32 0.0, %v1694
    %1696 = vdwg.mxu0
    %v1697 = vadd.f32 %v1011, %v1538
    %v1698 = vadd.f32 %v1013, %v1540
    %v1699 = vadd.f32 %v1016, %v1543
    %v1700 = vadd.f32 %v1018, %v1545
    %v1701 = vadd.f32 %v1021, %v1548
    %v1702 = vadd.f32 %v1023, %v1550
    %v1703 = vadd.f32 %v1026, %v1553
    %v1704 = vadd.f32 %v1028, %v1555
    %v1705 = vadd.f32 %v1031, %v1558
    %v1706 = vadd.f32 %v1033, %v1560
    %v1707 = vadd.f32 %v1036, %v1563
    %v1708 = vadd.f32 %v1038, %v1565
    %v1709 = vadd.f32 %v1041, %v1568
    %v1710 = vadd.f32 %v1043, %v1570
    %v1711 = vadd.f32 %v1046, %v1573
    %v1712 = vadd.f32 %v1048, %v1575
    %v1713 = vadd.f32 %v1051, %v1578
    %v1714 = vadd.f32 %v1053, %v1580
    %v1715 = vadd.f32 %v1056, %v1583
    %v1716 = vadd.f32 %v1058, %v1585
    %v1717 = vadd.f32 %v1061, %v1588
    %v1718 = vadd.f32 %v1063, %v1590
    %v1719 = vadd.f32 %v1066, %v1593
    %v1720 = vadd.f32 %v1068, %v1595
    %v1721 = vadd.f32 %v1071, %v1598
    %v1722 = vadd.f32 %v1073, %v1600
    %v1723 = vadd.f32 %v1076, %v1603
    %v1724 = vadd.f32 %v1078, %v1605
    %v1725 = vadd.f32 %v1081, %v1608
    %v1726 = vadd.f32 %v1083, %v1610
    %v1727 = vadd.f32 %v1086, %v1613
    %v1728 = vadd.f32 %v1088, %v1615
    %v1729 = vadd.f32 %v1091, %v1618
    %v1730 = vadd.f32 %v1093, %v1620
    %v1731 = vadd.f32 %v1096, %v1623
    %v1732 = vadd.f32 %v1098, %v1625
    %v1733 = vadd.f32 %v1101, %v1628
    %v1734 = vadd.f32 %v1103, %v1630
    %v1735 = vadd.f32 %v1106, %v1633
    %v1736 = vadd.f32 %v1108, %v1635
    %v1737 = vadd.f32 %v1111, %v1638
    %v1738 = vadd.f32 %v1113, %v1640
    %v1739 = vadd.f32 %v1116, %v1643
    %v1740 = vadd.f32 %v1118, %v1645
    %v1741 = vadd.f32 %v1121, %v1648
    %v1742 = vadd.f32 %v1123, %v1650
    %v1743 = vadd.f32 %v1126, %v1653
    %v1744 = vadd.f32 %v1128, %v1655
    %v1745 = vadd.f32 %v1131, %v1658
    %v1746 = vadd.f32 %v1133, %v1660
    %v1747 = vadd.f32 %v1136, %v1663
    %v1748 = vadd.f32 %v1138, %v1665
    %v1749 = vadd.f32 %v1141, %v1668
    %v1750 = vadd.f32 %v1143, %v1670
    %v1751 = vadd.f32 %v1146, %v1673
    %v1752 = vadd.f32 %v1148, %v1675
    %v1753 = vadd.f32 %v1151, %v1678
    %v1754 = vadd.f32 %v1153, %v1680
    %v1755 = vadd.f32 %v1156, %v1683
    %v1756 = vadd.f32 %v1158, %v1685
    %v1757 = vadd.f32 %v1161, %v1688
    %v1758 = vadd.f32 %v1163, %v1690
    %v1759 = vadd.f32 %v1166, %v1693
    %v1760 = vadd.f32 %v1168, %v1695
    %v1761 = vpack.c.bf16 %v185, %v184
    %v1762 = vpack.c.bf16 %v239, %v238
    %s1763 = scalar_lea.vmem %s1, 6
    %v1764 = vld [vmem:[%s1763] sm:$0x3]
    %v1766 = vsel %vm632, %v1761, 0
    %v1769 = vsel %vm632, %v1762, 0
    %v1772 = vsel %vm729, %v1764, 0
    %1774 = vmatpush.bf16.msra.mxu0 0
    %1775 = vmatpush.bf16.msra.mxu0 0
    %1776 = vmatpush.bf16.msra.mxu0 0
    %1777 = vmatpush.bf16.msra.mxu0 0
    %1778 = vmatpush.bf16.msra.mxu0 0
    %1779 = vmatpush.bf16.msra.mxu0 0
    %1780 = vmatpush.bf16.msra.mxu0 0
    %1781 = vmatpush.bf16.msra.mxu0 %v1772
    %1782 = vmatmul.bf16.gmra.mxu0 %v906
    %v1783 = vpop.f32.mrf.mxu0
    %v1784 = vadd.f32 0.0, %v1783
    %v1785 = vpop.f32.mrf.mxu0
    %v1786 = vadd.f32 0.0, %v1785
    %1787 = vmatmul.bf16.gmra.mxu0 %v909
    %v1788 = vpop.f32.mrf.mxu0
    %v1789 = vadd.f32 0.0, %v1788
    %v1790 = vpop.f32.mrf.mxu0
    %v1791 = vadd.f32 0.0, %v1790
    %1792 = vmatmul.bf16.gmra.mxu0 %v912
    %v1793 = vpop.f32.mrf.mxu0
    %v1794 = vadd.f32 0.0, %v1793
    %v1795 = vpop.f32.mrf.mxu0
    %v1796 = vadd.f32 0.0, %v1795
    %1797 = vmatmul.bf16.gmra.mxu0 %v915
    %v1798 = vpop.f32.mrf.mxu0
    %v1799 = vadd.f32 0.0, %v1798
    %v1800 = vpop.f32.mrf.mxu0
    %v1801 = vadd.f32 0.0, %v1800
    %1802 = vmatmul.bf16.gmra.mxu0 %v918
    %v1803 = vpop.f32.mrf.mxu0
    %v1804 = vadd.f32 0.0, %v1803
    %v1805 = vpop.f32.mrf.mxu0
    %v1806 = vadd.f32 0.0, %v1805
    %1807 = vmatmul.bf16.gmra.mxu0 %v921
    %v1808 = vpop.f32.mrf.mxu0
    %v1809 = vadd.f32 0.0, %v1808
    %v1810 = vpop.f32.mrf.mxu0
    %v1811 = vadd.f32 0.0, %v1810
    %1812 = vmatmul.bf16.gmra.mxu0 %v924
    %v1813 = vpop.f32.mrf.mxu0
    %v1814 = vadd.f32 0.0, %v1813
    %v1815 = vpop.f32.mrf.mxu0
    %v1816 = vadd.f32 0.0, %v1815
    %1817 = vmatmul.bf16.gmra.mxu0 %v927
    %v1818 = vpop.f32.mrf.mxu0
    %v1819 = vadd.f32 0.0, %v1818
    %v1820 = vpop.f32.mrf.mxu0
    %v1821 = vadd.f32 0.0, %v1820
    %1822 = vmatmul.bf16.gmra.mxu0 %v930
    %v1823 = vpop.f32.mrf.mxu0
    %v1824 = vadd.f32 0.0, %v1823
    %v1825 = vpop.f32.mrf.mxu0
    %v1826 = vadd.f32 0.0, %v1825
    %1827 = vmatmul.bf16.gmra.mxu0 %v933
    %v1828 = vpop.f32.mrf.mxu0
    %v1829 = vadd.f32 0.0, %v1828
    %v1830 = vpop.f32.mrf.mxu0
    %v1831 = vadd.f32 0.0, %v1830
    %1832 = vmatmul.bf16.gmra.mxu0 %v936
    %v1833 = vpop.f32.mrf.mxu0
    %v1834 = vadd.f32 0.0, %v1833
    %v1835 = vpop.f32.mrf.mxu0
    %v1836 = vadd.f32 0.0, %v1835
    %1837 = vmatmul.bf16.gmra.mxu0 %v939
    %v1838 = vpop.f32.mrf.mxu0
    %v1839 = vadd.f32 0.0, %v1838
    %v1840 = vpop.f32.mrf.mxu0
    %v1841 = vadd.f32 0.0, %v1840
    %1842 = vmatmul.bf16.gmra.mxu0 %v942
    %v1843 = vpop.f32.mrf.mxu0
    %v1844 = vadd.f32 0.0, %v1843
    %v1845 = vpop.f32.mrf.mxu0
    %v1846 = vadd.f32 0.0, %v1845
    %1847 = vmatmul.bf16.gmra.mxu0 %v945
    %v1848 = vpop.f32.mrf.mxu0
    %v1849 = vadd.f32 0.0, %v1848
    %v1850 = vpop.f32.mrf.mxu0
    %v1851 = vadd.f32 0.0, %v1850
    %1852 = vmatmul.bf16.gmra.mxu0 %v948
    %v1853 = vpop.f32.mrf.mxu0
    %v1854 = vadd.f32 0.0, %v1853
    %v1855 = vpop.f32.mrf.mxu0
    %v1856 = vadd.f32 0.0, %v1855
    %1857 = vmatmul.bf16.gmra.mxu0 %v1766
    %v1858 = vpop.f32.mrf.mxu0
    %v1859 = vadd.f32 0.0, %v1858
    %v1860 = vpop.f32.mrf.mxu0
    %v1861 = vadd.f32 0.0, %v1860
    %1862 = vmatmul.bf16.gmra.mxu0 %v954
    %v1863 = vpop.f32.mrf.mxu0
    %v1864 = vadd.f32 0.0, %v1863
    %v1865 = vpop.f32.mrf.mxu0
    %v1866 = vadd.f32 0.0, %v1865
    %1867 = vmatmul.bf16.gmra.mxu0 %v957
    %v1868 = vpop.f32.mrf.mxu0
    %v1869 = vadd.f32 0.0, %v1868
    %v1870 = vpop.f32.mrf.mxu0
    %v1871 = vadd.f32 0.0, %v1870
    %1872 = vmatmul.bf16.gmra.mxu0 %v960
    %v1873 = vpop.f32.mrf.mxu0
    %v1874 = vadd.f32 0.0, %v1873
    %v1875 = vpop.f32.mrf.mxu0
    %v1876 = vadd.f32 0.0, %v1875
    %1877 = vmatmul.bf16.gmra.mxu0 %v963
    %v1878 = vpop.f32.mrf.mxu0
    %v1879 = vadd.f32 0.0, %v1878
    %v1880 = vpop.f32.mrf.mxu0
    %v1881 = vadd.f32 0.0, %v1880
    %1882 = vmatmul.bf16.gmra.mxu0 %v966
    %v1883 = vpop.f32.mrf.mxu0
    %v1884 = vadd.f32 0.0, %v1883
    %v1885 = vpop.f32.mrf.mxu0
    %v1886 = vadd.f32 0.0, %v1885
    %1887 = vmatmul.bf16.gmra.mxu0 %v969
    %v1888 = vpop.f32.mrf.mxu0
    %v1889 = vadd.f32 0.0, %v1888
    %v1890 = vpop.f32.mrf.mxu0
    %v1891 = vadd.f32 0.0, %v1890
    %1892 = vmatmul.bf16.gmra.mxu0 %v972
    %v1893 = vpop.f32.mrf.mxu0
    %v1894 = vadd.f32 0.0, %v1893
    %v1895 = vpop.f32.mrf.mxu0
    %v1896 = vadd.f32 0.0, %v1895
    %1897 = vmatmul.bf16.gmra.mxu0 %v975
    %v1898 = vpop.f32.mrf.mxu0
    %v1899 = vadd.f32 0.0, %v1898
    %v1900 = vpop.f32.mrf.mxu0
    %v1901 = vadd.f32 0.0, %v1900
    %1902 = vmatmul.bf16.gmra.mxu0 %v978
    %v1903 = vpop.f32.mrf.mxu0
    %v1904 = vadd.f32 0.0, %v1903
    %v1905 = vpop.f32.mrf.mxu0
    %v1906 = vadd.f32 0.0, %v1905
    %1907 = vmatmul.bf16.gmra.mxu0 %v981
    %v1908 = vpop.f32.mrf.mxu0
    %v1909 = vadd.f32 0.0, %v1908
    %v1910 = vpop.f32.mrf.mxu0
    %v1911 = vadd.f32 0.0, %v1910
    %1912 = vmatmul.bf16.gmra.mxu0 %v984
    %v1913 = vpop.f32.mrf.mxu0
    %v1914 = vadd.f32 0.0, %v1913
    %v1915 = vpop.f32.mrf.mxu0
    %v1916 = vadd.f32 0.0, %v1915
    %1917 = vmatmul.bf16.gmra.mxu0 %v987
    %v1918 = vpop.f32.mrf.mxu0
    %v1919 = vadd.f32 0.0, %v1918
    %v1920 = vpop.f32.mrf.mxu0
    %v1921 = vadd.f32 0.0, %v1920
    %1922 = vmatmul.bf16.gmra.mxu0 %v990
    %v1923 = vpop.f32.mrf.mxu0
    %v1924 = vadd.f32 0.0, %v1923
    %v1925 = vpop.f32.mrf.mxu0
    %v1926 = vadd.f32 0.0, %v1925
    %1927 = vmatmul.bf16.gmra.mxu0 %v993
    %v1928 = vpop.f32.mrf.mxu0
    %v1929 = vadd.f32 0.0, %v1928
    %v1930 = vpop.f32.mrf.mxu0
    %v1931 = vadd.f32 0.0, %v1930
    %1932 = vmatmul.bf16.gmra.mxu0 %v996
    %v1933 = vpop.f32.mrf.mxu0
    %v1934 = vadd.f32 0.0, %v1933
    %v1935 = vpop.f32.mrf.mxu0
    %v1936 = vadd.f32 0.0, %v1935
    %1937 = vmatmul.bf16.gmra.mxu0 %v1769
    %v1938 = vpop.f32.mrf.mxu0
    %v1939 = vadd.f32 0.0, %v1938
    %v1940 = vpop.f32.mrf.mxu0
    %v1941 = vadd.f32 0.0, %v1940
    %1942 = vdwg.mxu0
    %v1943 = vadd.f32 %v1697, %v1784
    %v1944 = vadd.f32 %v1698, %v1786
    %v1945 = vadd.f32 %v1699, %v1789
    %v1946 = vadd.f32 %v1700, %v1791
    %v1947 = vadd.f32 %v1701, %v1794
    %v1948 = vadd.f32 %v1702, %v1796
    %v1949 = vadd.f32 %v1703, %v1799
    %v1950 = vadd.f32 %v1704, %v1801
    %v1951 = vadd.f32 %v1705, %v1804
    %v1952 = vadd.f32 %v1706, %v1806
    %v1953 = vadd.f32 %v1707, %v1809
    %v1954 = vadd.f32 %v1708, %v1811
    %v1955 = vadd.f32 %v1709, %v1814
    %v1956 = vadd.f32 %v1710, %v1816
    %v1957 = vadd.f32 %v1711, %v1819
    %v1958 = vadd.f32 %v1712, %v1821
    %v1959 = vadd.f32 %v1713, %v1824
    %v1960 = vadd.f32 %v1714, %v1826
    %v1961 = vadd.f32 %v1715, %v1829
    %v1962 = vadd.f32 %v1716, %v1831
    %v1963 = vadd.f32 %v1717, %v1834
    %v1964 = vadd.f32 %v1718, %v1836
    %v1965 = vadd.f32 %v1719, %v1839
    %v1966 = vadd.f32 %v1720, %v1841
    %v1967 = vadd.f32 %v1721, %v1844
    %v1968 = vadd.f32 %v1722, %v1846
    %v1969 = vadd.f32 %v1723, %v1849
    %v1970 = vadd.f32 %v1724, %v1851
    %v1971 = vadd.f32 %v1725, %v1854
    %v1972 = vadd.f32 %v1726, %v1856
    %v1973 = vadd.f32 %v1727, %v1859
    %v1974 = vadd.f32 %v1728, %v1861
    %v1975 = vadd.f32 %v1729, %v1864
    %v1976 = vadd.f32 %v1730, %v1866
    %v1977 = vadd.f32 %v1731, %v1869
    %v1978 = vadd.f32 %v1732, %v1871
    %v1979 = vadd.f32 %v1733, %v1874
    %v1980 = vadd.f32 %v1734, %v1876
    %v1981 = vadd.f32 %v1735, %v1879
    %v1982 = vadd.f32 %v1736, %v1881
    %v1983 = vadd.f32 %v1737, %v1884
    %v1984 = vadd.f32 %v1738, %v1886
    %v1985 = vadd.f32 %v1739, %v1889
    %v1986 = vadd.f32 %v1740, %v1891
    %v1987 = vadd.f32 %v1741, %v1894
    %v1988 = vadd.f32 %v1742, %v1896
    %v1989 = vadd.f32 %v1743, %v1899
    %v1990 = vadd.f32 %v1744, %v1901
    %v1991 = vadd.f32 %v1745, %v1904
    %v1992 = vadd.f32 %v1746, %v1906
    %v1993 = vadd.f32 %v1747, %v1909
    %v1994 = vadd.f32 %v1748, %v1911
    %v1995 = vadd.f32 %v1749, %v1914
    %v1996 = vadd.f32 %v1750, %v1916
    %v1997 = vadd.f32 %v1751, %v1919
    %v1998 = vadd.f32 %v1752, %v1921
    %v1999 = vadd.f32 %v1753, %v1924
    %v2000 = vadd.f32 %v1754, %v1926
    %v2001 = vadd.f32 %v1755, %v1929
    %v2002 = vadd.f32 %v1756, %v1931
    %v2003 = vadd.f32 %v1757, %v1934
    %v2004 = vadd.f32 %v1758, %v1936
    %v2005 = vadd.f32 %v1759, %v1939
    %v2006 = vadd.f32 %v1760, %v1941
    %v2013 = vrot.slane %v184, 1
    %v2014 = vrot.slane %v185, 1
    %v2015 = vsel %vm373, %v2013, %v2014
    %v2016 = vrot.slane %v186, 1
    %v2017 = vsel %vm373, %v2014, %v2016
    %v2018 = vrot.slane %v238, 1
    %v2019 = vrot.slane %v239, 1
    %v2020 = vsel %vm373, %v2018, %v2019
    %v2021 = vrot.slane %v240, 1
    %v2022 = vsel %vm373, %v2019, %v2021
    %v2027 = vpack.c.bf16 %v2017, %v2015
    %v2028 = vpack.c.bf16 %v2022, %v2020
    %s2029 = scalar_lea.vmem %s1, 8
    %v2030 = vld [vmem:[%s2029] sm:$0x3]
    %v2032 = vsel %vm632, %v2027, 0
    %v2035 = vsel %vm632, %v2028, 0
    %v2038 = vsel %vm729, %v2030, 0
    %2040 = vmatpush.bf16.msra.mxu0 0
    %2041 = vmatpush.bf16.msra.mxu0 0
    %2042 = vmatpush.bf16.msra.mxu0 0
    %2043 = vmatpush.bf16.msra.mxu0 0
    %2044 = vmatpush.bf16.msra.mxu0 0
    %2045 = vmatpush.bf16.msra.mxu0 0
    %2046 = vmatpush.bf16.msra.mxu0 0
    %2047 = vmatpush.bf16.msra.mxu0 %v2038
    %2048 = vmatmul.bf16.gmra.mxu0 %v637
    %v2049 = vpop.f32.mrf.mxu0
    %v2050 = vadd.f32 0.0, %v2049
    %v2051 = vpop.f32.mrf.mxu0
    %v2052 = vadd.f32 0.0, %v2051
    %2053 = vmatmul.bf16.gmra.mxu0 %v640
    %v2054 = vpop.f32.mrf.mxu0
    %v2055 = vadd.f32 0.0, %v2054
    %v2056 = vpop.f32.mrf.mxu0
    %v2057 = vadd.f32 0.0, %v2056
    %2058 = vmatmul.bf16.gmra.mxu0 %v643
    %v2059 = vpop.f32.mrf.mxu0
    %v2060 = vadd.f32 0.0, %v2059
    %v2061 = vpop.f32.mrf.mxu0
    %v2062 = vadd.f32 0.0, %v2061
    %2063 = vmatmul.bf16.gmra.mxu0 %v646
    %v2064 = vpop.f32.mrf.mxu0
    %v2065 = vadd.f32 0.0, %v2064
    %v2066 = vpop.f32.mrf.mxu0
    %v2067 = vadd.f32 0.0, %v2066
    %2068 = vmatmul.bf16.gmra.mxu0 %v649
    %v2069 = vpop.f32.mrf.mxu0
    %v2070 = vadd.f32 0.0, %v2069
    %v2071 = vpop.f32.mrf.mxu0
    %v2072 = vadd.f32 0.0, %v2071
    %2073 = vmatmul.bf16.gmra.mxu0 %v652
    %v2074 = vpop.f32.mrf.mxu0
    %v2075 = vadd.f32 0.0, %v2074
    %v2076 = vpop.f32.mrf.mxu0
    %v2077 = vadd.f32 0.0, %v2076
    %2078 = vmatmul.bf16.gmra.mxu0 %v655
    %v2079 = vpop.f32.mrf.mxu0
    %v2080 = vadd.f32 0.0, %v2079
    %v2081 = vpop.f32.mrf.mxu0
    %v2082 = vadd.f32 0.0, %v2081
    %2083 = vmatmul.bf16.gmra.mxu0 %v658
    %v2084 = vpop.f32.mrf.mxu0
    %v2085 = vadd.f32 0.0, %v2084
    %v2086 = vpop.f32.mrf.mxu0
    %v2087 = vadd.f32 0.0, %v2086
    %2088 = vmatmul.bf16.gmra.mxu0 %v661
    %v2089 = vpop.f32.mrf.mxu0
    %v2090 = vadd.f32 0.0, %v2089
    %v2091 = vpop.f32.mrf.mxu0
    %v2092 = vadd.f32 0.0, %v2091
    %2093 = vmatmul.bf16.gmra.mxu0 %v664
    %v2094 = vpop.f32.mrf.mxu0
    %v2095 = vadd.f32 0.0, %v2094
    %v2096 = vpop.f32.mrf.mxu0
    %v2097 = vadd.f32 0.0, %v2096
    %2098 = vmatmul.bf16.gmra.mxu0 %v667
    %v2099 = vpop.f32.mrf.mxu0
    %v2100 = vadd.f32 0.0, %v2099
    %v2101 = vpop.f32.mrf.mxu0
    %v2102 = vadd.f32 0.0, %v2101
    %2103 = vmatmul.bf16.gmra.mxu0 %v670
    %v2104 = vpop.f32.mrf.mxu0
    %v2105 = vadd.f32 0.0, %v2104
    %v2106 = vpop.f32.mrf.mxu0
    %v2107 = vadd.f32 0.0, %v2106
    %2108 = vmatmul.bf16.gmra.mxu0 %v673
    %v2109 = vpop.f32.mrf.mxu0
    %v2110 = vadd.f32 0.0, %v2109
    %v2111 = vpop.f32.mrf.mxu0
    %v2112 = vadd.f32 0.0, %v2111
    %2113 = vmatmul.bf16.gmra.mxu0 %v676
    %v2114 = vpop.f32.mrf.mxu0
    %v2115 = vadd.f32 0.0, %v2114
    %v2116 = vpop.f32.mrf.mxu0
    %v2117 = vadd.f32 0.0, %v2116
    %2118 = vmatmul.bf16.gmra.mxu0 %v679
    %v2119 = vpop.f32.mrf.mxu0
    %v2120 = vadd.f32 0.0, %v2119
    %v2121 = vpop.f32.mrf.mxu0
    %v2122 = vadd.f32 0.0, %v2121
    %2123 = vmatmul.bf16.gmra.mxu0 %v2032
    %v2124 = vpop.f32.mrf.mxu0
    %v2125 = vadd.f32 0.0, %v2124
    %v2126 = vpop.f32.mrf.mxu0
    %v2127 = vadd.f32 0.0, %v2126
    %2128 = vmatmul.bf16.gmra.mxu0 %v685
    %v2129 = vpop.f32.mrf.mxu0
    %v2130 = vadd.f32 0.0, %v2129
    %v2131 = vpop.f32.mrf.mxu0
    %v2132 = vadd.f32 0.0, %v2131
    %2133 = vmatmul.bf16.gmra.mxu0 %v688
    %v2134 = vpop.f32.mrf.mxu0
    %v2135 = vadd.f32 0.0, %v2134
    %v2136 = vpop.f32.mrf.mxu0
    %v2137 = vadd.f32 0.0, %v2136
    %2138 = vmatmul.bf16.gmra.mxu0 %v691
    %v2139 = vpop.f32.mrf.mxu0
    %v2140 = vadd.f32 0.0, %v2139
    %v2141 = vpop.f32.mrf.mxu0
    %v2142 = vadd.f32 0.0, %v2141
    %2143 = vmatmul.bf16.gmra.mxu0 %v694
    %v2144 = vpop.f32.mrf.mxu0
    %v2145 = vadd.f32 0.0, %v2144
    %v2146 = vpop.f32.mrf.mxu0
    %v2147 = vadd.f32 0.0, %v2146
    %2148 = vmatmul.bf16.gmra.mxu0 %v697
    %v2149 = vpop.f32.mrf.mxu0
    %v2150 = vadd.f32 0.0, %v2149
    %v2151 = vpop.f32.mrf.mxu0
    %v2152 = vadd.f32 0.0, %v2151
    %2153 = vmatmul.bf16.gmra.mxu0 %v700
    %v2154 = vpop.f32.mrf.mxu0
    %v2155 = vadd.f32 0.0, %v2154
    %v2156 = vpop.f32.mrf.mxu0
    %v2157 = vadd.f32 0.0, %v2156
    %2158 = vmatmul.bf16.gmra.mxu0 %v703
    %v2159 = vpop.f32.mrf.mxu0
    %v2160 = vadd.f32 0.0, %v2159
    %v2161 = vpop.f32.mrf.mxu0
    %v2162 = vadd.f32 0.0, %v2161
    %2163 = vmatmul.bf16.gmra.mxu0 %v706
    %v2164 = vpop.f32.mrf.mxu0
    %v2165 = vadd.f32 0.0, %v2164
    %v2166 = vpop.f32.mrf.mxu0
    %v2167 = vadd.f32 0.0, %v2166
    %2168 = vmatmul.bf16.gmra.mxu0 %v709
    %v2169 = vpop.f32.mrf.mxu0
    %v2170 = vadd.f32 0.0, %v2169
    %v2171 = vpop.f32.mrf.mxu0
    %v2172 = vadd.f32 0.0, %v2171
    %2173 = vmatmul.bf16.gmra.mxu0 %v712
    %v2174 = vpop.f32.mrf.mxu0
    %v2175 = vadd.f32 0.0, %v2174
    %v2176 = vpop.f32.mrf.mxu0
    %v2177 = vadd.f32 0.0, %v2176
    %2178 = vmatmul.bf16.gmra.mxu0 %v715
    %v2179 = vpop.f32.mrf.mxu0
    %v2180 = vadd.f32 0.0, %v2179
    %v2181 = vpop.f32.mrf.mxu0
    %v2182 = vadd.f32 0.0, %v2181
    %2183 = vmatmul.bf16.gmra.mxu0 %v718
    %v2184 = vpop.f32.mrf.mxu0
    %v2185 = vadd.f32 0.0, %v2184
    %v2186 = vpop.f32.mrf.mxu0
    %v2187 = vadd.f32 0.0, %v2186
    %2188 = vmatmul.bf16.gmra.mxu0 %v721
    %v2189 = vpop.f32.mrf.mxu0
    %v2190 = vadd.f32 0.0, %v2189
    %v2191 = vpop.f32.mrf.mxu0
    %v2192 = vadd.f32 0.0, %v2191
    %2193 = vmatmul.bf16.gmra.mxu0 %v724
    %v2194 = vpop.f32.mrf.mxu0
    %v2195 = vadd.f32 0.0, %v2194
    %v2196 = vpop.f32.mrf.mxu0
    %v2197 = vadd.f32 0.0, %v2196
    %2198 = vmatmul.bf16.gmra.mxu0 %v727
    %v2199 = vpop.f32.mrf.mxu0
    %v2200 = vadd.f32 0.0, %v2199
    %v2201 = vpop.f32.mrf.mxu0
    %v2202 = vadd.f32 0.0, %v2201
    %2203 = vmatmul.bf16.gmra.mxu0 %v2035
    %v2204 = vpop.f32.mrf.mxu0
    %v2205 = vadd.f32 0.0, %v2204
    %v2206 = vpop.f32.mrf.mxu0
    %v2207 = vadd.f32 0.0, %v2206
    %2208 = vdwg.mxu0
    %v2209 = vadd.f32 %v1943, %v2050
    %v2210 = vadd.f32 %v1944, %v2052
    %v2211 = vadd.f32 %v1945, %v2055
    %v2212 = vadd.f32 %v1946, %v2057
    %v2213 = vadd.f32 %v1947, %v2060
    %v2214 = vadd.f32 %v1948, %v2062
    %v2215 = vadd.f32 %v1949, %v2065
    %v2216 = vadd.f32 %v1950, %v2067
    %v2217 = vadd.f32 %v1951, %v2070
    %v2218 = vadd.f32 %v1952, %v2072
    %v2219 = vadd.f32 %v1953, %v2075
    %v2220 = vadd.f32 %v1954, %v2077
    %v2221 = vadd.f32 %v1955, %v2080
    %v2222 = vadd.f32 %v1956, %v2082
    %v2223 = vadd.f32 %v1957, %v2085
    %v2224 = vadd.f32 %v1958, %v2087
    %v2225 = vadd.f32 %v1959, %v2090
    %v2226 = vadd.f32 %v1960, %v2092
    %v2227 = vadd.f32 %v1961, %v2095
    %v2228 = vadd.f32 %v1962, %v2097
    %v2229 = vadd.f32 %v1963, %v2100
    %v2230 = vadd.f32 %v1964, %v2102
    %v2231 = vadd.f32 %v1965, %v2105
    %v2232 = vadd.f32 %v1966, %v2107
    %v2233 = vadd.f32 %v1967, %v2110
    %v2234 = vadd.f32 %v1968, %v2112
    %v2235 = vadd.f32 %v1969, %v2115
    %v2236 = vadd.f32 %v1970, %v2117
    %v2237 = vadd.f32 %v1971, %v2120
    %v2238 = vadd.f32 %v1972, %v2122
    %v2239 = vadd.f32 %v1973, %v2125
    %v2240 = vadd.f32 %v1974, %v2127
    %v2241 = vadd.f32 %v1975, %v2130
    %v2242 = vadd.f32 %v1976, %v2132
    %v2243 = vadd.f32 %v1977, %v2135
    %v2244 = vadd.f32 %v1978, %v2137
    %v2245 = vadd.f32 %v1979, %v2140
    %v2246 = vadd.f32 %v1980, %v2142
    %v2247 = vadd.f32 %v1981, %v2145
    %v2248 = vadd.f32 %v1982, %v2147
    %v2249 = vadd.f32 %v1983, %v2150
    %v2250 = vadd.f32 %v1984, %v2152
    %v2251 = vadd.f32 %v1985, %v2155
    %v2252 = vadd.f32 %v1986, %v2157
    %v2253 = vadd.f32 %v1987, %v2160
    %v2254 = vadd.f32 %v1988, %v2162
    %v2255 = vadd.f32 %v1989, %v2165
    %v2256 = vadd.f32 %v1990, %v2167
    %v2257 = vadd.f32 %v1991, %v2170
    %v2258 = vadd.f32 %v1992, %v2172
    %v2259 = vadd.f32 %v1993, %v2175
    %v2260 = vadd.f32 %v1994, %v2177
    %v2261 = vadd.f32 %v1995, %v2180
    %v2262 = vadd.f32 %v1996, %v2182
    %v2263 = vadd.f32 %v1997, %v2185
    %v2264 = vadd.f32 %v1998, %v2187
    %v2265 = vadd.f32 %v1999, %v2190
    %v2266 = vadd.f32 %v2000, %v2192
    %v2267 = vadd.f32 %v2001, %v2195
    %v2268 = vadd.f32 %v2002, %v2197
    %v2269 = vadd.f32 %v2003, %v2200
    %v2270 = vadd.f32 %v2004, %v2202
    %v2271 = vadd.f32 %v2005, %v2205
    %v2272 = vadd.f32 %v2006, %v2207
    %v2273 = vrot.slane %v184, 2
    %v2274 = vrot.slane %v185, 2
    %v2275 = vsel %vm1170, %v2273, %v2274
    %v2276 = vrot.slane %v186, 2
    %v2277 = vsel %vm1170, %v2274, %v2276
    %v2278 = vrot.slane %v238, 2
    %v2279 = vrot.slane %v239, 2
    %v2280 = vsel %vm1170, %v2278, %v2279
    %v2281 = vrot.slane %v240, 2
    %v2282 = vsel %vm1170, %v2279, %v2281
    %v2287 = vpack.c.bf16 %v2277, %v2275
    %v2288 = vpack.c.bf16 %v2282, %v2280
    %s2289 = scalar_lea.vmem %s1, 10
    %v2290 = vld [vmem:[%s2289] sm:$0x3]
    %v2292 = vsel %vm632, %v2287, 0
    %v2295 = vsel %vm632, %v2288, 0
    %v2298 = vsel %vm729, %v2290, 0
    %2300 = vmatpush.bf16.msra.mxu0 0
    %2301 = vmatpush.bf16.msra.mxu0 0
    %2302 = vmatpush.bf16.msra.mxu0 0
    %2303 = vmatpush.bf16.msra.mxu0 0
    %2304 = vmatpush.bf16.msra.mxu0 0
    %2305 = vmatpush.bf16.msra.mxu0 0
    %2306 = vmatpush.bf16.msra.mxu0 0
    %2307 = vmatpush.bf16.msra.mxu0 %v2298
    %2308 = vmatmul.bf16.gmra.mxu0 %v1433
    %v2309 = vpop.f32.mrf.mxu0
    %v2310 = vadd.f32 0.0, %v2309
    %v2311 = vpop.f32.mrf.mxu0
    %v2312 = vadd.f32 0.0, %v2311
    %2313 = vmatmul.bf16.gmra.mxu0 %v1436
    %v2314 = vpop.f32.mrf.mxu0
    %v2315 = vadd.f32 0.0, %v2314
    %v2316 = vpop.f32.mrf.mxu0
    %v2317 = vadd.f32 0.0, %v2316
    %2318 = vmatmul.bf16.gmra.mxu0 %v1439
    %v2319 = vpop.f32.mrf.mxu0
    %v2320 = vadd.f32 0.0, %v2319
    %v2321 = vpop.f32.mrf.mxu0
    %v2322 = vadd.f32 0.0, %v2321
    %2323 = vmatmul.bf16.gmra.mxu0 %v1442
    %v2324 = vpop.f32.mrf.mxu0
    %v2325 = vadd.f32 0.0, %v2324
    %v2326 = vpop.f32.mrf.mxu0
    %v2327 = vadd.f32 0.0, %v2326
    %2328 = vmatmul.bf16.gmra.mxu0 %v1445
    %v2329 = vpop.f32.mrf.mxu0
    %v2330 = vadd.f32 0.0, %v2329
    %v2331 = vpop.f32.mrf.mxu0
    %v2332 = vadd.f32 0.0, %v2331
    %2333 = vmatmul.bf16.gmra.mxu0 %v1448
    %v2334 = vpop.f32.mrf.mxu0
    %v2335 = vadd.f32 0.0, %v2334
    %v2336 = vpop.f32.mrf.mxu0
    %v2337 = vadd.f32 0.0, %v2336
    %2338 = vmatmul.bf16.gmra.mxu0 %v1451
    %v2339 = vpop.f32.mrf.mxu0
    %v2340 = vadd.f32 0.0, %v2339
    %v2341 = vpop.f32.mrf.mxu0
    %v2342 = vadd.f32 0.0, %v2341
    %2343 = vmatmul.bf16.gmra.mxu0 %v1454
    %v2344 = vpop.f32.mrf.mxu0
    %v2345 = vadd.f32 0.0, %v2344
    %v2346 = vpop.f32.mrf.mxu0
    %v2347 = vadd.f32 0.0, %v2346
    %2348 = vmatmul.bf16.gmra.mxu0 %v1457
    %v2349 = vpop.f32.mrf.mxu0
    %v2350 = vadd.f32 0.0, %v2349
    %v2351 = vpop.f32.mrf.mxu0
    %v2352 = vadd.f32 0.0, %v2351
    %2353 = vmatmul.bf16.gmra.mxu0 %v1460
    %v2354 = vpop.f32.mrf.mxu0
    %v2355 = vadd.f32 0.0, %v2354
    %v2356 = vpop.f32.mrf.mxu0
    %v2357 = vadd.f32 0.0, %v2356
    %2358 = vmatmul.bf16.gmra.mxu0 %v1463
    %v2359 = vpop.f32.mrf.mxu0
    %v2360 = vadd.f32 0.0, %v2359
    %v2361 = vpop.f32.mrf.mxu0
    %v2362 = vadd.f32 0.0, %v2361
    %2363 = vmatmul.bf16.gmra.mxu0 %v1466
    %v2364 = vpop.f32.mrf.mxu0
    %v2365 = vadd.f32 0.0, %v2364
    %v2366 = vpop.f32.mrf.mxu0
    %v2367 = vadd.f32 0.0, %v2366
    %2368 = vmatmul.bf16.gmra.mxu0 %v1469
    %v2369 = vpop.f32.mrf.mxu0
    %v2370 = vadd.f32 0.0, %v2369
    %v2371 = vpop.f32.mrf.mxu0
    %v2372 = vadd.f32 0.0, %v2371
    %2373 = vmatmul.bf16.gmra.mxu0 %v1472
    %v2374 = vpop.f32.mrf.mxu0
    %v2375 = vadd.f32 0.0, %v2374
    %v2376 = vpop.f32.mrf.mxu0
    %v2377 = vadd.f32 0.0, %v2376
    %2378 = vmatmul.bf16.gmra.mxu0 %v1475
    %v2379 = vpop.f32.mrf.mxu0
    %v2380 = vadd.f32 0.0, %v2379
    %v2381 = vpop.f32.mrf.mxu0
    %v2382 = vadd.f32 0.0, %v2381
    %2383 = vmatmul.bf16.gmra.mxu0 %v2292
    %v2384 = vpop.f32.mrf.mxu0
    %v2385 = vadd.f32 0.0, %v2384
    %v2386 = vpop.f32.mrf.mxu0
    %v2387 = vadd.f32 0.0, %v2386
    %2388 = vmatmul.bf16.gmra.mxu0 %v1481
    %v2389 = vpop.f32.mrf.mxu0
    %v2390 = vadd.f32 0.0, %v2389
    %v2391 = vpop.f32.mrf.mxu0
    %v2392 = vadd.f32 0.0, %v2391
    %2393 = vmatmul.bf16.gmra.mxu0 %v1484
    %v2394 = vpop.f32.mrf.mxu0
    %v2395 = vadd.f32 0.0, %v2394
    %v2396 = vpop.f32.mrf.mxu0
    %v2397 = vadd.f32 0.0, %v2396
    %2398 = vmatmul.bf16.gmra.mxu0 %v1487
    %v2399 = vpop.f32.mrf.mxu0
    %v2400 = vadd.f32 0.0, %v2399
    %v2401 = vpop.f32.mrf.mxu0
    %v2402 = vadd.f32 0.0, %v2401
    %2403 = vmatmul.bf16.gmra.mxu0 %v1490
    %v2404 = vpop.f32.mrf.mxu0
    %v2405 = vadd.f32 0.0, %v2404
    %v2406 = vpop.f32.mrf.mxu0
    %v2407 = vadd.f32 0.0, %v2406
    %2408 = vmatmul.bf16.gmra.mxu0 %v1493
    %v2409 = vpop.f32.mrf.mxu0
    %v2410 = vadd.f32 0.0, %v2409
    %v2411 = vpop.f32.mrf.mxu0
    %v2412 = vadd.f32 0.0, %v2411
    %2413 = vmatmul.bf16.gmra.mxu0 %v1496
    %v2414 = vpop.f32.mrf.mxu0
    %v2415 = vadd.f32 0.0, %v2414
    %v2416 = vpop.f32.mrf.mxu0
    %v2417 = vadd.f32 0.0, %v2416
    %2418 = vmatmul.bf16.gmra.mxu0 %v1499
    %v2419 = vpop.f32.mrf.mxu0
    %v2420 = vadd.f32 0.0, %v2419
    %v2421 = vpop.f32.mrf.mxu0
    %v2422 = vadd.f32 0.0, %v2421
    %2423 = vmatmul.bf16.gmra.mxu0 %v1502
    %v2424 = vpop.f32.mrf.mxu0
    %v2425 = vadd.f32 0.0, %v2424
    %v2426 = vpop.f32.mrf.mxu0
    %v2427 = vadd.f32 0.0, %v2426
    %2428 = vmatmul.bf16.gmra.mxu0 %v1505
    %v2429 = vpop.f32.mrf.mxu0
    %v2430 = vadd.f32 0.0, %v2429
    %v2431 = vpop.f32.mrf.mxu0
    %v2432 = vadd.f32 0.0, %v2431
    %2433 = vmatmul.bf16.gmra.mxu0 %v1508
    %v2434 = vpop.f32.mrf.mxu0
    %v2435 = vadd.f32 0.0, %v2434
    %v2436 = vpop.f32.mrf.mxu0
    %v2437 = vadd.f32 0.0, %v2436
    %2438 = vmatmul.bf16.gmra.mxu0 %v1511
    %v2439 = vpop.f32.mrf.mxu0
    %v2440 = vadd.f32 0.0, %v2439
    %v2441 = vpop.f32.mrf.mxu0
    %v2442 = vadd.f32 0.0, %v2441
    %2443 = vmatmul.bf16.gmra.mxu0 %v1514
    %v2444 = vpop.f32.mrf.mxu0
    %v2445 = vadd.f32 0.0, %v2444
    %v2446 = vpop.f32.mrf.mxu0
    %v2447 = vadd.f32 0.0, %v2446
    %2448 = vmatmul.bf16.gmra.mxu0 %v1517
    %v2449 = vpop.f32.mrf.mxu0
    %v2450 = vadd.f32 0.0, %v2449
    %v2451 = vpop.f32.mrf.mxu0
    %v2452 = vadd.f32 0.0, %v2451
    %2453 = vmatmul.bf16.gmra.mxu0 %v1520
    %v2454 = vpop.f32.mrf.mxu0
    %v2455 = vadd.f32 0.0, %v2454
    %v2456 = vpop.f32.mrf.mxu0
    %v2457 = vadd.f32 0.0, %v2456
    %2458 = vmatmul.bf16.gmra.mxu0 %v1523
    %v2459 = vpop.f32.mrf.mxu0
    %v2460 = vadd.f32 0.0, %v2459
    %v2461 = vpop.f32.mrf.mxu0
    %v2462 = vadd.f32 0.0, %v2461
    %2463 = vmatmul.bf16.gmra.mxu0 %v2295
    %v2464 = vpop.f32.mrf.mxu0
    %v2465 = vadd.f32 0.0, %v2464
    %v2466 = vpop.f32.mrf.mxu0
    %v2467 = vadd.f32 0.0, %v2466
    %2468 = vdwg.mxu0
    %v2469 = vadd.f32 %v2209, %v2310
    %v2470 = vadd.f32 %v2210, %v2312
    %v2471 = vadd.f32 %v2211, %v2315
    %v2472 = vadd.f32 %v2212, %v2317
    %v2473 = vadd.f32 %v2213, %v2320
    %v2474 = vadd.f32 %v2214, %v2322
    %v2475 = vadd.f32 %v2215, %v2325
    %v2476 = vadd.f32 %v2216, %v2327
    %v2477 = vadd.f32 %v2217, %v2330
    %v2478 = vadd.f32 %v2218, %v2332
    %v2479 = vadd.f32 %v2219, %v2335
    %v2480 = vadd.f32 %v2220, %v2337
    %v2481 = vadd.f32 %v2221, %v2340
    %v2482 = vadd.f32 %v2222, %v2342
    %v2483 = vadd.f32 %v2223, %v2345
    %v2484 = vadd.f32 %v2224, %v2347
    %v2485 = vadd.f32 %v2225, %v2350
    %v2486 = vadd.f32 %v2226, %v2352
    %v2487 = vadd.f32 %v2227, %v2355
    %v2488 = vadd.f32 %v2228, %v2357
    %v2489 = vadd.f32 %v2229, %v2360
    %v2490 = vadd.f32 %v2230, %v2362
    %v2491 = vadd.f32 %v2231, %v2365
    %v2492 = vadd.f32 %v2232, %v2367
    %v2493 = vadd.f32 %v2233, %v2370
    %v2494 = vadd.f32 %v2234, %v2372
    %v2495 = vadd.f32 %v2235, %v2375
    %v2496 = vadd.f32 %v2236, %v2377
    %v2497 = vadd.f32 %v2237, %v2380
    %v2498 = vadd.f32 %v2238, %v2382
    %v2499 = vadd.f32 %v2239, %v2385
    %v2500 = vadd.f32 %v2240, %v2387
    %v2501 = vadd.f32 %v2241, %v2390
    %v2502 = vadd.f32 %v2242, %v2392
    %v2503 = vadd.f32 %v2243, %v2395
    %v2504 = vadd.f32 %v2244, %v2397
    %v2505 = vadd.f32 %v2245, %v2400
    %v2506 = vadd.f32 %v2246, %v2402
    %v2507 = vadd.f32 %v2247, %v2405
    %v2508 = vadd.f32 %v2248, %v2407
    %v2509 = vadd.f32 %v2249, %v2410
    %v2510 = vadd.f32 %v2250, %v2412
    %v2511 = vadd.f32 %v2251, %v2415
    %v2512 = vadd.f32 %v2252, %v2417
    %v2513 = vadd.f32 %v2253, %v2420
    %v2514 = vadd.f32 %v2254, %v2422
    %v2515 = vadd.f32 %v2255, %v2425
    %v2516 = vadd.f32 %v2256, %v2427
    %v2517 = vadd.f32 %v2257, %v2430
    %v2518 = vadd.f32 %v2258, %v2432
    %v2519 = vadd.f32 %v2259, %v2435
    %v2520 = vadd.f32 %v2260, %v2437
    %v2521 = vadd.f32 %v2261, %v2440
    %v2522 = vadd.f32 %v2262, %v2442
    %v2523 = vadd.f32 %v2263, %v2445
    %v2524 = vadd.f32 %v2264, %v2447
    %v2525 = vadd.f32 %v2265, %v2450
    %v2526 = vadd.f32 %v2266, %v2452
    %v2527 = vadd.f32 %v2267, %v2455
    %v2528 = vadd.f32 %v2268, %v2457
    %v2529 = vadd.f32 %v2269, %v2460
    %v2530 = vadd.f32 %v2270, %v2462
    %v2531 = vadd.f32 %v2271, %v2465
    %v2532 = vadd.f32 %v2272, %v2467
    %v2533 = vpack.c.bf16 %v188, %v187
    %v2534 = vpack.c.bf16 %v242, %v241
    %s2535 = scalar_lea.vmem %s1, 12
    %v2536 = vld [vmem:[%s2535] sm:$0x3]
    %v2538 = vsel %vm632, %v2533, 0
    %v2541 = vsel %vm632, %v2534, 0
    %v2544 = vsel %vm729, %v2536, 0
    %2546 = vmatpush.bf16.msra.mxu0 0
    %2547 = vmatpush.bf16.msra.mxu0 0
    %2548 = vmatpush.bf16.msra.mxu0 0
    %2549 = vmatpush.bf16.msra.mxu0 0
    %2550 = vmatpush.bf16.msra.mxu0 0
    %2551 = vmatpush.bf16.msra.mxu0 0
    %2552 = vmatpush.bf16.msra.mxu0 0
    %2553 = vmatpush.bf16.msra.mxu0 %v2544
    %2554 = vmatmul.bf16.gmra.mxu0 %v909
    %v2555 = vpop.f32.mrf.mxu0
    %v2556 = vadd.f32 0.0, %v2555
    %v2557 = vpop.f32.mrf.mxu0
    %v2558 = vadd.f32 0.0, %v2557
    %2559 = vmatmul.bf16.gmra.mxu0 %v912
    %v2560 = vpop.f32.mrf.mxu0
    %v2561 = vadd.f32 0.0, %v2560
    %v2562 = vpop.f32.mrf.mxu0
    %v2563 = vadd.f32 0.0, %v2562
    %2564 = vmatmul.bf16.gmra.mxu0 %v915
    %v2565 = vpop.f32.mrf.mxu0
    %v2566 = vadd.f32 0.0, %v2565
    %v2567 = vpop.f32.mrf.mxu0
    %v2568 = vadd.f32 0.0, %v2567
    %2569 = vmatmul.bf16.gmra.mxu0 %v918
    %v2570 = vpop.f32.mrf.mxu0
    %v2571 = vadd.f32 0.0, %v2570
    %v2572 = vpop.f32.mrf.mxu0
    %v2573 = vadd.f32 0.0, %v2572
    %2574 = vmatmul.bf16.gmra.mxu0 %v921
    %v2575 = vpop.f32.mrf.mxu0
    %v2576 = vadd.f32 0.0, %v2575
    %v2577 = vpop.f32.mrf.mxu0
    %v2578 = vadd.f32 0.0, %v2577
    %2579 = vmatmul.bf16.gmra.mxu0 %v924
    %v2580 = vpop.f32.mrf.mxu0
    %v2581 = vadd.f32 0.0, %v2580
    %v2582 = vpop.f32.mrf.mxu0
    %v2583 = vadd.f32 0.0, %v2582
    %2584 = vmatmul.bf16.gmra.mxu0 %v927
    %v2585 = vpop.f32.mrf.mxu0
    %v2586 = vadd.f32 0.0, %v2585
    %v2587 = vpop.f32.mrf.mxu0
    %v2588 = vadd.f32 0.0, %v2587
    %2589 = vmatmul.bf16.gmra.mxu0 %v930
    %v2590 = vpop.f32.mrf.mxu0
    %v2591 = vadd.f32 0.0, %v2590
    %v2592 = vpop.f32.mrf.mxu0
    %v2593 = vadd.f32 0.0, %v2592
    %2594 = vmatmul.bf16.gmra.mxu0 %v933
    %v2595 = vpop.f32.mrf.mxu0
    %v2596 = vadd.f32 0.0, %v2595
    %v2597 = vpop.f32.mrf.mxu0
    %v2598 = vadd.f32 0.0, %v2597
    %2599 = vmatmul.bf16.gmra.mxu0 %v936
    %v2600 = vpop.f32.mrf.mxu0
    %v2601 = vadd.f32 0.0, %v2600
    %v2602 = vpop.f32.mrf.mxu0
    %v2603 = vadd.f32 0.0, %v2602
    %2604 = vmatmul.bf16.gmra.mxu0 %v939
    %v2605 = vpop.f32.mrf.mxu0
    %v2606 = vadd.f32 0.0, %v2605
    %v2607 = vpop.f32.mrf.mxu0
    %v2608 = vadd.f32 0.0, %v2607
    %2609 = vmatmul.bf16.gmra.mxu0 %v942
    %v2610 = vpop.f32.mrf.mxu0
    %v2611 = vadd.f32 0.0, %v2610
    %v2612 = vpop.f32.mrf.mxu0
    %v2613 = vadd.f32 0.0, %v2612
    %2614 = vmatmul.bf16.gmra.mxu0 %v945
    %v2615 = vpop.f32.mrf.mxu0
    %v2616 = vadd.f32 0.0, %v2615
    %v2617 = vpop.f32.mrf.mxu0
    %v2618 = vadd.f32 0.0, %v2617
    %2619 = vmatmul.bf16.gmra.mxu0 %v948
    %v2620 = vpop.f32.mrf.mxu0
    %v2621 = vadd.f32 0.0, %v2620
    %v2622 = vpop.f32.mrf.mxu0
    %v2623 = vadd.f32 0.0, %v2622
    %2624 = vmatmul.bf16.gmra.mxu0 %v1766
    %v2625 = vpop.f32.mrf.mxu0
    %v2626 = vadd.f32 0.0, %v2625
    %v2627 = vpop.f32.mrf.mxu0
    %v2628 = vadd.f32 0.0, %v2627
    %2629 = vmatmul.bf16.gmra.mxu0 %v2538
    %v2630 = vpop.f32.mrf.mxu0
    %v2631 = vadd.f32 0.0, %v2630
    %v2632 = vpop.f32.mrf.mxu0
    %v2633 = vadd.f32 0.0, %v2632
    %2634 = vmatmul.bf16.gmra.mxu0 %v957
    %v2635 = vpop.f32.mrf.mxu0
    %v2636 = vadd.f32 0.0, %v2635
    %v2637 = vpop.f32.mrf.mxu0
    %v2638 = vadd.f32 0.0, %v2637
    %2639 = vmatmul.bf16.gmra.mxu0 %v960
    %v2640 = vpop.f32.mrf.mxu0
    %v2641 = vadd.f32 0.0, %v2640
    %v2642 = vpop.f32.mrf.mxu0
    %v2643 = vadd.f32 0.0, %v2642
    %2644 = vmatmul.bf16.gmra.mxu0 %v963
    %v2645 = vpop.f32.mrf.mxu0
    %v2646 = vadd.f32 0.0, %v2645
    %v2647 = vpop.f32.mrf.mxu0
    %v2648 = vadd.f32 0.0, %v2647
    %2649 = vmatmul.bf16.gmra.mxu0 %v966
    %v2650 = vpop.f32.mrf.mxu0
    %v2651 = vadd.f32 0.0, %v2650
    %v2652 = vpop.f32.mrf.mxu0
    %v2653 = vadd.f32 0.0, %v2652
    %2654 = vmatmul.bf16.gmra.mxu0 %v969
    %v2655 = vpop.f32.mrf.mxu0
    %v2656 = vadd.f32 0.0, %v2655
    %v2657 = vpop.f32.mrf.mxu0
    %v2658 = vadd.f32 0.0, %v2657
    %2659 = vmatmul.bf16.gmra.mxu0 %v972
    %v2660 = vpop.f32.mrf.mxu0
    %v2661 = vadd.f32 0.0, %v2660
    %v2662 = vpop.f32.mrf.mxu0
    %v2663 = vadd.f32 0.0, %v2662
    %2664 = vmatmul.bf16.gmra.mxu0 %v975
    %v2665 = vpop.f32.mrf.mxu0
    %v2666 = vadd.f32 0.0, %v2665
    %v2667 = vpop.f32.mrf.mxu0
    %v2668 = vadd.f32 0.0, %v2667
    %2669 = vmatmul.bf16.gmra.mxu0 %v978
    %v2670 = vpop.f32.mrf.mxu0
    %v2671 = vadd.f32 0.0, %v2670
    %v2672 = vpop.f32.mrf.mxu0
    %v2673 = vadd.f32 0.0, %v2672
    %2674 = vmatmul.bf16.gmra.mxu0 %v981
    %v2675 = vpop.f32.mrf.mxu0
    %v2676 = vadd.f32 0.0, %v2675
    %v2677 = vpop.f32.mrf.mxu0
    %v2678 = vadd.f32 0.0, %v2677
    %2679 = vmatmul.bf16.gmra.mxu0 %v984
    %v2680 = vpop.f32.mrf.mxu0
    %v2681 = vadd.f32 0.0, %v2680
    %v2682 = vpop.f32.mrf.mxu0
    %v2683 = vadd.f32 0.0, %v2682
    %2684 = vmatmul.bf16.gmra.mxu0 %v987
    %v2685 = vpop.f32.mrf.mxu0
    %v2686 = vadd.f32 0.0, %v2685
    %v2687 = vpop.f32.mrf.mxu0
    %v2688 = vadd.f32 0.0, %v2687
    %2689 = vmatmul.bf16.gmra.mxu0 %v990
    %v2690 = vpop.f32.mrf.mxu0
    %v2691 = vadd.f32 0.0, %v2690
    %v2692 = vpop.f32.mrf.mxu0
    %v2693 = vadd.f32 0.0, %v2692
    %2694 = vmatmul.bf16.gmra.mxu0 %v993
    %v2695 = vpop.f32.mrf.mxu0
    %v2696 = vadd.f32 0.0, %v2695
    %v2697 = vpop.f32.mrf.mxu0
    %v2698 = vadd.f32 0.0, %v2697
    %2699 = vmatmul.bf16.gmra.mxu0 %v996
    %v2700 = vpop.f32.mrf.mxu0
    %v2701 = vadd.f32 0.0, %v2700
    %v2702 = vpop.f32.mrf.mxu0
    %v2703 = vadd.f32 0.0, %v2702
    %2704 = vmatmul.bf16.gmra.mxu0 %v1769
    %v2705 = vpop.f32.mrf.mxu0
    %v2706 = vadd.f32 0.0, %v2705
    %v2707 = vpop.f32.mrf.mxu0
    %v2708 = vadd.f32 0.0, %v2707
    %2709 = vmatmul.bf16.gmra.mxu0 %v2541
    %v2710 = vpop.f32.mrf.mxu0
    %v2711 = vadd.f32 0.0, %v2710
    %v2712 = vpop.f32.mrf.mxu0
    %v2713 = vadd.f32 0.0, %v2712
    %2714 = vdwg.mxu0
    %v2715 = vadd.f32 %v2469, %v2556
    %v2716 = vadd.f32 %v2470, %v2558
    %v2717 = vadd.f32 %v2471, %v2561
    %v2718 = vadd.f32 %v2472, %v2563
    %v2719 = vadd.f32 %v2473, %v2566
    %v2720 = vadd.f32 %v2474, %v2568
    %v2721 = vadd.f32 %v2475, %v2571
    %v2722 = vadd.f32 %v2476, %v2573
    %v2723 = vadd.f32 %v2477, %v2576
    %v2724 = vadd.f32 %v2478, %v2578
    %v2725 = vadd.f32 %v2479, %v2581
    %v2726 = vadd.f32 %v2480, %v2583
    %v2727 = vadd.f32 %v2481, %v2586
    %v2728 = vadd.f32 %v2482, %v2588
    %v2729 = vadd.f32 %v2483, %v2591
    %v2730 = vadd.f32 %v2484, %v2593
    %v2731 = vadd.f32 %v2485, %v2596
    %v2732 = vadd.f32 %v2486, %v2598
    %v2733 = vadd.f32 %v2487, %v2601
    %v2734 = vadd.f32 %v2488, %v2603
    %v2735 = vadd.f32 %v2489, %v2606
    %v2736 = vadd.f32 %v2490, %v2608
    %v2737 = vadd.f32 %v2491, %v2611
    %v2738 = vadd.f32 %v2492, %v2613
    %v2739 = vadd.f32 %v2493, %v2616
    %v2740 = vadd.f32 %v2494, %v2618
    %v2741 = vadd.f32 %v2495, %v2621
    %v2742 = vadd.f32 %v2496, %v2623
    %v2743 = vadd.f32 %v2497, %v2626
    %v2744 = vadd.f32 %v2498, %v2628
    %v2745 = vadd.f32 %v2499, %v2631
    %v2746 = vadd.f32 %v2500, %v2633
    %v2747 = vadd.f32 %v2501, %v2636
    %v2748 = vadd.f32 %v2502, %v2638
    %v2749 = vadd.f32 %v2503, %v2641
    %v2750 = vadd.f32 %v2504, %v2643
    %v2751 = vadd.f32 %v2505, %v2646
    %v2752 = vadd.f32 %v2506, %v2648
    %v2753 = vadd.f32 %v2507, %v2651
    %v2754 = vadd.f32 %v2508, %v2653
    %v2755 = vadd.f32 %v2509, %v2656
    %v2756 = vadd.f32 %v2510, %v2658
    %v2757 = vadd.f32 %v2511, %v2661
    %v2758 = vadd.f32 %v2512, %v2663
    %v2759 = vadd.f32 %v2513, %v2666
    %v2760 = vadd.f32 %v2514, %v2668
    %v2761 = vadd.f32 %v2515, %v2671
    %v2762 = vadd.f32 %v2516, %v2673
    %v2763 = vadd.f32 %v2517, %v2676
    %v2764 = vadd.f32 %v2518, %v2678
    %v2765 = vadd.f32 %v2519, %v2681
    %v2766 = vadd.f32 %v2520, %v2683
    %v2767 = vadd.f32 %v2521, %v2686
    %v2768 = vadd.f32 %v2522, %v2688
    %v2769 = vadd.f32 %v2523, %v2691
    %v2770 = vadd.f32 %v2524, %v2693
    %v2771 = vadd.f32 %v2525, %v2696
    %v2772 = vadd.f32 %v2526, %v2698
    %v2773 = vadd.f32 %v2527, %v2701
    %v2774 = vadd.f32 %v2528, %v2703
    %v2775 = vadd.f32 %v2529, %v2706
    %v2776 = vadd.f32 %v2530, %v2708
    %v2777 = vadd.f32 %v2531, %v2711
    %v2778 = vadd.f32 %v2532, %v2713
    %v2785 = vrot.slane %v187, 1
    %v2786 = vrot.slane %v188, 1
    %v2787 = vsel %vm373, %v2785, %v2786
    %v2788 = vrot.slane %v189, 1
    %v2789 = vsel %vm373, %v2786, %v2788
    %v2790 = vrot.slane %v241, 1
    %v2791 = vrot.slane %v242, 1
    %v2792 = vsel %vm373, %v2790, %v2791
    %v2793 = vrot.slane %v243, 1
    %v2794 = vsel %vm373, %v2791, %v2793
    %v2799 = vpack.c.bf16 %v2789, %v2787
    %v2800 = vpack.c.bf16 %v2794, %v2792
    %s2801 = scalar_lea.vmem %s1, 14
    %v2802 = vld [vmem:[%s2801] sm:$0x3]
    %v2804 = vsel %vm632, %v2799, 0
    %v2807 = vsel %vm632, %v2800, 0
    %v2810 = vsel %vm729, %v2802, 0
    %2812 = vmatpush.bf16.msra.mxu0 0
    %2813 = vmatpush.bf16.msra.mxu0 0
    %2814 = vmatpush.bf16.msra.mxu0 0
    %2815 = vmatpush.bf16.msra.mxu0 0
    %2816 = vmatpush.bf16.msra.mxu0 0
    %2817 = vmatpush.bf16.msra.mxu0 0
    %2818 = vmatpush.bf16.msra.mxu0 0
    %2819 = vmatpush.bf16.msra.mxu0 %v2810
    %2820 = vmatmul.bf16.gmra.mxu0 %v640
    %v2821 = vpop.f32.mrf.mxu0
    %v2822 = vadd.f32 0.0, %v2821
    %v2823 = vpop.f32.mrf.mxu0
    %v2824 = vadd.f32 0.0, %v2823
    %2825 = vmatmul.bf16.gmra.mxu0 %v643
    %v2826 = vpop.f32.mrf.mxu0
    %v2827 = vadd.f32 0.0, %v2826
    %v2828 = vpop.f32.mrf.mxu0
    %v2829 = vadd.f32 0.0, %v2828
    %2830 = vmatmul.bf16.gmra.mxu0 %v646
    %v2831 = vpop.f32.mrf.mxu0
    %v2832 = vadd.f32 0.0, %v2831
    %v2833 = vpop.f32.mrf.mxu0
    %v2834 = vadd.f32 0.0, %v2833
    %2835 = vmatmul.bf16.gmra.mxu0 %v649
    %v2836 = vpop.f32.mrf.mxu0
    %v2837 = vadd.f32 0.0, %v2836
    %v2838 = vpop.f32.mrf.mxu0
    %v2839 = vadd.f32 0.0, %v2838
    %2840 = vmatmul.bf16.gmra.mxu0 %v652
    %v2841 = vpop.f32.mrf.mxu0
    %v2842 = vadd.f32 0.0, %v2841
    %v2843 = vpop.f32.mrf.mxu0
    %v2844 = vadd.f32 0.0, %v2843
    %2845 = vmatmul.bf16.gmra.mxu0 %v655
    %v2846 = vpop.f32.mrf.mxu0
    %v2847 = vadd.f32 0.0, %v2846
    %v2848 = vpop.f32.mrf.mxu0
    %v2849 = vadd.f32 0.0, %v2848
    %2850 = vmatmul.bf16.gmra.mxu0 %v658
    %v2851 = vpop.f32.mrf.mxu0
    %v2852 = vadd.f32 0.0, %v2851
    %v2853 = vpop.f32.mrf.mxu0
    %v2854 = vadd.f32 0.0, %v2853
    %2855 = vmatmul.bf16.gmra.mxu0 %v661
    %v2856 = vpop.f32.mrf.mxu0
    %v2857 = vadd.f32 0.0, %v2856
    %v2858 = vpop.f32.mrf.mxu0
    %v2859 = vadd.f32 0.0, %v2858
    %2860 = vmatmul.bf16.gmra.mxu0 %v664
    %v2861 = vpop.f32.mrf.mxu0
    %v2862 = vadd.f32 0.0, %v2861
    %v2863 = vpop.f32.mrf.mxu0
    %v2864 = vadd.f32 0.0, %v2863
    %2865 = vmatmul.bf16.gmra.mxu0 %v667
    %v2866 = vpop.f32.mrf.mxu0
    %v2867 = vadd.f32 0.0, %v2866
    %v2868 = vpop.f32.mrf.mxu0
    %v2869 = vadd.f32 0.0, %v2868
    %2870 = vmatmul.bf16.gmra.mxu0 %v670
    %v2871 = vpop.f32.mrf.mxu0
    %v2872 = vadd.f32 0.0, %v2871
    %v2873 = vpop.f32.mrf.mxu0
    %v2874 = vadd.f32 0.0, %v2873
    %2875 = vmatmul.bf16.gmra.mxu0 %v673
    %v2876 = vpop.f32.mrf.mxu0
    %v2877 = vadd.f32 0.0, %v2876
    %v2878 = vpop.f32.mrf.mxu0
    %v2879 = vadd.f32 0.0, %v2878
    %2880 = vmatmul.bf16.gmra.mxu0 %v676
    %v2881 = vpop.f32.mrf.mxu0
    %v2882 = vadd.f32 0.0, %v2881
    %v2883 = vpop.f32.mrf.mxu0
    %v2884 = vadd.f32 0.0, %v2883
    %2885 = vmatmul.bf16.gmra.mxu0 %v679
    %v2886 = vpop.f32.mrf.mxu0
    %v2887 = vadd.f32 0.0, %v2886
    %v2888 = vpop.f32.mrf.mxu0
    %v2889 = vadd.f32 0.0, %v2888
    %2890 = vmatmul.bf16.gmra.mxu0 %v2032
    %v2891 = vpop.f32.mrf.mxu0
    %v2892 = vadd.f32 0.0, %v2891
    %v2893 = vpop.f32.mrf.mxu0
    %v2894 = vadd.f32 0.0, %v2893
    %2895 = vmatmul.bf16.gmra.mxu0 %v2804
    %v2896 = vpop.f32.mrf.mxu0
    %v2897 = vadd.f32 0.0, %v2896
    %v2898 = vpop.f32.mrf.mxu0
    %v2899 = vadd.f32 0.0, %v2898
    %2900 = vmatmul.bf16.gmra.mxu0 %v688
    %v2901 = vpop.f32.mrf.mxu0
    %v2902 = vadd.f32 0.0, %v2901
    %v2903 = vpop.f32.mrf.mxu0
    %v2904 = vadd.f32 0.0, %v2903
    %2905 = vmatmul.bf16.gmra.mxu0 %v691
    %v2906 = vpop.f32.mrf.mxu0
    %v2907 = vadd.f32 0.0, %v2906
    %v2908 = vpop.f32.mrf.mxu0
    %v2909 = vadd.f32 0.0, %v2908
    %2910 = vmatmul.bf16.gmra.mxu0 %v694
    %v2911 = vpop.f32.mrf.mxu0
    %v2912 = vadd.f32 0.0, %v2911
    %v2913 = vpop.f32.mrf.mxu0
    %v2914 = vadd.f32 0.0, %v2913
    %2915 = vmatmul.bf16.gmra.mxu0 %v697
    %v2916 = vpop.f32.mrf.mxu0
    %v2917 = vadd.f32 0.0, %v2916
    %v2918 = vpop.f32.mrf.mxu0
    %v2919 = vadd.f32 0.0, %v2918
    %2920 = vmatmul.bf16.gmra.mxu0 %v700
    %v2921 = vpop.f32.mrf.mxu0
    %v2922 = vadd.f32 0.0, %v2921
    %v2923 = vpop.f32.mrf.mxu0
    %v2924 = vadd.f32 0.0, %v2923
    %2925 = vmatmul.bf16.gmra.mxu0 %v703
    %v2926 = vpop.f32.mrf.mxu0
    %v2927 = vadd.f32 0.0, %v2926
    %v2928 = vpop.f32.mrf.mxu0
    %v2929 = vadd.f32 0.0, %v2928
    %2930 = vmatmul.bf16.gmra.mxu0 %v706
    %v2931 = vpop.f32.mrf.mxu0
    %v2932 = vadd.f32 0.0, %v2931
    %v2933 = vpop.f32.mrf.mxu0
    %v2934 = vadd.f32 0.0, %v2933
    %2935 = vmatmul.bf16.gmra.mxu0 %v709
    %v2936 = vpop.f32.mrf.mxu0
    %v2937 = vadd.f32 0.0, %v2936
    %v2938 = vpop.f32.mrf.mxu0
    %v2939 = vadd.f32 0.0, %v2938
    %2940 = vmatmul.bf16.gmra.mxu0 %v712
    %v2941 = vpop.f32.mrf.mxu0
    %v2942 = vadd.f32 0.0, %v2941
    %v2943 = vpop.f32.mrf.mxu0
    %v2944 = vadd.f32 0.0, %v2943
    %2945 = vmatmul.bf16.gmra.mxu0 %v715
    %v2946 = vpop.f32.mrf.mxu0
    %v2947 = vadd.f32 0.0, %v2946
    %v2948 = vpop.f32.mrf.mxu0
    %v2949 = vadd.f32 0.0, %v2948
    %2950 = vmatmul.bf16.gmra.mxu0 %v718
    %v2951 = vpop.f32.mrf.mxu0
    %v2952 = vadd.f32 0.0, %v2951
    %v2953 = vpop.f32.mrf.mxu0
    %v2954 = vadd.f32 0.0, %v2953
    %2955 = vmatmul.bf16.gmra.mxu0 %v721
    %v2956 = vpop.f32.mrf.mxu0
    %v2957 = vadd.f32 0.0, %v2956
    %v2958 = vpop.f32.mrf.mxu0
    %v2959 = vadd.f32 0.0, %v2958
    %2960 = vmatmul.bf16.gmra.mxu0 %v724
    %v2961 = vpop.f32.mrf.mxu0
    %v2962 = vadd.f32 0.0, %v2961
    %v2963 = vpop.f32.mrf.mxu0
    %v2964 = vadd.f32 0.0, %v2963
    %2965 = vmatmul.bf16.gmra.mxu0 %v727
    %v2966 = vpop.f32.mrf.mxu0
    %v2967 = vadd.f32 0.0, %v2966
    %v2968 = vpop.f32.mrf.mxu0
    %v2969 = vadd.f32 0.0, %v2968
    %2970 = vmatmul.bf16.gmra.mxu0 %v2035
    %v2971 = vpop.f32.mrf.mxu0
    %v2972 = vadd.f32 0.0, %v2971
    %v2973 = vpop.f32.mrf.mxu0
    %v2974 = vadd.f32 0.0, %v2973
    %2975 = vmatmul.bf16.gmra.mxu0 %v2807
    %v2976 = vpop.f32.mrf.mxu0
    %v2977 = vadd.f32 0.0, %v2976
    %v2978 = vpop.f32.mrf.mxu0
    %v2979 = vadd.f32 0.0, %v2978
    %2980 = vdwg.mxu0
    %v2981 = vadd.f32 %v2715, %v2822
    %v2982 = vadd.f32 %v2716, %v2824
    %v2983 = vadd.f32 %v2717, %v2827
    %v2984 = vadd.f32 %v2718, %v2829
    %v2985 = vadd.f32 %v2719, %v2832
    %v2986 = vadd.f32 %v2720, %v2834
    %v2987 = vadd.f32 %v2721, %v2837
    %v2988 = vadd.f32 %v2722, %v2839
    %v2989 = vadd.f32 %v2723, %v2842
    %v2990 = vadd.f32 %v2724, %v2844
    %v2991 = vadd.f32 %v2725, %v2847
    %v2992 = vadd.f32 %v2726, %v2849
    %v2993 = vadd.f32 %v2727, %v2852
    %v2994 = vadd.f32 %v2728, %v2854
    %v2995 = vadd.f32 %v2729, %v2857
    %v2996 = vadd.f32 %v2730, %v2859
    %v2997 = vadd.f32 %v2731, %v2862
    %v2998 = vadd.f32 %v2732, %v2864
    %v2999 = vadd.f32 %v2733, %v2867
    %v3000 = vadd.f32 %v2734, %v2869
    %v3001 = vadd.f32 %v2735, %v2872
    %v3002 = vadd.f32 %v2736, %v2874
    %v3003 = vadd.f32 %v2737, %v2877
    %v3004 = vadd.f32 %v2738, %v2879
    %v3005 = vadd.f32 %v2739, %v2882
    %v3006 = vadd.f32 %v2740, %v2884
    %v3007 = vadd.f32 %v2741, %v2887
    %v3008 = vadd.f32 %v2742, %v2889
    %v3009 = vadd.f32 %v2743, %v2892
    %v3010 = vadd.f32 %v2744, %v2894
    %v3011 = vadd.f32 %v2745, %v2897
    %v3012 = vadd.f32 %v2746, %v2899
    %v3013 = vadd.f32 %v2747, %v2902
    %v3014 = vadd.f32 %v2748, %v2904
    %v3015 = vadd.f32 %v2749, %v2907
    %v3016 = vadd.f32 %v2750, %v2909
    %v3017 = vadd.f32 %v2751, %v2912
    %v3018 = vadd.f32 %v2752, %v2914
    %v3019 = vadd.f32 %v2753, %v2917
    %v3020 = vadd.f32 %v2754, %v2919
    %v3021 = vadd.f32 %v2755, %v2922
    %v3022 = vadd.f32 %v2756, %v2924
    %v3023 = vadd.f32 %v2757, %v2927
    %v3024 = vadd.f32 %v2758, %v2929
    %v3025 = vadd.f32 %v2759, %v2932
    %v3026 = vadd.f32 %v2760, %v2934
    %v3027 = vadd.f32 %v2761, %v2937
    %v3028 = vadd.f32 %v2762, %v2939
    %v3029 = vadd.f32 %v2763, %v2942
    %v3030 = vadd.f32 %v2764, %v2944
    %v3031 = vadd.f32 %v2765, %v2947
    %v3032 = vadd.f32 %v2766, %v2949
    %v3033 = vadd.f32 %v2767, %v2952
    %v3034 = vadd.f32 %v2768, %v2954
    %v3035 = vadd.f32 %v2769, %v2957
    %v3036 = vadd.f32 %v2770, %v2959
    %v3037 = vadd.f32 %v2771, %v2962
    %v3038 = vadd.f32 %v2772, %v2964
    %v3039 = vadd.f32 %v2773, %v2967
    %v3040 = vadd.f32 %v2774, %v2969
    %v3041 = vadd.f32 %v2775, %v2972
    %v3042 = vadd.f32 %v2776, %v2974
    %v3043 = vadd.f32 %v2777, %v2977
    %v3044 = vadd.f32 %v2778, %v2979
    %v3045 = vrot.slane %v187, 2
    %v3046 = vrot.slane %v188, 2
    %v3047 = vsel %vm1170, %v3045, %v3046
    %v3048 = vrot.slane %v189, 2
    %v3049 = vsel %vm1170, %v3046, %v3048
    %v3050 = vrot.slane %v241, 2
    %v3051 = vrot.slane %v242, 2
    %v3052 = vsel %vm1170, %v3050, %v3051
    %v3053 = vrot.slane %v243, 2
    %v3054 = vsel %vm1170, %v3051, %v3053
    %v3059 = vpack.c.bf16 %v3049, %v3047
    %v3060 = vpack.c.bf16 %v3054, %v3052
    %s3061 = scalar_lea.vmem %s1, 16
    %v3062 = vld [vmem:[%s3061] sm:$0x3]
    %v3064 = vsel %vm632, %v3059, 0
    %v3067 = vsel %vm632, %v3060, 0
    %v3070 = vsel %vm729, %v3062, 0
    %3072 = vmatpush.bf16.msra.mxu0 0
    %3073 = vmatpush.bf16.msra.mxu0 0
    %3074 = vmatpush.bf16.msra.mxu0 0
    %3075 = vmatpush.bf16.msra.mxu0 0
    %3076 = vmatpush.bf16.msra.mxu0 0
    %3077 = vmatpush.bf16.msra.mxu0 0
    %3078 = vmatpush.bf16.msra.mxu0 0
    %3079 = vmatpush.bf16.msra.mxu0 %v3070
    %3080 = vmatmul.bf16.gmra.mxu0 %v1436
    %v3081 = vpop.f32.mrf.mxu0
    %v3082 = vadd.f32 0.0, %v3081
    %v3083 = vpop.f32.mrf.mxu0
    %v3084 = vadd.f32 0.0, %v3083
    %3085 = vmatmul.bf16.gmra.mxu0 %v1439
    %v3086 = vpop.f32.mrf.mxu0
    %v3087 = vadd.f32 0.0, %v3086
    %v3088 = vpop.f32.mrf.mxu0
    %v3089 = vadd.f32 0.0, %v3088
    %3090 = vmatmul.bf16.gmra.mxu0 %v1442
    %v3091 = vpop.f32.mrf.mxu0
    %v3092 = vadd.f32 0.0, %v3091
    %v3093 = vpop.f32.mrf.mxu0
    %v3094 = vadd.f32 0.0, %v3093
    %3095 = vmatmul.bf16.gmra.mxu0 %v1445
    %v3096 = vpop.f32.mrf.mxu0
    %v3097 = vadd.f32 0.0, %v3096
    %v3098 = vpop.f32.mrf.mxu0
    %v3099 = vadd.f32 0.0, %v3098
    %3100 = vmatmul.bf16.gmra.mxu0 %v1448
    %v3101 = vpop.f32.mrf.mxu0
    %v3102 = vadd.f32 0.0, %v3101
    %v3103 = vpop.f32.mrf.mxu0
    %v3104 = vadd.f32 0.0, %v3103
    %3105 = vmatmul.bf16.gmra.mxu0 %v1451
    %v3106 = vpop.f32.mrf.mxu0
    %v3107 = vadd.f32 0.0, %v3106
    %v3108 = vpop.f32.mrf.mxu0
    %v3109 = vadd.f32 0.0, %v3108
    %3110 = vmatmul.bf16.gmra.mxu0 %v1454
    %v3111 = vpop.f32.mrf.mxu0
    %v3112 = vadd.f32 0.0, %v3111
    %v3113 = vpop.f32.mrf.mxu0
    %v3114 = vadd.f32 0.0, %v3113
    %3115 = vmatmul.bf16.gmra.mxu0 %v1457
    %v3116 = vpop.f32.mrf.mxu0
    %v3117 = vadd.f32 0.0, %v3116
    %v3118 = vpop.f32.mrf.mxu0
    %v3119 = vadd.f32 0.0, %v3118
    %3120 = vmatmul.bf16.gmra.mxu0 %v1460
    %v3121 = vpop.f32.mrf.mxu0
    %v3122 = vadd.f32 0.0, %v3121
    %v3123 = vpop.f32.mrf.mxu0
    %v3124 = vadd.f32 0.0, %v3123
    %3125 = vmatmul.bf16.gmra.mxu0 %v1463
    %v3126 = vpop.f32.mrf.mxu0
    %v3127 = vadd.f32 0.0, %v3126
    %v3128 = vpop.f32.mrf.mxu0
    %v3129 = vadd.f32 0.0, %v3128
    %3130 = vmatmul.bf16.gmra.mxu0 %v1466
    %v3131 = vpop.f32.mrf.mxu0
    %v3132 = vadd.f32 0.0, %v3131
    %v3133 = vpop.f32.mrf.mxu0
    %v3134 = vadd.f32 0.0, %v3133
    %3135 = vmatmul.bf16.gmra.mxu0 %v1469
    %v3136 = vpop.f32.mrf.mxu0
    %v3137 = vadd.f32 0.0, %v3136
    %v3138 = vpop.f32.mrf.mxu0
    %v3139 = vadd.f32 0.0, %v3138
    %3140 = vmatmul.bf16.gmra.mxu0 %v1472
    %v3141 = vpop.f32.mrf.mxu0
    %v3142 = vadd.f32 0.0, %v3141
    %v3143 = vpop.f32.mrf.mxu0
    %v3144 = vadd.f32 0.0, %v3143
    %3145 = vmatmul.bf16.gmra.mxu0 %v1475
    %v3146 = vpop.f32.mrf.mxu0
    %v3147 = vadd.f32 0.0, %v3146
    %v3148 = vpop.f32.mrf.mxu0
    %v3149 = vadd.f32 0.0, %v3148
    %3150 = vmatmul.bf16.gmra.mxu0 %v2292
    %v3151 = vpop.f32.mrf.mxu0
    %v3152 = vadd.f32 0.0, %v3151
    %v3153 = vpop.f32.mrf.mxu0
    %v3154 = vadd.f32 0.0, %v3153
    %3155 = vmatmul.bf16.gmra.mxu0 %v3064
    %v3156 = vpop.f32.mrf.mxu0
    %v3157 = vadd.f32 0.0, %v3156
    %v3158 = vpop.f32.mrf.mxu0
    %v3159 = vadd.f32 0.0, %v3158
    %3160 = vmatmul.bf16.gmra.mxu0 %v1484
    %v3161 = vpop.f32.mrf.mxu0
    %v3162 = vadd.f32 0.0, %v3161
    %v3163 = vpop.f32.mrf.mxu0
    %v3164 = vadd.f32 0.0, %v3163
    %3165 = vmatmul.bf16.gmra.mxu0 %v1487
    %v3166 = vpop.f32.mrf.mxu0
    %v3167 = vadd.f32 0.0, %v3166
    %v3168 = vpop.f32.mrf.mxu0
    %v3169 = vadd.f32 0.0, %v3168
    %3170 = vmatmul.bf16.gmra.mxu0 %v1490
    %v3171 = vpop.f32.mrf.mxu0
    %v3172 = vadd.f32 0.0, %v3171
    %v3173 = vpop.f32.mrf.mxu0
    %v3174 = vadd.f32 0.0, %v3173
    %3175 = vmatmul.bf16.gmra.mxu0 %v1493
    %v3176 = vpop.f32.mrf.mxu0
    %v3177 = vadd.f32 0.0, %v3176
    %v3178 = vpop.f32.mrf.mxu0
    %v3179 = vadd.f32 0.0, %v3178
    %3180 = vmatmul.bf16.gmra.mxu0 %v1496
    %v3181 = vpop.f32.mrf.mxu0
    %v3182 = vadd.f32 0.0, %v3181
    %v3183 = vpop.f32.mrf.mxu0
    %v3184 = vadd.f32 0.0, %v3183
    %3185 = vmatmul.bf16.gmra.mxu0 %v1499
    %v3186 = vpop.f32.mrf.mxu0
    %v3187 = vadd.f32 0.0, %v3186
    %v3188 = vpop.f32.mrf.mxu0
    %v3189 = vadd.f32 0.0, %v3188
    %3190 = vmatmul.bf16.gmra.mxu0 %v1502
    %v3191 = vpop.f32.mrf.mxu0
    %v3192 = vadd.f32 0.0, %v3191
    %v3193 = vpop.f32.mrf.mxu0
    %v3194 = vadd.f32 0.0, %v3193
    %3195 = vmatmul.bf16.gmra.mxu0 %v1505
    %v3196 = vpop.f32.mrf.mxu0
    %v3197 = vadd.f32 0.0, %v3196
    %v3198 = vpop.f32.mrf.mxu0
    %v3199 = vadd.f32 0.0, %v3198
    %3200 = vmatmul.bf16.gmra.mxu0 %v1508
    %v3201 = vpop.f32.mrf.mxu0
    %v3202 = vadd.f32 0.0, %v3201
    %v3203 = vpop.f32.mrf.mxu0
    %v3204 = vadd.f32 0.0, %v3203
    %3205 = vmatmul.bf16.gmra.mxu0 %v1511
    %v3206 = vpop.f32.mrf.mxu0
    %v3207 = vadd.f32 0.0, %v3206
    %v3208 = vpop.f32.mrf.mxu0
    %v3209 = vadd.f32 0.0, %v3208
    %3210 = vmatmul.bf16.gmra.mxu0 %v1514
    %v3211 = vpop.f32.mrf.mxu0
    %v3212 = vadd.f32 0.0, %v3211
    %v3213 = vpop.f32.mrf.mxu0
    %v3214 = vadd.f32 0.0, %v3213
    %3215 = vmatmul.bf16.gmra.mxu0 %v1517
    %v3216 = vpop.f32.mrf.mxu0
    %v3217 = vadd.f32 0.0, %v3216
    %v3218 = vpop.f32.mrf.mxu0
    %v3219 = vadd.f32 0.0, %v3218
    %3220 = vmatmul.bf16.gmra.mxu0 %v1520
    %v3221 = vpop.f32.mrf.mxu0
    %v3222 = vadd.f32 0.0, %v3221
    %v3223 = vpop.f32.mrf.mxu0
    %v3224 = vadd.f32 0.0, %v3223
    %3225 = vmatmul.bf16.gmra.mxu0 %v1523
    %v3226 = vpop.f32.mrf.mxu0
    %v3227 = vadd.f32 0.0, %v3226
    %v3228 = vpop.f32.mrf.mxu0
    %v3229 = vadd.f32 0.0, %v3228
    %3230 = vmatmul.bf16.gmra.mxu0 %v2295
    %v3231 = vpop.f32.mrf.mxu0
    %v3232 = vadd.f32 0.0, %v3231
    %v3233 = vpop.f32.mrf.mxu0
    %v3234 = vadd.f32 0.0, %v3233
    %3235 = vmatmul.bf16.gmra.mxu0 %v3067
    %v3236 = vpop.f32.mrf.mxu0
    %v3237 = vadd.f32 0.0, %v3236
    %v3238 = vpop.f32.mrf.mxu0
    %v3239 = vadd.f32 0.0, %v3238
    %3240 = vdwg.mxu0
    %v3241 = vadd.f32 %v2981, %v3082
    %v3242 = vadd.f32 %v2982, %v3084
    %v3243 = vadd.f32 %v2983, %v3087
    %v3244 = vadd.f32 %v2984, %v3089
    %v3245 = vadd.f32 %v2985, %v3092
    %v3246 = vadd.f32 %v2986, %v3094
    %v3247 = vadd.f32 %v2987, %v3097
    %v3248 = vadd.f32 %v2988, %v3099
    %v3249 = vadd.f32 %v2989, %v3102
    %v3250 = vadd.f32 %v2990, %v3104
    %v3251 = vadd.f32 %v2991, %v3107
    %v3252 = vadd.f32 %v2992, %v3109
    %v3253 = vadd.f32 %v2993, %v3112
    %v3254 = vadd.f32 %v2994, %v3114
    %v3255 = vadd.f32 %v2995, %v3117
    %v3256 = vadd.f32 %v2996, %v3119
    %v3257 = vadd.f32 %v2997, %v3122
    %v3258 = vadd.f32 %v2998, %v3124
    %v3259 = vadd.f32 %v2999, %v3127
    %v3260 = vadd.f32 %v3000, %v3129
    %v3261 = vadd.f32 %v3001, %v3132
    %v3262 = vadd.f32 %v3002, %v3134
    %v3263 = vadd.f32 %v3003, %v3137
    %v3264 = vadd.f32 %v3004, %v3139
    %v3265 = vadd.f32 %v3005, %v3142
    %v3266 = vadd.f32 %v3006, %v3144
    %v3267 = vadd.f32 %v3007, %v3147
    %v3268 = vadd.f32 %v3008, %v3149
    %v3269 = vadd.f32 %v3009, %v3152
    %v3270 = vadd.f32 %v3010, %v3154
    %v3271 = vadd.f32 %v3011, %v3157
    %v3272 = vadd.f32 %v3012, %v3159
    %v3273 = vadd.f32 %v3013, %v3162
    %v3274 = vadd.f32 %v3014, %v3164
    %v3275 = vadd.f32 %v3015, %v3167
    %v3276 = vadd.f32 %v3016, %v3169
    %v3277 = vadd.f32 %v3017, %v3172
    %v3278 = vadd.f32 %v3018, %v3174
    %v3279 = vadd.f32 %v3019, %v3177
    %v3280 = vadd.f32 %v3020, %v3179
    %v3281 = vadd.f32 %v3021, %v3182
    %v3282 = vadd.f32 %v3022, %v3184
    %v3283 = vadd.f32 %v3023, %v3187
    %v3284 = vadd.f32 %v3024, %v3189
    %v3285 = vadd.f32 %v3025, %v3192
    %v3286 = vadd.f32 %v3026, %v3194
    %v3287 = vadd.f32 %v3027, %v3197
    %v3288 = vadd.f32 %v3028, %v3199
    %v3289 = vadd.f32 %v3029, %v3202
    %v3290 = vadd.f32 %v3030, %v3204
    %v3291 = vadd.f32 %v3031, %v3207
    %v3292 = vadd.f32 %v3032, %v3209
    %v3293 = vadd.f32 %v3033, %v3212
    %v3294 = vadd.f32 %v3034, %v3214
    %v3295 = vadd.f32 %v3035, %v3217
    %v3296 = vadd.f32 %v3036, %v3219
    %v3297 = vadd.f32 %v3037, %v3222
    %v3298 = vadd.f32 %v3038, %v3224
    %v3299 = vadd.f32 %v3039, %v3227
    %v3300 = vadd.f32 %v3040, %v3229
    %v3301 = vadd.f32 %v3041, %v3232
    %v3302 = vadd.f32 %v3042, %v3234
    %v3303 = vadd.f32 %v3043, %v3237
    %v3304 = vadd.f32 %v3044, %v3239
    %v3305 = vmax.f32 %v3241, 0.0
    %v3306 = vmax.f32 %v3242, 0.0
    %v3307 = vmax.f32 %v3243, 0.0
    %v3308 = vmax.f32 %v3244, 0.0
    %v3309 = vmax.f32 %v3245, 0.0
    %v3310 = vmax.f32 %v3246, 0.0
    %v3311 = vmax.f32 %v3247, 0.0
    %v3312 = vmax.f32 %v3248, 0.0
    %v3313 = vmax.f32 %v3249, 0.0
    %v3314 = vmax.f32 %v3250, 0.0
    %v3315 = vmax.f32 %v3251, 0.0
    %v3316 = vmax.f32 %v3252, 0.0
    %v3317 = vmax.f32 %v3253, 0.0
    %v3318 = vmax.f32 %v3254, 0.0
    %v3319 = vmax.f32 %v3255, 0.0
    %v3320 = vmax.f32 %v3256, 0.0
    %v3321 = vmax.f32 %v3257, 0.0
    %v3322 = vmax.f32 %v3258, 0.0
    %v3323 = vmax.f32 %v3259, 0.0
    %v3324 = vmax.f32 %v3260, 0.0
    %v3325 = vmax.f32 %v3261, 0.0
    %v3326 = vmax.f32 %v3262, 0.0
    %v3327 = vmax.f32 %v3263, 0.0
    %v3328 = vmax.f32 %v3264, 0.0
    %v3329 = vmax.f32 %v3265, 0.0
    %v3330 = vmax.f32 %v3266, 0.0
    %v3331 = vmax.f32 %v3267, 0.0
    %v3332 = vmax.f32 %v3268, 0.0
    %v3333 = vmax.f32 %v3269, 0.0
    %v3334 = vmax.f32 %v3270, 0.0
    %v3335 = vmax.f32 %v3271, 0.0
    %v3336 = vmax.f32 %v3272, 0.0
    %v3337 = vmax.f32 %v3273, 0.0
    %v3338 = vmax.f32 %v3274, 0.0
    %v3339 = vmax.f32 %v3275, 0.0
    %v3340 = vmax.f32 %v3276, 0.0
    %v3341 = vmax.f32 %v3277, 0.0
    %v3342 = vmax.f32 %v3278, 0.0
    %v3343 = vmax.f32 %v3279, 0.0
    %v3344 = vmax.f32 %v3280, 0.0
    %v3345 = vmax.f32 %v3281, 0.0
    %v3346 = vmax.f32 %v3282, 0.0
    %v3347 = vmax.f32 %v3283, 0.0
    %v3348 = vmax.f32 %v3284, 0.0
    %v3349 = vmax.f32 %v3285, 0.0
    %v3350 = vmax.f32 %v3286, 0.0
    %v3351 = vmax.f32 %v3287, 0.0
    %v3352 = vmax.f32 %v3288, 0.0
    %v3353 = vmax.f32 %v3289, 0.0
    %v3354 = vmax.f32 %v3290, 0.0
    %v3355 = vmax.f32 %v3291, 0.0
    %v3356 = vmax.f32 %v3292, 0.0
    %v3357 = vmax.f32 %v3293, 0.0
    %v3358 = vmax.f32 %v3294, 0.0
    %v3359 = vmax.f32 %v3295, 0.0
    %v3360 = vmax.f32 %v3296, 0.0
    %v3361 = vmax.f32 %v3297, 0.0
    %v3362 = vmax.f32 %v3298, 0.0
    %v3363 = vmax.f32 %v3299, 0.0
    %v3364 = vmax.f32 %v3300, 0.0
    %v3365 = vmax.f32 %v3301, 0.0
    %v3366 = vmax.f32 %v3302, 0.0
    %v3367 = vmax.f32 %v3303, 0.0
    %v3368 = vmax.f32 %v3304, 0.0
    %v3369 = vadd.f32 %v3305, %v3306
    %v3370 = vadd.f32 %v3369, %v3307
    %v3371 = vadd.f32 %v3370, %v3308
    %v3372 = vadd.f32 %v3371, %v3309
    %v3373 = vadd.f32 %v3372, %v3310
    %v3374 = vadd.f32 %v3373, %v3311
    %v3375 = vadd.f32 %v3374, %v3312
    %v3376 = vadd.f32 %v3375, %v3313
    %v3377 = vadd.f32 %v3376, %v3314
    %v3378 = vadd.f32 %v3377, %v3315
    %v3379 = vadd.f32 %v3378, %v3316
    %v3380 = vadd.f32 %v3379, %v3317
    %v3381 = vadd.f32 %v3380, %v3318
    %v3382 = vadd.f32 %v3381, %v3319
    %v3383 = vadd.f32 %v3382, %v3320
    %v3384 = vadd.f32 %v3383, %v3321
    %v3385 = vadd.f32 %v3384, %v3322
    %v3386 = vadd.f32 %v3385, %v3323
    %v3387 = vadd.f32 %v3386, %v3324
    %v3388 = vadd.f32 %v3387, %v3325
    %v3389 = vadd.f32 %v3388, %v3326
    %v3390 = vadd.f32 %v3389, %v3327
    %v3391 = vadd.f32 %v3390, %v3328
    %v3392 = vadd.f32 %v3391, %v3329
    %v3393 = vadd.f32 %v3392, %v3330
    %v3394 = vadd.f32 %v3393, %v3331
    %v3395 = vadd.f32 %v3394, %v3332
    %v3396 = vadd.f32 %v3395, %v3333
    %v3397 = vadd.f32 %v3396, %v3334
    %v3398 = vadd.f32 %v3397, %v3335
    %v3399 = vadd.f32 %v3398, %v3336
    %v3400 = vrot.slane %v3399, 4
    %v3401 = vadd.f32 %v3399, %v3400
    %v3402 = vrot.slane %v3401, 2
    %v3403 = vadd.f32 %v3401, %v3402
    %v3404 = vrot.slane %v3403, 1
    %v3405 = vadd.f32 %v3403, %v3404
    %v3406 = vadd.f32 %v3337, %v3338
    %v3407 = vadd.f32 %v3406, %v3339
    %v3408 = vadd.f32 %v3407, %v3340
    %v3409 = vadd.f32 %v3408, %v3341
    %v3410 = vadd.f32 %v3409, %v3342
    %v3411 = vadd.f32 %v3410, %v3343
    %v3412 = vadd.f32 %v3411, %v3344
    %v3413 = vadd.f32 %v3412, %v3345
    %v3414 = vadd.f32 %v3413, %v3346
    %v3415 = vadd.f32 %v3414, %v3347
    %v3416 = vadd.f32 %v3415, %v3348
    %v3417 = vadd.f32 %v3416, %v3349
    %v3418 = vadd.f32 %v3417, %v3350
    %v3419 = vadd.f32 %v3418, %v3351
    %v3420 = vadd.f32 %v3419, %v3352
    %v3421 = vadd.f32 %v3420, %v3353
    %v3422 = vadd.f32 %v3421, %v3354
    %v3423 = vadd.f32 %v3422, %v3355
    %v3424 = vadd.f32 %v3423, %v3356
    %v3425 = vadd.f32 %v3424, %v3357
    %v3426 = vadd.f32 %v3425, %v3358
    %v3427 = vadd.f32 %v3426, %v3359
    %v3428 = vadd.f32 %v3427, %v3360
    %v3429 = vadd.f32 %v3428, %v3361
    %v3430 = vadd.f32 %v3429, %v3362
    %v3431 = vadd.f32 %v3430, %v3363
    %v3432 = vadd.f32 %v3431, %v3364
    %v3433 = vadd.f32 %v3432, %v3365
    %v3434 = vadd.f32 %v3433, %v3366
    %v3435 = vadd.f32 %v3434, %v3367
    %v3436 = vadd.f32 %v3435, %v3368
    %v3437 = vrot.slane %v3436, 4
    %v3438 = vadd.f32 %v3436, %v3437
    %v3439 = vrot.slane %v3438, 2
    %v3440 = vadd.f32 %v3438, %v3439
    %v3441 = vrot.slane %v3440, 1
    %v3442 = vadd.f32 %v3440, %v3441
    %v3443 = vmul.f32 %v3405, 0.00390625
    %v3444 = vmul.f32 %v3442, 0.00390625
    %v3445 = vpack.c.bf16 %v3443, %v3443
    %v3446 = vpack.c.bf16 %v3444, %v3444
    %v3447 = vld [vmem:[%s2] sm:$0xf]
    %v3448 = vld [vmem:[%s2 + $0x4] sm:$0xf]
    %v3449 = vld [vmem:[%s2 + $0x8] sm:$0xf]
    %v3450 = vld [vmem:[%s2 + $0xc] sm:$0xf]
    %v3451 = vld [vmem:[%s2 + $0x10] sm:$0xf]
    %v3452 = vld [vmem:[%s2 + $0x14] sm:$0xf]
    %v3453 = vld [vmem:[%s2 + $0x18] sm:$0xf]
    %v3454 = vld [vmem:[%s2 + $0x1c] sm:$0xf]
    %v3455 = vld [vmem:[%s2 + $0x20] sm:$0xf]
    %v3456 = vld [vmem:[%s2 + $0x24] sm:$0xf]
    %v3457 = vld [vmem:[%s2 + $0x28] sm:$0xf]
    %v3458 = vld [vmem:[%s2 + $0x2c] sm:$0xf]
    %v3459 = vld [vmem:[%s2 + $0x30] sm:$0xf]
    %v3460 = vld [vmem:[%s2 + $0x34] sm:$0xf]
    %v3461 = vld [vmem:[%s2 + $0x38] sm:$0xf]
    %v3462 = vld [vmem:[%s2 + $0x3c] sm:$0xf]
    %v3465 = vunpack.c.l.b16 %v3445
    %v3466 = vunpack.c.l.b16 %v3446
    %vm3467 = vcmask 1041409
    %v3468 = vsel %vm3467, %v3466, %v3465
    %v3469 = vpack.c.b16 %v3468, %v3468
    %v3487 = vunpack.c.l.b16 %v3447
    %v3488 = vunpack.c.l.b16 %v3448
    %v3489 = vunpack.c.l.b16 %v3449
    %v3490 = vunpack.c.l.b16 %v3450
    %v3491 = vunpack.c.l.b16 %v3451
    %v3492 = vunpack.c.l.b16 %v3452
    %v3493 = vunpack.c.l.b16 %v3453
    %v3494 = vunpack.c.l.b16 %v3454
    %v3495 = vunpack.c.l.b16 %v3455
    %v3496 = vunpack.c.l.b16 %v3456
    %v3497 = vunpack.c.l.b16 %v3457
    %v3498 = vunpack.c.l.b16 %v3458
    %v3499 = vunpack.c.l.b16 %v3459
    %v3500 = vunpack.c.l.b16 %v3460
    %v3501 = vunpack.c.l.b16 %v3461
    %v3502 = vunpack.c.l.b16 %v3462
    %v3503 = vpack.c.b16 %v3488, %v3487
    %v3504 = vpack.c.b16 %v3490, %v3489
    %v3505 = vpack.c.b16 %v3492, %v3491
    %v3506 = vpack.c.b16 %v3494, %v3493
    %v3507 = vpack.c.b16 %v3496, %v3495
    %v3508 = vpack.c.b16 %v3498, %v3497
    %v3509 = vpack.c.b16 %v3500, %v3499
    %v3510 = vpack.c.b16 %v3502, %v3501
    %3519 = vmatpush.bf16.msra.mxu0 %v3510
    %3520 = vmatpush.bf16.msra.mxu0 %v3509
    %3521 = vmatpush.bf16.msra.mxu0 %v3508
    %3522 = vmatpush.bf16.msra.mxu0 %v3507
    %3523 = vmatpush.bf16.msra.mxu0 %v3506
    %3524 = vmatpush.bf16.msra.mxu0 %v3505
    %3525 = vmatpush.bf16.msra.mxu0 %v3504
    %3526 = vmatpush.bf16.msra.mxu0 %v3503
    %3527 = vmatmul.bf16.gmra.mxu0 %v3469
    %v3528 = vpop.f32.mrf.mxu0
    %v3529 = vadd.f32 0.0, %v3528
    %v3530 = vpop.f32.mrf.mxu0
    %3531 = vdwg.mxu0
    %v3532 = vld [vmem:[%s3] sm:$0x1]
    %v3534 = vperm.slane %v3532, 0
    %v3536 = vsub.f32 %v3529, %v3534
    %v3537 = vld [vmem:[%s4] sm:$0x1]
    %v3539 = vperm.slane %v3537, 0
    %v3541 = vmul.f32 %v3536, %v3539
    %v3542 = vpack.c.bf16 %v3541, %v3541
    %v3543 = vld [vmem:[%s5] sm:$0xf]
    %v3544 = vld [vmem:[%s5 + $0x4] sm:$0xf]
    %v3545 = vld [vmem:[%s5 + $0x8] sm:$0xf]
    %v3546 = vld [vmem:[%s5 + $0xc] sm:$0xf]
    %v3547 = vld [vmem:[%s5 + $0x10] sm:$0xf]
    %v3548 = vld [vmem:[%s5 + $0x14] sm:$0xf]
    %v3549 = vld [vmem:[%s5 + $0x18] sm:$0xf]
    %v3550 = vld [vmem:[%s5 + $0x1c] sm:$0xf]
    %v3551 = vld [vmem:[%s5 + $0x20] sm:$0xf]
    %v3552 = vld [vmem:[%s5 + $0x24] sm:$0xf]
    %v3553 = vld [vmem:[%s5 + $0x28] sm:$0xf]
    %v3554 = vld [vmem:[%s5 + $0x2c] sm:$0xf]
    %v3555 = vld [vmem:[%s5 + $0x30] sm:$0xf]
    %v3556 = vld [vmem:[%s5 + $0x34] sm:$0xf]
    %v3557 = vld [vmem:[%s5 + $0x38] sm:$0xf]
    %v3558 = vld [vmem:[%s5 + $0x3c] sm:$0xf]
    %v3559 = vld [vmem:[%s6] sm:$0x1]
    %v3561 = vperm.slane %v3559, 0
    %v3579 = vunpack.c.l.b16 %v3543
    %v3580 = vunpack.c.l.b16 %v3544
    %v3581 = vunpack.c.l.b16 %v3545
    %v3582 = vunpack.c.l.b16 %v3546
    %v3583 = vunpack.c.l.b16 %v3547
    %v3584 = vunpack.c.l.b16 %v3548
    %v3585 = vunpack.c.l.b16 %v3549
    %v3586 = vunpack.c.l.b16 %v3550
    %v3587 = vunpack.c.l.b16 %v3551
    %v3588 = vunpack.c.l.b16 %v3552
    %v3589 = vunpack.c.l.b16 %v3553
    %v3590 = vunpack.c.l.b16 %v3554
    %v3591 = vunpack.c.l.b16 %v3555
    %v3592 = vunpack.c.l.b16 %v3556
    %v3593 = vunpack.c.l.b16 %v3557
    %v3594 = vunpack.c.l.b16 %v3558
    %v3595 = vpack.c.b16 %v3580, %v3579
    %v3596 = vpack.c.b16 %v3582, %v3581
    %v3597 = vpack.c.b16 %v3584, %v3583
    %v3598 = vpack.c.b16 %v3586, %v3585
    %v3599 = vpack.c.b16 %v3588, %v3587
    %v3600 = vpack.c.b16 %v3590, %v3589
    %v3601 = vpack.c.b16 %v3592, %v3591
    %v3602 = vpack.c.b16 %v3594, %v3593
    %3611 = vmatpush.bf16.msra.mxu0 %v3602
    %3612 = vmatpush.bf16.msra.mxu0 %v3601
    %3613 = vmatpush.bf16.msra.mxu0 %v3600
    %3614 = vmatpush.bf16.msra.mxu0 %v3599
    %3615 = vmatpush.bf16.msra.mxu0 %v3598
    %3616 = vmatpush.bf16.msra.mxu0 %v3597
    %3617 = vmatpush.bf16.msra.mxu0 %v3596
    %3618 = vmatpush.bf16.msra.mxu0 %v3595
    %3619 = vmatmul.bf16.gmra.mxu0 %v3542
    %v3620 = vpop.f32.mrf.mxu0
    %v3621 = vadd.f32 %v3561, %v3620
    %v3622 = vpop.f32.mrf.mxu0
    %3623 = vdwg.mxu0
    %3624 = vst [vmem:[#allocation2] sm:$0x3] %v3621
    // Predicated region
    $region30: #{tpu_custom_call.1} parent=1 // pred_check
      _
    $region31: #{tpu_custom_call.1} parent=1 // pred_check_branch
      %3626 = sbr.rel (0) target = $region33
    $region32: #{tpu_custom_call.1} parent=1 // pred_region
      %3628 = vsyncadd [#allocation3], 0
      %s3630 = sshll.u32 [#allocation2], 4
      %s3631 = int_to_ptr.vmem [resolvable:$true] %s3630
      %s3632 = sshll.u32 %s7, 4
      %s3633 = int_to_ptr.hbm [resolvable:$true] %s3632
      %3635 = dma.vmem_to_hbm [thread:$0]  %s3631, 32, %s3633, [#allocation3]
    $region33: #{tpu_custom_call.1} parent=1 // pred_fallthru
      _
    // Predicated region
    $region34: #{tpu_custom_call.1} parent=1 // pred_check
      _
    $region35: #{tpu_custom_call.1} parent=1 // pred_check_branch
      %3637 = sbr.rel (0) target = $region37
    $region36: #{tpu_custom_call.1} parent=1 // pred_region
      %3639 = dma.done [#allocation3], 32
    $region37: #{tpu_custom_call.1} parent=1 // pred_fallthru
      _
    %3640 = vsyncpa [#allocation3], 1

</llo_original>
